<compile_context>
chip_gen: v7x
topology: tpu7x:2x2x1
jax: 0.10.0
libtpu: 0.0.40
codegen_flags: <defaults>
</compile_context>

<pallas_src>
import functools

import jax
import jax.numpy as jnp
from jax.experimental import pallas as pl
from jax.experimental.pallas import tpu as pltpu


def _round_up(x, m):
    return (x + m - 1) // m * m


def _pick_tile_h(H_out, W_out, Wp, Cin_pad, TCO, sh, KH, in_itemsize,
                 tm_target, vmem_budget=8 * 2**20):
    """Largest divisor of H_out whose per-step working set stays small (v7x-safe)."""
    best = 1
    for th in range(1, H_out + 1):
        if H_out % th:
            continue
        halo = (th - 1) * sh + KH
        tile_bytes = (2 * halo * Wp * Cin_pad * in_itemsize   # double-buffered halo scratch
                      + 2 * th * W_out * TCO * 4              # pipelined output block
                      + th * W_out * TCO * 4)                 # f32 accumulator
        if th * W_out <= tm_target and tile_bytes <= vmem_budget:
            best = th
    return best


def _conv_bn_leaky_kernel(x_hbm, w_ref, bias_ref, o_ref, xbuf, sem, *,
                          KH, KW, sh, sw, TH, W_out, HALO, n_h_tiles,
                          negative_slope):
    """One grid step = one (image n, Cout-tile co, row-tile h) output block.

    x_hbm:    (N, Hp, Wp, Cin_pad)       padded input, NHWC, in HBM (pl.ANY)
    w_ref:    (KH, KW, Cin_pad, TCO)     BN-scale-folded weight tile (VMEM, pipelined over co)
    bias_ref: (1, TCO)                   folded BN bias tile (VMEM)
    o_ref:    (1, TH, W_out, TCO)        output block (lane-dense)
    xbuf:     (2, HALO, Wp, Cin_pad)     manual double buffer for halo row-bands
    sem:      DMA semaphores (2,)
    """
    n = pl.program_id(0)
    co = pl.program_id(1)
    h = pl.program_id(2)

    def halo_copy(h_idx, dst_slot):
        row0 = h_idx * (TH * sh)
        return pltpu.make_async_copy(
            x_hbm.at[n, pl.ds(row0, HALO), :, :],
            xbuf.at[dst_slot],
            sem.at[dst_slot],
        )

    if n_h_tiles == 1:
        # The whole image's halo band fits in one buffer: fetch it once per image (co == 0)
        # and reuse it across the Cout-tile axis (scratch persists across grid steps).
        slot = 0

        @pl.when(co == 0)
        def _():
            cp = halo_copy(0, 0)
            cp.start()
            cp.wait()
    else:
        # Manual double buffering over row tiles; the chain resets at h == 0 of every
        # (n, co) group so re-entry is always safe.  The input is re-read once per Cout
        # tile, which is cheap relative to streaming the weight tiles for wide layers.
        slot = h % 2

        @pl.when(h == 0)
        def _():
            halo_copy(0, 0).start()

        # Wait for the current tile's halo band.
        halo_copy(h, slot).wait()

        # Prefetch the next row-tile of the same (n, co) group; overlaps the compute below.
        @pl.when(h + 1 < n_h_tiles)
        def _():
            halo_copy(h + 1, 1 - slot).start()

    Cin_pad = xbuf.shape[-1]
    TCO = o_ref.shape[-1]
    TM = TH * W_out

    def tap_rows(kh):
        return pl.ds(kh, TH) if sh == 1 else pl.ds(kh, TH, stride=sh)

    def tap_cols(kw):
        return pl.ds(kw, W_out) if sw == 1 else pl.ds(kw, W_out, stride=sw)

    # Direct (im2col-free) conv: KH*KW dense MXU matmuls with K = Cin_pad (multiple of 128),
    # f32 accumulation (TM*TCO*4 bounded by the tile picker).
    acc = jnp.zeros((TM, TCO), jnp.float32)
    for kh in range(KH):               # static, unrolled
        for kw in range(KW):
            # TODO(synk): stride > 1 uses strided-ds reads (the documented strided-load
            # pattern); the in-script tests exercise the stride == 1 layers.
            patch = xbuf[slot, tap_rows(kh), tap_cols(kw), :]
            patch = patch.reshape(TM, Cin_pad)
            acc = acc + jnp.dot(patch, w_ref[kh, kw, :, :],
                                preferred_element_type=jnp.float32)

    # Epilogue: BN bias (scale already folded into weights) + LeakyReLU, lane-dense store.
    y = acc + bias_ref[...]
    if 0.0 <= negative_slope <= 1.0:
        y = jnp.maximum(y, y * negative_slope)
    else:
        y = jnp.where(y >= 0, y, y * negative_slope)
    o_ref[...] = y.reshape(1, TH, W_out, TCO).astype(o_ref.dtype)


def conv2d_batch_leaky(x_nchw, weight_oihw, gamma, beta, running_mean, running_var,
                       stride=1, negative_slope=0.1, eps=1e-5,
                       compute_dtype=jnp.bfloat16):
    """Matches Conv2dBatchLeaky.forward with BatchNorm in eval mode (running stats)."""
    if isinstance(stride, (list, tuple)):
        sh, sw = int(stride[0]), int(stride[1])
    else:
        sh = sw = int(stride)

    Cout, Cin, KH, KW = weight_oihw.shape
    ph, pw = KH // 2, KW // 2  # matches `int(kernel_size / 2)` in the module

    N, C, H, W = x_nchw.shape
    assert C == Cin
    H_out = (H + 2 * ph - KH) // sh + 1
    W_out = (W + 2 * pw - KW) // sw + 1
    Hp, Wp = H + 2 * ph, W + 2 * pw

    LANE = 128
    Cin_pad = _round_up(Cin, LANE)
    Cout_pad = _round_up(Cout, LANE)
    TCO = 256 if Cout_pad % 256 == 0 else 128   # Cout tile (lane-dense, multiple of 128)
    n_co = Cout_pad // TCO
    # TODO(synk): very deep layers with both huge Cin and huge spatial would also want a
    # Cin (reduction) tiling axis; in darknet53 channels grow as spatial shrinks so the
    # halo band always fits VMEM.

    # ---- BN folding (eval mode), scale folded straight into the conv weights ----
    scale = gamma.astype(jnp.float32) / jnp.sqrt(running_var.astype(jnp.float32) + eps)
    bias = beta.astype(jnp.float32) - running_mean.astype(jnp.float32) * scale
    w = weight_oihw.astype(jnp.float32) * scale[:, None, None, None]
    w = jnp.transpose(w, (2, 3, 1, 0))                                  # (KH, KW, Cin, Cout)
    w = jnp.pad(w, ((0, 0), (0, 0), (0, Cin_pad - Cin), (0, Cout_pad - Cout)))
    w = w.astype(compute_dtype)
    bias_pad = jnp.pad(bias, (0, Cout_pad - Cout)).reshape(1, Cout_pad)

    # ---- Input: NCHW -> NHWC, spatial zero-pad, channel zero-pad, cast ----
    # TODO(synk): when chaining these layers in a network, keep activations NHWC and
    # channel-padded end-to-end to avoid the per-call transpose/pad HBM round trips.
    x_nhwc = jnp.transpose(x_nchw, (0, 2, 3, 1))
    xp = jnp.pad(x_nhwc, ((0, 0), (ph, ph), (pw, pw), (0, Cin_pad - Cin)))
    xp = xp.astype(compute_dtype)

    in_itemsize = jnp.dtype(compute_dtype).itemsize
    out_itemsize = jnp.dtype(x_nchw.dtype).itemsize
    # Cap the f32 accumulator at ~128 KiB so spills stay modest.
    tm_target = max(128, min(256, (128 * 1024) // (TCO * 4)))
    TH = _pick_tile_h(H_out, W_out, Wp, Cin_pad, TCO, sh, KH, in_itemsize, tm_target)
    n_h_tiles = H_out // TH
    HALO = (TH - 1) * sh + KH

    # Explicit VMEM budget with headroom (v7x: 64 MiB physical, 32 MiB default scoped).
    est = (2 * HALO * Wp * Cin_pad * in_itemsize                 # halo double buffer
           + 2 * KH * KW * Cin_pad * TCO * in_itemsize           # weight tile (pipeline bufs)
           + 2 * TH * W_out * TCO * out_itemsize                 # output block double buffer
           + 2 * TH * W_out * TCO * 4                            # f32 accumulator + temps
           + 4 * TCO)
    vmem_limit = int(min(60 * 2**20, max(32 * 2**20, 2 * est)))

    kernel = functools.partial(
        _conv_bn_leaky_kernel,
        KH=KH, KW=KW, sh=sh, sw=sw, TH=TH, W_out=W_out,
        HALO=HALO, n_h_tiles=n_h_tiles, negative_slope=negative_slope)

    out_nhwc = pl.pallas_call(
        kernel,
        out_shape=jax.ShapeDtypeStruct((N, H_out, W_out, Cout_pad), x_nchw.dtype),
        grid_spec=pltpu.PrefetchScalarGridSpec(
            num_scalar_prefetch=0,
            grid=(N, n_co, n_h_tiles),
            in_specs=[
                pl.BlockSpec(memory_space=pl.ANY),                          # x stays in HBM
                pl.BlockSpec((KH, KW, Cin_pad, TCO), lambda n, co, h: (0, 0, 0, co)),
                pl.BlockSpec((1, TCO), lambda n, co, h: (0, co)),
            ],
            out_specs=pl.BlockSpec((1, TH, W_out, TCO), lambda n, co, h: (n, h, 0, co)),
            scratch_shapes=[
                pltpu.VMEM((2, HALO, Wp, Cin_pad), compute_dtype),          # halo double buffer
                pltpu.SemaphoreType.DMA((2,)),
            ]),
        compiler_params=pltpu.CompilerParams(
            dimension_semantics=("parallel", "arbitrary", "arbitrary"),
            vmem_limit_bytes=vmem_limit),
    )(xp, w, bias_pad)

    out = out_nhwc[..., :Cout]                     # drop Cout padding
    return jnp.transpose(out, (0, 3, 1, 2))        # back to NCHW


def _reference(x_nchw, weight_oihw, gamma, beta, running_mean, running_var,
               stride, negative_slope, eps=1e-5):
    """Pure-JAX f32 reference (lax conv + eval BN + leaky relu)."""
    if isinstance(stride, (list, tuple)):
        sh, sw = stride
    else:
        sh = sw = stride
    KH, KW = weight_oihw.shape[2], weight_oihw.shape[3]
    y = jax.lax.conv_general_dilated(
        x_nchw, weight_oihw,
        window_strides=(sh, sw),
        padding=((KH // 2, KH // 2), (KW // 2, KW // 2)),
        dimension_numbers=("NCHW", "OIHW", "NCHW"),
    )
    scale = gamma / jnp.sqrt(running_var + eps)
    bias = beta - running_mean * scale
    y = y * scale[None, :, None, None] + bias[None, :, None, None]
    return jnp.where(y >= 0, y, y * negative_slope)


def _run_case(name, N, Cin, H, W, Cout, K, stride, compute_dtype, atol, rtol, key):
    k_x, k_w, k_g, k_b, k_m, k_v = jax.random.split(key, 6)
    x = jax.random.normal(k_x, (N, Cin, H, W), dtype=jnp.float32)
    weight = 0.1 * jax.random.normal(k_w, (Cout, Cin, K, K), dtype=jnp.float32)
    gamma = 1.0 + 0.1 * jax.random.normal(k_g, (Cout,), dtype=jnp.float32)
    beta = 0.1 * jax.random.normal(k_b, (Cout,), dtype=jnp.float32)
    running_mean = 0.1 * jax.random.normal(k_m, (Cout,), dtype=jnp.float32)
    running_var = 1.0 + 0.1 * jax.random.uniform(k_v, (Cout,), dtype=jnp.float32)
    negative_slope = 0.1

    ref = _reference(x, weight, gamma, beta, running_mean, running_var,
                     stride, negative_slope)
    out = conv2d_batch_leaky(x, weight, gamma, beta, running_mean, running_var,
                             stride=stride, negative_slope=negative_slope,
                             compute_dtype=compute_dtype)
    out = jax.block_until_ready(out)
    assert out.shape == ref.shape, (name, out.shape, ref.shape)
    max_err = float(jnp.max(jnp.abs(out.astype(jnp.float32) - ref)))
    assert jnp.allclose(out.astype(jnp.float32), ref, atol=atol, rtol=rtol), (name, max_err)


if __name__ == "__main__":
    key = jax.random.PRNGKey(0)
    k1, k2, k3, k4 = jax.random.split(key, 4)

    # Conv2dBatchLeaky(4, 8, 3, 1): f32 compute path, tight check.
    _run_case("base_f32", 2, 4, 16, 16, 8, 3, 1, jnp.float32, 1e-4, 1e-4, k1)

    # Same layer on the default bf16 MXU path (f32 accumulation), looser tolerance.
    _run_case("base_bf16", 2, 4, 16, 16, 8, 3, 1, jnp.bfloat16, 2e-2, 2e-2, k2)

    # Wide layer: exercises the Cout-tile grid axis (Cout_pad=384 -> 3 tiles of 128).
    _run_case("cout_tiled_f32", 2, 8, 16, 16, 288, 3, 1, jnp.float32, 5e-4, 5e-4, k3)

    # 1x1 bottleneck conv (padding 0), as used inside darknet53 residual blocks.
    _run_case("k1_f32", 2, 4, 16, 16, 8, 1, 1, jnp.float32, 1e-4, 1e-4, k4)

    print("KERNEL_OK")
</pallas_src>

<mosaic_0001>
module attributes {stable_mosaic.version = 11 : i64} {
  func.func @_conv_bn_leaky_kernel(%arg0: i32, %arg1: i32, %arg2: i32, %arg3: memref<2x18x18x128xf32, #tpu.memory_space<any>>, %arg4: memref<3x3x128x128xf32, #tpu.memory_space<vmem>>, %arg5: memref<1x128xf32, #tpu.memory_space<vmem>>, %arg6: memref<1x16x16x128xf32, #tpu.memory_space<vmem>>, %arg7: memref<2x18x18x128xf32, #tpu.memory_space<vmem>>, %arg8: memref<2x!tpu.dma_semaphore, #tpu.memory_space<semaphore_mem>>) attributes {dimension_semantics = [#tpu.dimension_semantics<parallel>, #tpu.dimension_semantics<arbitrary>, #tpu.dimension_semantics<arbitrary>], iteration_bounds = array<i64: 2, 1, 1>, scalar_prefetch = 0 : i64, scratch_operands = 2 : i64, tpu.core_type = #tpu.core_type<tc>, window_params = [{}, {transform_indices = @transform_1, window_bounds = array<i64: 3, 3, 128, 128>}, {transform_indices = @transform_2, window_bounds = array<i64: 1, 128>}, {transform_indices = @transform_3, window_bounds = array<i64: 1, 16, 16, 128>}]} {
    %c0_i32 = arith.constant 0 : i32
    %0 = arith.cmpi eq, %arg1, %c0_i32 : i32
    %1 = arith.extui %0 : i1 to i32
    %c0_i32_0 = arith.constant 0 : i32
    %2 = arith.cmpi ne, %1, %c0_i32_0 : i32
    scf.if %2 {
      %c0_i32_86 = arith.constant 0 : i32
      %c0_i32_87 = arith.constant 0 : i32
      %c0_i32_88 = arith.constant 0 : i32
      %c0_i32_89 = arith.constant 0 : i32
      %c0_i32_90 = arith.constant 0 : i32
      %75 = tpu.memref_slice %arg3[%arg0, %c0_i32_88, %c0_i32_89, %c0_i32_90] : memref<2x18x18x128xf32, #tpu.memory_space<any>> -> memref<1x18x18x128xf32, #tpu.memory_space<any>>
      %76 = tpu.memref_squeeze %75 : memref<1x18x18x128xf32, #tpu.memory_space<any>> -> memref<18x18x128xf32, #tpu.memory_space<any>>
      %c0_i32_91 = arith.constant 0 : i32
      %c0_i32_92 = arith.constant 0 : i32
      %c0_i32_93 = arith.constant 0 : i32
      %77 = tpu.memref_slice %arg7[%c0_i32_86, %c0_i32_91, %c0_i32_92, %c0_i32_93] : memref<2x18x18x128xf32, #tpu.memory_space<vmem>> -> memref<1x18x18x128xf32, #tpu.memory_space<vmem>>
      %78 = tpu.memref_squeeze %77 : memref<1x18x18x128xf32, #tpu.memory_space<vmem>> -> memref<18x18x128xf32, #tpu.memory_space<vmem>>
      %79 = tpu.memref_slice %arg8[%c0_i32_87] : memref<2x!tpu.dma_semaphore, #tpu.memory_space<semaphore_mem>> -> memref<1x!tpu.dma_semaphore, #tpu.memory_space<semaphore_mem>>
      %80 = tpu.memref_squeeze %79 : memref<1x!tpu.dma_semaphore, #tpu.memory_space<semaphore_mem>> -> memref<!tpu.dma_semaphore, #tpu.memory_space<semaphore_mem>>
      tpu.enqueue_dma source(%76 : memref<18x18x128xf32, #tpu.memory_space<any>>) target(%78 : memref<18x18x128xf32, #tpu.memory_space<vmem>>) target_semaphore(%80 : memref<!tpu.dma_semaphore, #tpu.memory_space<semaphore_mem>>)
      %c0_i32_94 = arith.constant 0 : i32
      %c0_i32_95 = arith.constant 0 : i32
      %c0_i32_96 = arith.constant 0 : i32
      %c0_i32_97 = arith.constant 0 : i32
      %c0_i32_98 = arith.constant 0 : i32
      %81 = tpu.memref_slice %arg3[%arg0, %c0_i32_96, %c0_i32_97, %c0_i32_98] : memref<2x18x18x128xf32, #tpu.memory_space<any>> -> memref<1x18x18x128xf32, #tpu.memory_space<any>>
      %82 = tpu.memref_squeeze %81 : memref<1x18x18x128xf32, #tpu.memory_space<any>> -> memref<18x18x128xf32, #tpu.memory_space<any>>
      %c0_i32_99 = arith.constant 0 : i32
      %c0_i32_100 = arith.constant 0 : i32
      %c0_i32_101 = arith.constant 0 : i32
      %83 = tpu.memref_slice %arg7[%c0_i32_94, %c0_i32_99, %c0_i32_100, %c0_i32_101] : memref<2x18x18x128xf32, #tpu.memory_space<vmem>> -> memref<1x18x18x128xf32, #tpu.memory_space<vmem>>
      %84 = tpu.memref_squeeze %83 : memref<1x18x18x128xf32, #tpu.memory_space<vmem>> -> memref<18x18x128xf32, #tpu.memory_space<vmem>>
      %85 = tpu.memref_slice %arg8[%c0_i32_95] : memref<2x!tpu.dma_semaphore, #tpu.memory_space<semaphore_mem>> -> memref<1x!tpu.dma_semaphore, #tpu.memory_space<semaphore_mem>>
      %86 = tpu.memref_squeeze %85 : memref<1x!tpu.dma_semaphore, #tpu.memory_space<semaphore_mem>> -> memref<!tpu.dma_semaphore, #tpu.memory_space<semaphore_mem>>
      tpu.wait_dma2 semaphore(%86 : memref<!tpu.dma_semaphore, #tpu.memory_space<semaphore_mem>>) src(%82 : memref<18x18x128xf32, #tpu.memory_space<any>>) dst(%84 : memref<18x18x128xf32, #tpu.memory_space<vmem>>)
    } else {
    }
    %cst = arith.constant 0.000000e+00 : f32
    %3 = vector.broadcast %cst : f32 to vector<256x128xf32>
    %c0 = arith.constant 0 : index
    %c0_1 = arith.constant 0 : index
    %c0_2 = arith.constant 0 : index
    %c0_3 = arith.constant 0 : index
    %4 = vector.load %arg7[%c0, %c0_1, %c0_2, %c0_3] : memref<2x18x18x128xf32, #tpu.memory_space<vmem>>, vector<1x16x16x128xf32>
    %5 = vector.shape_cast %4 : vector<1x16x16x128xf32> to vector<16x16x128xf32>
    %6 = vector.shape_cast %5 : vector<16x16x128xf32> to vector<256x128xf32>
    %c0_4 = arith.constant 0 : index
    %c0_5 = arith.constant 0 : index
    %c0_6 = arith.constant 0 : index
    %c0_7 = arith.constant 0 : index
    %7 = vector.load %arg4[%c0_4, %c0_5, %c0_6, %c0_7] : memref<3x3x128x128xf32, #tpu.memory_space<vmem>>, vector<1x1x128x128xf32>
    %8 = vector.shape_cast %7 : vector<1x1x128x128xf32> to vector<128x128xf32>
    %cst_8 = arith.constant dense<0.000000e+00> : vector<256x128xf32>
    %9 = tpu.matmul %6, %8, %cst_8 {dimension_numbers = #tpu.dot_dimension_numbers<[1], [0], [0], [1], [0, 0, 1, 1], [], []>} : vector<256x128xf32>, vector<128x128xf32>, vector<256x128xf32> -> vector<256x128xf32>
    %10 = arith.addf %3, %9 : vector<256x128xf32>
    %c0_9 = arith.constant 0 : index
    %c0_10 = arith.constant 0 : index
    %c1 = arith.constant 1 : index
    %c0_11 = arith.constant 0 : index
    %11 = vector.load %arg7[%c0_9, %c0_10, %c1, %c0_11] : memref<2x18x18x128xf32, #tpu.memory_space<vmem>>, vector<1x16x16x128xf32>
    %12 = vector.shape_cast %11 : vector<1x16x16x128xf32> to vector<16x16x128xf32>
    %13 = vector.shape_cast %12 : vector<16x16x128xf32> to vector<256x128xf32>
    %c0_12 = arith.constant 0 : index
    %c1_13 = arith.constant 1 : index
    %c0_14 = arith.constant 0 : index
    %c0_15 = arith.constant 0 : index
    %14 = vector.load %arg4[%c0_12, %c1_13, %c0_14, %c0_15] : memref<3x3x128x128xf32, #tpu.memory_space<vmem>>, vector<1x1x128x128xf32>
    %15 = vector.shape_cast %14 : vector<1x1x128x128xf32> to vector<128x128xf32>
    %cst_16 = arith.constant dense<0.000000e+00> : vector<256x128xf32>
    %16 = tpu.matmul %13, %15, %cst_16 {dimension_numbers = #tpu.dot_dimension_numbers<[1], [0], [0], [1], [0, 0, 1, 1], [], []>} : vector<256x128xf32>, vector<128x128xf32>, vector<256x128xf32> -> vector<256x128xf32>
    %17 = arith.addf %10, %16 : vector<256x128xf32>
    %c0_17 = arith.constant 0 : index
    %c0_18 = arith.constant 0 : index
    %c2 = arith.constant 2 : index
    %c0_19 = arith.constant 0 : index
    %18 = vector.load %arg7[%c0_17, %c0_18, %c2, %c0_19] : memref<2x18x18x128xf32, #tpu.memory_space<vmem>>, vector<1x16x16x128xf32>
    %19 = vector.shape_cast %18 : vector<1x16x16x128xf32> to vector<16x16x128xf32>
    %20 = vector.shape_cast %19 : vector<16x16x128xf32> to vector<256x128xf32>
    %c0_20 = arith.constant 0 : index
    %c2_21 = arith.constant 2 : index
    %c0_22 = arith.constant 0 : index
    %c0_23 = arith.constant 0 : index
    %21 = vector.load %arg4[%c0_20, %c2_21, %c0_22, %c0_23] : memref<3x3x128x128xf32, #tpu.memory_space<vmem>>, vector<1x1x128x128xf32>
    %22 = vector.shape_cast %21 : vector<1x1x128x128xf32> to vector<128x128xf32>
    %cst_24 = arith.constant dense<0.000000e+00> : vector<256x128xf32>
    %23 = tpu.matmul %20, %22, %cst_24 {dimension_numbers = #tpu.dot_dimension_numbers<[1], [0], [0], [1], [0, 0, 1, 1], [], []>} : vector<256x128xf32>, vector<128x128xf32>, vector<256x128xf32> -> vector<256x128xf32>
    %24 = arith.addf %17, %23 : vector<256x128xf32>
    %c0_25 = arith.constant 0 : index
    %c1_26 = arith.constant 1 : index
    %c0_27 = arith.constant 0 : index
    %c0_28 = arith.constant 0 : index
    %25 = vector.load %arg7[%c0_25, %c1_26, %c0_27, %c0_28] : memref<2x18x18x128xf32, #tpu.memory_space<vmem>>, vector<1x16x16x128xf32>
    %26 = vector.shape_cast %25 : vector<1x16x16x128xf32> to vector<16x16x128xf32>
    %27 = vector.shape_cast %26 : vector<16x16x128xf32> to vector<256x128xf32>
    %c1_29 = arith.constant 1 : index
    %c0_30 = arith.constant 0 : index
    %c0_31 = arith.constant 0 : index
    %c0_32 = arith.constant 0 : index
    %28 = vector.load %arg4[%c1_29, %c0_30, %c0_31, %c0_32] : memref<3x3x128x128xf32, #tpu.memory_space<vmem>>, vector<1x1x128x128xf32>
    %29 = vector.shape_cast %28 : vector<1x1x128x128xf32> to vector<128x128xf32>
    %cst_33 = arith.constant dense<0.000000e+00> : vector<256x128xf32>
    %30 = tpu.matmul %27, %29, %cst_33 {dimension_numbers = #tpu.dot_dimension_numbers<[1], [0], [0], [1], [0, 0, 1, 1], [], []>} : vector<256x128xf32>, vector<128x128xf32>, vector<256x128xf32> -> vector<256x128xf32>
    %31 = arith.addf %24, %30 : vector<256x128xf32>
    %c0_34 = arith.constant 0 : index
    %c1_35 = arith.constant 1 : index
    %c1_36 = arith.constant 1 : index
    %c0_37 = arith.constant 0 : index
    %32 = vector.load %arg7[%c0_34, %c1_35, %c1_36, %c0_37] : memref<2x18x18x128xf32, #tpu.memory_space<vmem>>, vector<1x16x16x128xf32>
    %33 = vector.shape_cast %32 : vector<1x16x16x128xf32> to vector<16x16x128xf32>
    %34 = vector.shape_cast %33 : vector<16x16x128xf32> to vector<256x128xf32>
    %c1_38 = arith.constant 1 : index
    %c1_39 = arith.constant 1 : index
    %c0_40 = arith.constant 0 : index
    %c0_41 = arith.constant 0 : index
    %35 = vector.load %arg4[%c1_38, %c1_39, %c0_40, %c0_41] : memref<3x3x128x128xf32, #tpu.memory_space<vmem>>, vector<1x1x128x128xf32>
    %36 = vector.shape_cast %35 : vector<1x1x128x128xf32> to vector<128x128xf32>
    %cst_42 = arith.constant dense<0.000000e+00> : vector<256x128xf32>
    %37 = tpu.matmul %34, %36, %cst_42 {dimension_numbers = #tpu.dot_dimension_numbers<[1], [0], [0], [1], [0, 0, 1, 1], [], []>} : vector<256x128xf32>, vector<128x128xf32>, vector<256x128xf32> -> vector<256x128xf32>
    %38 = arith.addf %31, %37 : vector<256x128xf32>
    %c0_43 = arith.constant 0 : index
    %c1_44 = arith.constant 1 : index
    %c2_45 = arith.constant 2 : index
    %c0_46 = arith.constant 0 : index
    %39 = vector.load %arg7[%c0_43, %c1_44, %c2_45, %c0_46] : memref<2x18x18x128xf32, #tpu.memory_space<vmem>>, vector<1x16x16x128xf32>
    %40 = vector.shape_cast %39 : vector<1x16x16x128xf32> to vector<16x16x128xf32>
    %41 = vector.shape_cast %40 : vector<16x16x128xf32> to vector<256x128xf32>
    %c1_47 = arith.constant 1 : index
    %c2_48 = arith.constant 2 : index
    %c0_49 = arith.constant 0 : index
    %c0_50 = arith.constant 0 : index
    %42 = vector.load %arg4[%c1_47, %c2_48, %c0_49, %c0_50] : memref<3x3x128x128xf32, #tpu.memory_space<vmem>>, vector<1x1x128x128xf32>
    %43 = vector.shape_cast %42 : vector<1x1x128x128xf32> to vector<128x128xf32>
    %cst_51 = arith.constant dense<0.000000e+00> : vector<256x128xf32>
    %44 = tpu.matmul %41, %43, %cst_51 {dimension_numbers = #tpu.dot_dimension_numbers<[1], [0], [0], [1], [0, 0, 1, 1], [], []>} : vector<256x128xf32>, vector<128x128xf32>, vector<256x128xf32> -> vector<256x128xf32>
    %45 = arith.addf %38, %44 : vector<256x128xf32>
    %c0_52 = arith.constant 0 : index
    %c2_53 = arith.constant 2 : index
    %c0_54 = arith.constant 0 : index
    %c0_55 = arith.constant 0 : index
    %46 = vector.load %arg7[%c0_52, %c2_53, %c0_54, %c0_55] : memref<2x18x18x128xf32, #tpu.memory_space<vmem>>, vector<1x16x16x128xf32>
    %47 = vector.shape_cast %46 : vector<1x16x16x128xf32> to vector<16x16x128xf32>
    %48 = vector.shape_cast %47 : vector<16x16x128xf32> to vector<256x128xf32>
    %c2_56 = arith.constant 2 : index
    %c0_57 = arith.constant 0 : index
    %c0_58 = arith.constant 0 : index
    %c0_59 = arith.constant 0 : index
    %49 = vector.load %arg4[%c2_56, %c0_57, %c0_58, %c0_59] : memref<3x3x128x128xf32, #tpu.memory_space<vmem>>, vector<1x1x128x128xf32>
    %50 = vector.shape_cast %49 : vector<1x1x128x128xf32> to vector<128x128xf32>
    %cst_60 = arith.constant dense<0.000000e+00> : vector<256x128xf32>
    %51 = tpu.matmul %48, %50, %cst_60 {dimension_numbers = #tpu.dot_dimension_numbers<[1], [0], [0], [1], [0, 0, 1, 1], [], []>} : vector<256x128xf32>, vector<128x128xf32>, vector<256x128xf32> -> vector<256x128xf32>
    %52 = arith.addf %45, %51 : vector<256x128xf32>
    %c0_61 = arith.constant 0 : index
    %c2_62 = arith.constant 2 : index
    %c1_63 = arith.constant 1 : index
    %c0_64 = arith.constant 0 : index
    %53 = vector.load %arg7[%c0_61, %c2_62, %c1_63, %c0_64] : memref<2x18x18x128xf32, #tpu.memory_space<vmem>>, vector<1x16x16x128xf32>
    %54 = vector.shape_cast %53 : vector<1x16x16x128xf32> to vector<16x16x128xf32>
    %55 = vector.shape_cast %54 : vector<16x16x128xf32> to vector<256x128xf32>
    %c2_65 = arith.constant 2 : index
    %c1_66 = arith.constant 1 : index
    %c0_67 = arith.constant 0 : index
    %c0_68 = arith.constant 0 : index
    %56 = vector.load %arg4[%c2_65, %c1_66, %c0_67, %c0_68] : memref<3x3x128x128xf32, #tpu.memory_space<vmem>>, vector<1x1x128x128xf32>
    %57 = vector.shape_cast %56 : vector<1x1x128x128xf32> to vector<128x128xf32>
    %cst_69 = arith.constant dense<0.000000e+00> : vector<256x128xf32>
    %58 = tpu.matmul %55, %57, %cst_69 {dimension_numbers = #tpu.dot_dimension_numbers<[1], [0], [0], [1], [0, 0, 1, 1], [], []>} : vector<256x128xf32>, vector<128x128xf32>, vector<256x128xf32> -> vector<256x128xf32>
    %59 = arith.addf %52, %58 : vector<256x128xf32>
    %c0_70 = arith.constant 0 : index
    %c2_71 = arith.constant 2 : index
    %c2_72 = arith.constant 2 : index
    %c0_73 = arith.constant 0 : index
    %60 = vector.load %arg7[%c0_70, %c2_71, %c2_72, %c0_73] : memref<2x18x18x128xf32, #tpu.memory_space<vmem>>, vector<1x16x16x128xf32>
    %61 = vector.shape_cast %60 : vector<1x16x16x128xf32> to vector<16x16x128xf32>
    %62 = vector.shape_cast %61 : vector<16x16x128xf32> to vector<256x128xf32>
    %c2_74 = arith.constant 2 : index
    %c2_75 = arith.constant 2 : index
    %c0_76 = arith.constant 0 : index
    %c0_77 = arith.constant 0 : index
    %63 = vector.load %arg4[%c2_74, %c2_75, %c0_76, %c0_77] : memref<3x3x128x128xf32, #tpu.memory_space<vmem>>, vector<1x1x128x128xf32>
    %64 = vector.shape_cast %63 : vector<1x1x128x128xf32> to vector<128x128xf32>
    %cst_78 = arith.constant dense<0.000000e+00> : vector<256x128xf32>
    %65 = tpu.matmul %62, %64, %cst_78 {dimension_numbers = #tpu.dot_dimension_numbers<[1], [0], [0], [1], [0, 0, 1, 1], [], []>} : vector<256x128xf32>, vector<128x128xf32>, vector<256x128xf32> -> vector<256x128xf32>
    %66 = arith.addf %59, %65 : vector<256x128xf32>
    %c0_79 = arith.constant 0 : index
    %c0_80 = arith.constant 0 : index
    %67 = vector.load %arg5[%c0_79, %c0_80] : memref<1x128xf32, #tpu.memory_space<vmem>>, vector<1x128xf32>
    %68 = vector.broadcast %67 : vector<1x128xf32> to vector<256x128xf32>
    %69 = arith.addf %66, %68 : vector<256x128xf32>
    %cst_81 = arith.constant 1.000000e-01 : f32
    %70 = vector.broadcast %cst_81 : f32 to vector<256x128xf32>
    %71 = arith.mulf %69, %70 : vector<256x128xf32>
    %72 = arith.maximumf %69, %71 : vector<256x128xf32>
    %73 = vector.shape_cast %72 : vector<256x128xf32> to vector<1x16x16x128xf32>
    %c0_82 = arith.constant 0 : index
    %c0_83 = arith.constant 0 : index
    %c0_84 = arith.constant 0 : index
    %c0_85 = arith.constant 0 : index
    %74 = vector.load %arg6[%c0_82, %c0_83, %c0_84, %c0_85] : memref<1x16x16x128xf32, #tpu.memory_space<vmem>>, vector<1x16x16x128xf32>
    tpu.vector_store %arg6[%c0_82, %c0_83, %c0_84, %c0_85], %73 {strides = array<i32>} : memref<1x16x16x128xf32, #tpu.memory_space<vmem>>, vector<1x16x16x128xf32>,
    return
  }
  func.func @transform_1(%arg0: i32, %arg1: i32, %arg2: i32) -> (i32, i32, i32, i32) {
    %c0_i32 = arith.constant 0 : i32
    %c0_i32_0 = arith.constant 0 : i32
    %c0_i32_1 = arith.constant 0 : i32
    %c0_i32_2 = arith.constant 0 : i32
    return %c0_i32, %c0_i32_0, %c0_i32_1, %arg1 : i32, i32, i32, i32
  }
  func.func @transform_2(%arg0: i32, %arg1: i32, %arg2: i32) -> (i32, i32) {
    %c0_i32 = arith.constant 0 : i32
    %c0_i32_0 = arith.constant 0 : i32
    return %c0_i32, %arg1 : i32, i32
  }
  func.func @transform_3(%arg0: i32, %arg1: i32, %arg2: i32) -> (i32, i32, i32, i32) {
    %c0_i32 = arith.constant 0 : i32
    %c0_i32_0 = arith.constant 0 : i32
    return %arg0, %arg2, %c0_i32, %arg1 : i32, i32, i32, i32
  }
}

</mosaic_0001>

<llo_original>
// kernel: tpu_custom_call.1
$region0: #{tpu_custom_call.1}
  #allocation0 [shape = 'u32[]', space=smem, size = 0x4, offset = 0x4, fixed_abs, tag = 'smem constant byte address 0x4 - core index']
  #allocation1 [shape = 'u32[144,128]{1,0:T(1,128)}', space=vmem, size = 0x12000, scoped, tag = 'internal scratch']
  #allocation2 [shape = 'f32[2,18,18,128]{3,2,1,0:T(8,128)}', space=vmem, size = 0x6c000, scoped, tag = 'scratch operand']
  #allocation3 [shape = 's32[2]{0}', space=sflag, size = 0x8, scoped, tag = 'scratch operand']
  #allocation6 [shape = 's32[]', space=sflag, size = 0x4, offset = 0, fixed_abs, tag = 'sflag constant byte address 0x0 - dummy sync flag']
  %s0 = inlined_call_operand.vmem [shape: f32[2,18,18,128], index: 0, kind: input, shape index: {}]
  %s1 = inlined_call_operand.vmem [shape: f32[3,3,128,128], index: 1, kind: input, shape index: {}]
  %s2 = inlined_call_operand.vmem [shape: f32[1,128], index: 2, kind: input, shape index: {}]
  %s3 = inlined_call_operand.hbm [shape: f32[2,16,16,128], index: 3, kind: output, shape index: {}]
  %s4 = sld [smem:[#allocation0]]
  $region82: #{tpu_custom_call.1} parent=0
    _
  %s6 = ssub.s32 1, %s4
  %s7 = scalar_select 0, %s6, %s4
  $region1: #{tpu_custom_call.1} parent=0
    #allocation4 [shape = 'u8[262144]{0}', space=vmem, size = 0x40000, scoped, tag = 'output window, operand 0']
    #allocation5 [shape = 's32[2]{0}', space=sflag, size = 0x8, scoped, tag = 'scoped memory for tpu_custom_call.1']
    %8 = vsyncpa [#allocation5], 0
    %s9 = scalar_lea.sflag [#allocation5], 1
    %10 = vsyncpa %s9, 0
    loop: start=0, step=1, limit=4
    $region2: #{tpu_custom_call.1} parent=1 // loop_pre_header
      _
    $region3: #{tpu_custom_call.1} parent=1 // loop_header
      %s12 = sphi 0, %s16
      %p13 = scmp.ge.s32.totalorder %s12, 4
      %s19 = sphi 0, %s38
      %s20 = sphi 0, %s34
      %s21 = sphi 0, %s30
      %s22 = sphi 0, %s19
      %s23 = sphi 0, %s20
      %s24 = sphi 0, %s21
      %s25 = sphi 0, %s22
      %s26 = sphi 0, %s23
      %s27 = sphi 0, %s24
      %s41 = sphi 0, %s43
      %s44 = sphi 0, %s41
      %s45 = sphi 0, %s44
      %s61 = sphi 0, %s45
      %s67 = sphi 0, %s69
      %s70 = sphi 0, %s67
      %s71 = sphi 0, %s70
      %s87 = sphi 0, %s71
      %s97 = sphi 0, %s99
      %s100 = sphi 0, %s97
      %s101 = sphi 0, %s100
      %s117 = sphi 0, %s101
    $region4: #{tpu_custom_call.1} parent=1 // loop_header_branch
      %15 = sbr.rel (%p13) target = $region8
    $region5: #{tpu_custom_call.1} parent=1 // loop_body
      %s17 = ssub.s32 %s12, 1
      %s18 = ssub.s32 %s12, 2
      %s28 = sadd.s32 1, %s21
      %p29 = scmp.ge.s32.totalorder %s28, 1
      %s30 = scalar_select %p29, 0, %s28
      %s31 = sadd.s32 1, %s20
      %s32 = scalar_select %p29, %s31, %s20
      %p33 = scmp.ge.s32.totalorder %s32, 1
      %s34 = scalar_select %p33, 0, %s32
      %s35 = sadd.s32 1, %s19
      %s36 = scalar_select %p33, %s35, %s19
      %p37 = scmp.ge.s32.totalorder %s36, 2
      %s38 = scalar_select %p37, 0, %s36
      %s39 = ssub.s32 %s20, %s34
      %p40 = scmp.eq.s32.totalorder %s39, 0
      %s42 = sadd.s32 %s41, 1
      %s43 = scalar_select %p40, %s41, %s42
      %p46 = pneg %p40
      %p47 = scmp.eq.s32.totalorder %s12, 1
      %p48 = por %p46, %p47
      %p49 = scmp.ne.s32.totalorder %s41, %s44
      %p50 = scmp.eq.s32.totalorder %s12, 0
      %p51 = por %p49, %p50
      %p52 = scmp.ne.s32.totalorder %s41, %s44
      %p53 = scmp.eq.s32.totalorder %s17, 1
      %p54 = por %p52, %p53
      %p55 = scmp.ne.s32.totalorder %s44, %s45
      %p56 = scmp.eq.s32.totalorder %s17, 0
      %p57 = por %p55, %p56
      %p58 = scmp.ne.s32.totalorder %s44, %s45
      %p59 = scmp.eq.s32.totalorder %s18, 1
      %p60 = por %p58, %p59
      %p62 = scmp.ne.s32.totalorder %s45, %s61
      %p63 = scmp.eq.s32.totalorder %s18, 0
      %p64 = por %p62, %p63
      %s65 = ssub.s32 %s20, %s34
      %p66 = scmp.eq.s32.totalorder %s65, 0
      %s68 = sadd.s32 %s67, 1
      %s69 = scalar_select %p66, %s67, %s68
      %p72 = pneg %p66
      %p73 = scmp.eq.s32.totalorder %s12, 1
      %p74 = por %p72, %p73
      %p75 = scmp.ne.s32.totalorder %s67, %s70
      %p76 = scmp.eq.s32.totalorder %s12, 0
      %p77 = por %p75, %p76
      %p78 = scmp.ne.s32.totalorder %s67, %s70
      %p79 = scmp.eq.s32.totalorder %s17, 1
      %p80 = por %p78, %p79
      %p81 = scmp.ne.s32.totalorder %s70, %s71
      %p82 = scmp.eq.s32.totalorder %s17, 0
      %p83 = por %p81, %p82
      %p84 = scmp.ne.s32.totalorder %s70, %s71
      %p85 = scmp.eq.s32.totalorder %s18, 1
      %p86 = por %p84, %p85
      %p88 = scmp.ne.s32.totalorder %s71, %s87
      %p89 = scmp.eq.s32.totalorder %s18, 0
      %p90 = por %p88, %p89
      %s91 = ssub.s32 %s19, %s38
      %s92 = ssub.s32 %s21, %s30
      %s93 = sor.u32 %s91, %s92
      %s94 = ssub.s32 %s20, %s34
      %s95 = sor.u32 %s93, %s94
      %p96 = scmp.eq.s32.totalorder %s95, 0
      %s98 = sadd.s32 %s97, 1
      %s99 = scalar_select %p96, %s97, %s98
      %p102 = pneg %p96
      %p103 = scmp.eq.s32.totalorder %s12, 1
      %p104 = por %p102, %p103
      %p105 = scmp.ne.s32.totalorder %s97, %s100
      %p106 = scmp.eq.s32.totalorder %s12, 0
      %p107 = por %p105, %p106
      %p108 = scmp.ne.s32.totalorder %s97, %s100
      %p109 = scmp.eq.s32.totalorder %s17, 1
      %p110 = por %p108, %p109
      %p111 = scmp.ne.s32.totalorder %s100, %s101
      %p112 = scmp.eq.s32.totalorder %s17, 0
      %p113 = por %p111, %p112
      %p114 = scmp.ne.s32.totalorder %s100, %s101
      %p115 = scmp.eq.s32.totalorder %s18, 1
      %p116 = por %p114, %p115
      %p118 = scmp.ne.s32.totalorder %s101, %s117
      %p119 = scmp.eq.s32.totalorder %s18, 0
      %p120 = por %p118, %p119
      %p121 = scmp.le.s32.totalorder 1, %s12
      %p122 = scmp.lt.s32.totalorder %s12, 3
      %p123 = pnand %p121, %p122
      %p124 = pneg %p123
      // Predicated region
      $region9: #{tpu_custom_call.1} parent=5 // pred_check
        _
      $region10: #{tpu_custom_call.1} parent=5 // pred_check_branch
        %126 = sbr.rel (%p123) target = $region12
      $region11: #{tpu_custom_call.1} parent=5 // pred_region
        %s127 = ssub.s32 %s12, 1
        // Predicated region
        $region13: #{tpu_custom_call.1} parent=11 // pred_check
          %p128 = pneg %p57
        $region14: #{tpu_custom_call.1} parent=11 // pred_check_branch
          %130 = sbr.rel (%p128) target = $region16
        $region15: #{tpu_custom_call.1} parent=11 // pred_region
          %p131 = scmp.lt.s32.totalorder %s23, 0
          %s132 = scalar_select %p131, %s23, 0
          %s133 = smul.addr %s132, 8
          %s134 = scalar_lea.vmem %s1, %s133
        $region16: #{tpu_custom_call.1} parent=11 // pred_fallthru
          _
        // Predicated region
        $region17: #{tpu_custom_call.1} parent=11 // pred_check
          %p135 = pneg %p83
        $region18: #{tpu_custom_call.1} parent=11 // pred_check_branch
          %137 = sbr.rel (%p135) target = $region20
        $region19: #{tpu_custom_call.1} parent=11 // pred_region
          %p138 = scmp.lt.s32.totalorder %s23, 0
          %s139 = scalar_select %p138, %s23, 0
          %s140 = scalar_lea.vmem %s2, %s139
        $region20: #{tpu_custom_call.1} parent=11 // pred_fallthru
          _
      $region12: #{tpu_custom_call.1} parent=5 // pred_fallthru
        _
      %p141 = scmp.lt.s32.totalorder %s12, 2
      // Predicated region
      $region21: #{tpu_custom_call.1} parent=5 // pred_check
        %p142 = pneg %p141
      $region22: #{tpu_custom_call.1} parent=5 // pred_check_branch
        %144 = sbr.rel (%p142) target = $region24
      $region23: #{tpu_custom_call.1} parent=5 // pred_region
        _
      $region24: #{tpu_custom_call.1} parent=5 // pred_fallthru
        _
      %p145 = scmp.le.s32.totalorder 1, %s12
      %p146 = scmp.lt.s32.totalorder %s12, 3
      %p147 = pnand %p145, %p146
      %p148 = pneg %p147
      // Predicated region
      $region25: #{tpu_custom_call.1} parent=5 // pred_check
        _
      $region26: #{tpu_custom_call.1} parent=5 // pred_check_branch
        %150 = sbr.rel (%p147) target = $region28
      $region27: #{tpu_custom_call.1} parent=5 // pred_region
        %s151 = ssub.s32 %s12, 1
        %p152 = scmp.lt.s32.totalorder %s23, 0
        %s153 = scalar_select %p152, %s23, 0
        %s154 = smul.addr %s153, 8
        %s155 = scalar_lea.vmem %s1, %s154
        %p156 = pneg %p57
        %p157 = pneg %p54
        %p158 = scmp.lt.s32.totalorder %s23, 0
        %s159 = scalar_select %p158, %s23, 0
        %s160 = scalar_lea.vmem %s2, %s159
        %p161 = pneg %p83
        %p162 = pneg %p80
        %p163 = pneg %p113
        %p164 = pneg %p110
        %s165 = sand.u32 %s100, 1
        %s166 = scalar_lea.sflag [#allocation5], %s165
        %s167 = sand.u32 %s100, 1
        %s168 = smul.addr %s167, 256
        %s169 = scalar_lea.vmem [#allocation4], %s168
        %p170 = scmp.lt.s32.totalorder %s23, 0
        %s171 = scalar_select %p170, %s23, 0
        %s172 = smul.addr %s171, 8
        %s173 = scalar_lea.vmem %s1, %s172
        %p174 = scmp.lt.s32.totalorder %s23, 0
        %s175 = scalar_select %p174, %s23, 0
        %s176 = scalar_lea.vmem %s2, %s175
        %s177 = smul.u32 16, %s24
        %p178 = scmp.eq.s32.totalorder %s23, 0
        // Predicated region
        $region29: #{tpu_custom_call.1} parent=27 // pred_check
          %p179 = pneg %p178
        $region30: #{tpu_custom_call.1} parent=27 // pred_check_branch
          %181 = sbr.rel (%p179) target = $region32
        $region31: #{tpu_custom_call.1} parent=27 // pred_region
          %s182 = smul.u32 %s22, 432
          %s183 = scalar_lea.vmem %s0, %s182
          %p185 = scmp.lt.u32.totalorder 18, 8
          %p186 = pneg %p185
          // Predicated region
          $region33: #{tpu_custom_call.1} parent=31 // pred_check
            _
          $region34: #{tpu_custom_call.1} parent=31 // pred_check_branch
            %188 = sbr.rel (%p185) target = $region36
          $region35: #{tpu_custom_call.1} parent=31 // pred_region
            %s237 = sand.u32 18, 7
            %p238 = scmp.eq.s32.totalorder %s237, 0
            %p239 = pneg %p238
            // Predicated region
            $region48: #{tpu_custom_call.1} parent=35 // pred_check
              _
            $region49: #{tpu_custom_call.1} parent=35 // pred_check_branch
              %241 = sbr.rel (%p238) target = $region51
            $region50: #{tpu_custom_call.1} parent=35 // pred_region
              %s242 = sand.u32 18, 7
              %s243 = ssub.s32 18, %s242
              %s244 = scalar_lea.vmem %s183, %s243
              %s245 = ssub.s32 18, %s242
              %s246 = scalar_lea.vmem [#allocation2], %s245
              loop: start=0, step=1, limit=1
              $region52: #{tpu_custom_call.1} parent=50 // loop_pre_header
                _
              $region53: #{tpu_custom_call.1} parent=50 // loop_header
                %s248 = sphi 0, %s252
                %p249 = scmp.ge.s32.totalorder %s248, 1
                %s253 = sphi %s183, %s183
                %s254 = sphi [#allocation2], [#allocation2]
              $region54: #{tpu_custom_call.1} parent=50 // loop_header_branch
                %251 = sbr.rel (%p249) target = $region58
              $region55: #{tpu_custom_call.1} parent=50 // loop_body
                %v255 = vld [vmem:[%s253] sm:$0xff]
                %256 = vst [vmem:[%s254] sm:$0xff] %v255
                %v257 = vld [vmem:[%s253 + $0x8] sm:$0xff]
                %258 = vst [vmem:[%s254 + $0x8] sm:$0xff] %v257
                %v259 = vld [vmem:[%s253 + $0x18] sm:$0xff]
                %260 = vst [vmem:[%s254 + $0x18] sm:$0xff] %v259
                %v261 = vld [vmem:[%s253 + $0x20] sm:$0xff]
                %262 = vst [vmem:[%s254 + $0x20] sm:$0xff] %v261
                %v263 = vld [vmem:[%s253 + $0x30] sm:$0xff]
                %264 = vst [vmem:[%s254 + $0x30] sm:$0xff] %v263
                %v265 = vld [vmem:[%s253 + $0x38] sm:$0xff]
                %266 = vst [vmem:[%s254 + $0x38] sm:$0xff] %v265
                %v267 = vld [vmem:[%s253 + $0x48] sm:$0xff]
                %268 = vst [vmem:[%s254 + $0x48] sm:$0xff] %v267
                %v269 = vld [vmem:[%s253 + $0x50] sm:$0xff]
                %270 = vst [vmem:[%s254 + $0x50] sm:$0xff] %v269
                %v271 = vld [vmem:[%s253 + $0x60] sm:$0xff]
                %272 = vst [vmem:[%s254 + $0x60] sm:$0xff] %v271
                %v273 = vld [vmem:[%s253 + $0x68] sm:$0xff]
                %274 = vst [vmem:[%s254 + $0x68] sm:$0xff] %v273
                %v275 = vld [vmem:[%s253 + $0x78] sm:$0xff]
                %276 = vst [vmem:[%s254 + $0x78] sm:$0xff] %v275
                %v277 = vld [vmem:[%s253 + $0x80] sm:$0xff]
                %278 = vst [vmem:[%s254 + $0x80] sm:$0xff] %v277
                %v279 = vld [vmem:[%s253 + $0x90] sm:$0xff]
                %280 = vst [vmem:[%s254 + $0x90] sm:$0xff] %v279
                %v281 = vld [vmem:[%s253 + $0x98] sm:$0xff]
                %282 = vst [vmem:[%s254 + $0x98] sm:$0xff] %v281
                %v283 = vld [vmem:[%s253 + $0xa8] sm:$0xff]
                %284 = vst [vmem:[%s254 + $0xa8] sm:$0xff] %v283
                %v285 = vld [vmem:[%s253 + $0xb0] sm:$0xff]
                %286 = vst [vmem:[%s254 + $0xb0] sm:$0xff] %v285
                %v287 = vld [vmem:[%s253 + $0xc0] sm:$0xff]
                %288 = vst [vmem:[%s254 + $0xc0] sm:$0xff] %v287
                %v289 = vld [vmem:[%s253 + $0xc8] sm:$0xff]
                %290 = vst [vmem:[%s254 + $0xc8] sm:$0xff] %v289
                %v291 = vld [vmem:[%s253 + $0xd8] sm:$0xff]
                %292 = vst [vmem:[%s254 + $0xd8] sm:$0xff] %v291
                %v293 = vld [vmem:[%s253 + $0xe0] sm:$0xff]
                %294 = vst [vmem:[%s254 + $0xe0] sm:$0xff] %v293
                %v295 = vld [vmem:[%s253 + $0xf0] sm:$0xff]
                %296 = vst [vmem:[%s254 + $0xf0] sm:$0xff] %v295
                %v297 = vld [vmem:[%s253 + $0xf8] sm:$0xff]
                %298 = vst [vmem:[%s254 + $0xf8] sm:$0xff] %v297
                %v299 = vld [vmem:[%s253 + $0x108] sm:$0xff]
                %300 = vst [vmem:[%s254 + $0x108] sm:$0xff] %v299
                %v301 = vld [vmem:[%s253 + $0x110] sm:$0xff]
                %302 = vst [vmem:[%s254 + $0x110] sm:$0xff] %v301
                %v303 = vld [vmem:[%s253 + $0x120] sm:$0xff]
                %304 = vst [vmem:[%s254 + $0x120] sm:$0xff] %v303
                %v305 = vld [vmem:[%s253 + $0x128] sm:$0xff]
                %306 = vst [vmem:[%s254 + $0x128] sm:$0xff] %v305
                %v307 = vld [vmem:[%s253 + $0x138] sm:$0xff]
                %308 = vst [vmem:[%s254 + $0x138] sm:$0xff] %v307
                %v309 = vld [vmem:[%s253 + $0x140] sm:$0xff]
                %310 = vst [vmem:[%s254 + $0x140] sm:$0xff] %v309
                %v311 = vld [vmem:[%s253 + $0x150] sm:$0xff]
                %312 = vst [vmem:[%s254 + $0x150] sm:$0xff] %v311
                %v313 = vld [vmem:[%s253 + $0x158] sm:$0xff]
                %314 = vst [vmem:[%s254 + $0x158] sm:$0xff] %v313
                %v315 = vld [vmem:[%s253 + $0x168] sm:$0xff]
                %316 = vst [vmem:[%s254 + $0x168] sm:$0xff] %v315
                %v317 = vld [vmem:[%s253 + $0x170] sm:$0xff]
                %318 = vst [vmem:[%s254 + $0x170] sm:$0xff] %v317
                %v319 = vld [vmem:[%s253 + $0x180] sm:$0xff]
                %320 = vst [vmem:[%s254 + $0x180] sm:$0xff] %v319
                %v321 = vld [vmem:[%s253 + $0x188] sm:$0xff]
                %322 = vst [vmem:[%s254 + $0x188] sm:$0xff] %v321
                %v323 = vld [vmem:[%s253 + $0x198] sm:$0xff]
                %324 = vst [vmem:[%s254 + $0x198] sm:$0xff] %v323
                %v325 = vld [vmem:[%s253 + $0x1a0] sm:$0xff]
                %326 = vst [vmem:[%s254 + $0x1a0] sm:$0xff] %v325
              $region56: #{tpu_custom_call.1} parent=50 // loop_footer
                %s252 = sadd.s32 1, %s248
              $region57: #{tpu_custom_call.1} parent=50 // loop_footer_branch
                %247 = sbr.rel target = $region53
              $region58: #{tpu_custom_call.1} parent=50 // loop_exit
                _
              %s327 = sshllo.u32 0, %s242
              loop: start=0, step=1, limit=1
              $region59: #{tpu_custom_call.1} parent=50 // loop_pre_header
                _
              $region60: #{tpu_custom_call.1} parent=50 // loop_header
                %s329 = sphi 0, %s333
                %p330 = scmp.ge.s32.totalorder %s329, 1
                %s334 = sphi %s244, %s244
                %s335 = sphi %s246, %s246
              $region61: #{tpu_custom_call.1} parent=50 // loop_header_branch
                %332 = sbr.rel (%p330) target = $region65
              $region62: #{tpu_custom_call.1} parent=50 // loop_body
                %v336 = vld [vmem:[%s334] sm:%s327]
                %337 = vst [vmem:[%s335] sm:%s327] %v336
                %v338 = vld [vmem:[%s334 + $0x18] sm:%s327]
                %339 = vst [vmem:[%s335 + $0x18] sm:%s327] %v338
                %v340 = vld [vmem:[%s334 + $0x30] sm:%s327]
                %341 = vst [vmem:[%s335 + $0x30] sm:%s327] %v340
                %v342 = vld [vmem:[%s334 + $0x48] sm:%s327]
                %343 = vst [vmem:[%s335 + $0x48] sm:%s327] %v342
                %v344 = vld [vmem:[%s334 + $0x60] sm:%s327]
                %345 = vst [vmem:[%s335 + $0x60] sm:%s327] %v344
                %v346 = vld [vmem:[%s334 + $0x78] sm:%s327]
                %347 = vst [vmem:[%s335 + $0x78] sm:%s327] %v346
                %v348 = vld [vmem:[%s334 + $0x90] sm:%s327]
                %349 = vst [vmem:[%s335 + $0x90] sm:%s327] %v348
                %v350 = vld [vmem:[%s334 + $0xa8] sm:%s327]
                %351 = vst [vmem:[%s335 + $0xa8] sm:%s327] %v350
                %v352 = vld [vmem:[%s334 + $0xc0] sm:%s327]
                %353 = vst [vmem:[%s335 + $0xc0] sm:%s327] %v352
                %v354 = vld [vmem:[%s334 + $0xd8] sm:%s327]
                %355 = vst [vmem:[%s335 + $0xd8] sm:%s327] %v354
                %v356 = vld [vmem:[%s334 + $0xf0] sm:%s327]
                %357 = vst [vmem:[%s335 + $0xf0] sm:%s327] %v356
                %v358 = vld [vmem:[%s334 + $0x108] sm:%s327]
                %359 = vst [vmem:[%s335 + $0x108] sm:%s327] %v358
                %v360 = vld [vmem:[%s334 + $0x120] sm:%s327]
                %361 = vst [vmem:[%s335 + $0x120] sm:%s327] %v360
                %v362 = vld [vmem:[%s334 + $0x138] sm:%s327]
                %363 = vst [vmem:[%s335 + $0x138] sm:%s327] %v362
                %v364 = vld [vmem:[%s334 + $0x150] sm:%s327]
                %365 = vst [vmem:[%s335 + $0x150] sm:%s327] %v364
                %v366 = vld [vmem:[%s334 + $0x168] sm:%s327]
                %367 = vst [vmem:[%s335 + $0x168] sm:%s327] %v366
                %v368 = vld [vmem:[%s334 + $0x180] sm:%s327]
                %369 = vst [vmem:[%s335 + $0x180] sm:%s327] %v368
                %v370 = vld [vmem:[%s334 + $0x198] sm:%s327]
                %371 = vst [vmem:[%s335 + $0x198] sm:%s327] %v370
              $region63: #{tpu_custom_call.1} parent=50 // loop_footer
                %s333 = sadd.s32 1, %s329
              $region64: #{tpu_custom_call.1} parent=50 // loop_footer_branch
                %328 = sbr.rel target = $region60
              $region65: #{tpu_custom_call.1} parent=50 // loop_exit
                _
            $region51: #{tpu_custom_call.1} parent=35 // pred_fallthru
              _
          $region36: #{tpu_custom_call.1} parent=31 // pred_fallthru
            _
          // Predicated region
          $region37: #{tpu_custom_call.1} parent=31 // pred_check
            %p189 = pneg %p185
          $region38: #{tpu_custom_call.1} parent=31 // pred_check_branch
            %191 = sbr.rel (%p189) target = $region40
          $region39: #{tpu_custom_call.1} parent=31 // pred_region
            %s192 = sshllo.u32 0, 18
            loop: start=0, step=1, limit=1
            $region41: #{tpu_custom_call.1} parent=39 // loop_pre_header
              _
            $region42: #{tpu_custom_call.1} parent=39 // loop_header
              %s194 = sphi 0, %s198
              %p195 = scmp.ge.s32.totalorder %s194, 1
              %s199 = sphi %s183, %s183
              %s200 = sphi [#allocation2], [#allocation2]
            $region43: #{tpu_custom_call.1} parent=39 // loop_header_branch
              %197 = sbr.rel (%p195) target = $region47
            $region44: #{tpu_custom_call.1} parent=39 // loop_body
              %v201 = vld [vmem:[%s199] sm:%s192]
              %202 = vst [vmem:[%s200] sm:%s192] %v201
              %v203 = vld [vmem:[%s199 + $0x18] sm:%s192]
              %204 = vst [vmem:[%s200 + $0x18] sm:%s192] %v203
              %v205 = vld [vmem:[%s199 + $0x30] sm:%s192]
              %206 = vst [vmem:[%s200 + $0x30] sm:%s192] %v205
              %v207 = vld [vmem:[%s199 + $0x48] sm:%s192]
              %208 = vst [vmem:[%s200 + $0x48] sm:%s192] %v207
              %v209 = vld [vmem:[%s199 + $0x60] sm:%s192]
              %210 = vst [vmem:[%s200 + $0x60] sm:%s192] %v209
              %v211 = vld [vmem:[%s199 + $0x78] sm:%s192]
              %212 = vst [vmem:[%s200 + $0x78] sm:%s192] %v211
              %v213 = vld [vmem:[%s199 + $0x90] sm:%s192]
              %214 = vst [vmem:[%s200 + $0x90] sm:%s192] %v213
              %v215 = vld [vmem:[%s199 + $0xa8] sm:%s192]
              %216 = vst [vmem:[%s200 + $0xa8] sm:%s192] %v215
              %v217 = vld [vmem:[%s199 + $0xc0] sm:%s192]
              %218 = vst [vmem:[%s200 + $0xc0] sm:%s192] %v217
              %v219 = vld [vmem:[%s199 + $0xd8] sm:%s192]
              %220 = vst [vmem:[%s200 + $0xd8] sm:%s192] %v219
              %v221 = vld [vmem:[%s199 + $0xf0] sm:%s192]
              %222 = vst [vmem:[%s200 + $0xf0] sm:%s192] %v221
              %v223 = vld [vmem:[%s199 + $0x108] sm:%s192]
              %224 = vst [vmem:[%s200 + $0x108] sm:%s192] %v223
              %v225 = vld [vmem:[%s199 + $0x120] sm:%s192]
              %226 = vst [vmem:[%s200 + $0x120] sm:%s192] %v225
              %v227 = vld [vmem:[%s199 + $0x138] sm:%s192]
              %228 = vst [vmem:[%s200 + $0x138] sm:%s192] %v227
              %v229 = vld [vmem:[%s199 + $0x150] sm:%s192]
              %230 = vst [vmem:[%s200 + $0x150] sm:%s192] %v229
              %v231 = vld [vmem:[%s199 + $0x168] sm:%s192]
              %232 = vst [vmem:[%s200 + $0x168] sm:%s192] %v231
              %v233 = vld [vmem:[%s199 + $0x180] sm:%s192]
              %234 = vst [vmem:[%s200 + $0x180] sm:%s192] %v233
              %v235 = vld [vmem:[%s199 + $0x198] sm:%s192]
              %236 = vst [vmem:[%s200 + $0x198] sm:%s192] %v235
            $region45: #{tpu_custom_call.1} parent=39 // loop_footer
              %s198 = sadd.s32 1, %s194
            $region46: #{tpu_custom_call.1} parent=39 // loop_footer_branch
              %193 = sbr.rel target = $region42
            $region47: #{tpu_custom_call.1} parent=39 // loop_exit
              _
          $region40: #{tpu_custom_call.1} parent=31 // pred_fallthru
            _
          // Predicated region
          $region66: #{tpu_custom_call.1} parent=31 // pred_check
            _
          $region67: #{tpu_custom_call.1} parent=31 // pred_check_branch
            %374 = sbr.rel (0) target = $region69
          $region68: #{tpu_custom_call.1} parent=31 // pred_region
            %375 = vsyncadd [#allocation3], 5184
          $region69: #{tpu_custom_call.1} parent=31 // pred_fallthru
            _
          %s376 = smul.u32 18, 18
          %s377 = smul.u32 %s376, 1
          %s378 = sshll.u32 %s377, 4
          %379 = dma.done [#allocation3], %s378
        $region32: #{tpu_custom_call.1} parent=27 // pred_fallthru
          _
        %v380 = vld [vmem:[#allocation2] sm:$0xff]
        %v381 = vld [vmem:[#allocation2 + $0x8] sm:$0xff]
        %v382 = vld [vmem:[#allocation2 + $0x18] sm:$0xff]
        %v383 = vld [vmem:[#allocation2 + $0x20] sm:$0xff]
        %v384 = vld [vmem:[#allocation2 + $0x30] sm:$0xff]
        %v385 = vld [vmem:[#allocation2 + $0x38] sm:$0xff]
        %v386 = vld [vmem:[#allocation2 + $0x48] sm:$0xff]
        %v387 = vld [vmem:[#allocation2 + $0x50] sm:$0xff]
        %v388 = vld [vmem:[#allocation2 + $0x60] sm:$0xff]
        %v389 = vld [vmem:[#allocation2 + $0x68] sm:$0xff]
        %v390 = vld [vmem:[#allocation2 + $0x78] sm:$0xff]
        %v391 = vld [vmem:[#allocation2 + $0x80] sm:$0xff]
        %v392 = vld [vmem:[#allocation2 + $0x90] sm:$0xff]
        %v393 = vld [vmem:[#allocation2 + $0x98] sm:$0xff]
        %v394 = vld [vmem:[#allocation2 + $0xa8] sm:$0xff]
        %v395 = vld [vmem:[#allocation2 + $0xb0] sm:$0xff]
        %v396 = vld [vmem:[#allocation2 + $0xc0] sm:$0xff]
        %v397 = vld [vmem:[#allocation2 + $0xc8] sm:$0xff]
        %v398 = vld [vmem:[#allocation2 + $0xd8] sm:$0xff]
        %v399 = vld [vmem:[#allocation2 + $0xe0] sm:$0xff]
        %v400 = vld [vmem:[#allocation2 + $0xf0] sm:$0xff]
        %v401 = vld [vmem:[#allocation2 + $0xf8] sm:$0xff]
        %v402 = vld [vmem:[#allocation2 + $0x108] sm:$0xff]
        %v403 = vld [vmem:[#allocation2 + $0x110] sm:$0xff]
        %v404 = vld [vmem:[#allocation2 + $0x120] sm:$0xff]
        %v405 = vld [vmem:[#allocation2 + $0x128] sm:$0xff]
        %v406 = vld [vmem:[#allocation2 + $0x138] sm:$0xff]
        %v407 = vld [vmem:[#allocation2 + $0x140] sm:$0xff]
        %v408 = vld [vmem:[#allocation2 + $0x150] sm:$0xff]
        %v409 = vld [vmem:[#allocation2 + $0x158] sm:$0xff]
        %v410 = vld [vmem:[#allocation2 + $0x168] sm:$0xff]
        %v411 = vld [vmem:[#allocation2 + $0x170] sm:$0xff]
        %v412 = vld [vmem:[%s173] sm:$0xff]
        %v413 = vld [vmem:[%s173 + $0x8] sm:$0xff]
        %v414 = vld [vmem:[%s173 + $0x10] sm:$0xff]
        %v415 = vld [vmem:[%s173 + $0x18] sm:$0xff]
        %v416 = vld [vmem:[%s173 + $0x20] sm:$0xff]
        %v417 = vld [vmem:[%s173 + $0x28] sm:$0xff]
        %v418 = vld [vmem:[%s173 + $0x30] sm:$0xff]
        %v419 = vld [vmem:[%s173 + $0x38] sm:$0xff]
        %v420 = vld [vmem:[%s173 + $0x40] sm:$0xff]
        %v421 = vld [vmem:[%s173 + $0x48] sm:$0xff]
        %v422 = vld [vmem:[%s173 + $0x50] sm:$0xff]
        %v423 = vld [vmem:[%s173 + $0x58] sm:$0xff]
        %v424 = vld [vmem:[%s173 + $0x60] sm:$0xff]
        %v425 = vld [vmem:[%s173 + $0x68] sm:$0xff]
        %v426 = vld [vmem:[%s173 + $0x70] sm:$0xff]
        %v427 = vld [vmem:[%s173 + $0x78] sm:$0xff]
        %v428 = vld [vmem:[#allocation2 + $0x1] sm:$0xff]
        %v429 = vld [vmem:[#allocation2 + $0x9] sm:$0xff]
        %v430 = vld [vmem:[#allocation2 + $0x19] sm:$0xff]
        %v431 = vld [vmem:[#allocation2 + $0x21] sm:$0xff]
        %v432 = vld [vmem:[#allocation2 + $0x31] sm:$0xff]
        %v433 = vld [vmem:[#allocation2 + $0x39] sm:$0xff]
        %v434 = vld [vmem:[#allocation2 + $0x49] sm:$0xff]
        %v435 = vld [vmem:[#allocation2 + $0x51] sm:$0xff]
        %v436 = vld [vmem:[#allocation2 + $0x61] sm:$0xff]
        %v437 = vld [vmem:[#allocation2 + $0x69] sm:$0xff]
        %v438 = vld [vmem:[#allocation2 + $0x79] sm:$0xff]
        %v439 = vld [vmem:[#allocation2 + $0x81] sm:$0xff]
        %v440 = vld [vmem:[#allocation2 + $0x91] sm:$0xff]
        %v441 = vld [vmem:[#allocation2 + $0x99] sm:$0xff]
        %v442 = vld [vmem:[#allocation2 + $0xa9] sm:$0xff]
        %v443 = vld [vmem:[#allocation2 + $0xb1] sm:$0xff]
        %v444 = vld [vmem:[#allocation2 + $0xc1] sm:$0xff]
        %v445 = vld [vmem:[#allocation2 + $0xc9] sm:$0xff]
        %v446 = vld [vmem:[#allocation2 + $0xd9] sm:$0xff]
        %v447 = vld [vmem:[#allocation2 + $0xe1] sm:$0xff]
        %v448 = vld [vmem:[#allocation2 + $0xf1] sm:$0xff]
        %v449 = vld [vmem:[#allocation2 + $0xf9] sm:$0xff]
        %v450 = vld [vmem:[#allocation2 + $0x109] sm:$0xff]
        %v451 = vld [vmem:[#allocation2 + $0x111] sm:$0xff]
        %v452 = vld [vmem:[#allocation2 + $0x121] sm:$0xff]
        %v453 = vld [vmem:[#allocation2 + $0x129] sm:$0xff]
        %v454 = vld [vmem:[#allocation2 + $0x139] sm:$0xff]
        %v455 = vld [vmem:[#allocation2 + $0x141] sm:$0xff]
        %v456 = vld [vmem:[#allocation2 + $0x151] sm:$0xff]
        %v457 = vld [vmem:[#allocation2 + $0x159] sm:$0xff]
        %v458 = vld [vmem:[#allocation2 + $0x169] sm:$0xff]
        %v459 = vld [vmem:[#allocation2 + $0x171] sm:$0xff]
        %s460 = scalar_lea.vmem %s173, 128
        %v461 = vld [vmem:[%s460] sm:$0xff]
        %v462 = vld [vmem:[%s460 + $0x8] sm:$0xff]
        %v463 = vld [vmem:[%s460 + $0x10] sm:$0xff]
        %v464 = vld [vmem:[%s460 + $0x18] sm:$0xff]
        %v465 = vld [vmem:[%s460 + $0x20] sm:$0xff]
        %v466 = vld [vmem:[%s460 + $0x28] sm:$0xff]
        %v467 = vld [vmem:[%s460 + $0x30] sm:$0xff]
        %v468 = vld [vmem:[%s460 + $0x38] sm:$0xff]
        %v469 = vld [vmem:[%s460 + $0x40] sm:$0xff]
        %v470 = vld [vmem:[%s460 + $0x48] sm:$0xff]
        %v471 = vld [vmem:[%s460 + $0x50] sm:$0xff]
        %v472 = vld [vmem:[%s460 + $0x58] sm:$0xff]
        %v473 = vld [vmem:[%s460 + $0x60] sm:$0xff]
        %v474 = vld [vmem:[%s460 + $0x68] sm:$0xff]
        %v475 = vld [vmem:[%s460 + $0x70] sm:$0xff]
        %v476 = vld [vmem:[%s460 + $0x78] sm:$0xff]
        %477 = vmatprep.subr.mxu0 0.0
        %478 = vmatpush1.msra.mxu0 %v461
        %479 = vmatprep.subr.mxu0 0.0
        %480 = vmatpush1.msra.mxu0 %v462
        %481 = vmatprep.subr.mxu0 0.0
        %482 = vmatpush1.msra.mxu0 %v463
        %483 = vmatprep.subr.mxu0 0.0
        %484 = vmatpush1.msra.mxu0 %v464
        %485 = vmatprep.subr.mxu0 0.0
        %486 = vmatpush1.msra.mxu0 %v465
        %487 = vmatprep.subr.mxu0 0.0
        %488 = vmatpush1.msra.mxu0 %v466
        %489 = vmatprep.subr.mxu0 0.0
        %490 = vmatpush1.msra.mxu0 %v467
        %491 = vmatprep.subr.mxu0 0.0
        %492 = vmatpush1.msra.mxu0 %v468
        %493 = vmatprep.subr.mxu0 0.0
        %494 = vmatpush1.msra.mxu0 %v469
        %495 = vmatprep.subr.mxu0 0.0
        %496 = vmatpush1.msra.mxu0 %v470
        %497 = vmatprep.subr.mxu0 0.0
        %498 = vmatpush1.msra.mxu0 %v471
        %499 = vmatprep.subr.mxu0 0.0
        %500 = vmatpush1.msra.mxu0 %v472
        %501 = vmatprep.subr.mxu0 0.0
        %502 = vmatpush1.msra.mxu0 %v473
        %503 = vmatprep.subr.mxu0 0.0
        %504 = vmatpush1.msra.mxu0 %v474
        %505 = vmatprep.subr.mxu0 0.0
        %506 = vmatpush1.msra.mxu0 %v475
        %507 = vmatprep.subr.mxu0 0.0
        %508 = vmatpush1.msra.mxu0 %v476
        %509 = vmatprep.subr.mxu0 0.0
        %510 = vmatpush1.msra.mxu0 0.0
        %511 = vmatprep.subr.mxu0 0.0
        %512 = vmatpush1.msra.mxu0 0.0
        %513 = vmatprep.subr.mxu0 0.0
        %514 = vmatpush1.msra.mxu0 0.0
        %515 = vmatprep.subr.mxu0 0.0
        %516 = vmatpush1.msra.mxu0 0.0
        %517 = vmatprep.subr.mxu0 0.0
        %518 = vmatpush1.msra.mxu0 0.0
        %519 = vmatprep.subr.mxu0 0.0
        %520 = vmatpush1.msra.mxu0 0.0
        %521 = vmatprep.subr.mxu0 0.0
        %522 = vmatpush1.msra.mxu0 0.0
        %523 = vmatprep.subr.mxu0 0.0
        %524 = vmatpush1.msra.mxu0 0.0
        %525 = vmatprep.subr.mxu0 0.0
        %526 = vmatpush1.msra.mxu0 0.0
        %527 = vmatprep.subr.mxu0 0.0
        %528 = vmatpush1.msra.mxu0 0.0
        %529 = vmatprep.subr.mxu0 0.0
        %530 = vmatpush1.msra.mxu0 0.0
        %531 = vmatprep.subr.mxu0 0.0
        %532 = vmatpush1.msra.mxu0 0.0
        %533 = vmatprep.subr.mxu0 0.0
        %534 = vmatpush1.msra.mxu0 0.0
        %535 = vmatprep.subr.mxu0 0.0
        %536 = vmatpush1.msra.mxu0 0.0
        %537 = vmatprep.subr.mxu0 0.0
        %538 = vmatpush1.msra.mxu0 0.0
        %539 = vmatprep.subr.mxu0 0.0
        %540 = vmatpush1.msra.mxu0 0.0
        %541 = vmatprep.mubr.f32.mxu0 0.0
        %542 = vmatmul.mubr.f32.gmra.mrb[0].mxu0 %v428
        %v543 = vpop.f32.mrb[0].mxu0
        %v544 = vadd.f32 0.0, %v543
        %v545 = vpop.f32.mrb[0].mxu0
        %546 = vmatprep.mubr.f32.mxu0 0.0
        %547 = vmatmul.mubr.f32.gmra.mrb[0].mxu0 %v429
        %v548 = vpop.f32.mrb[0].mxu0
        %v549 = vadd.f32 0.0, %v548
        %v550 = vpop.f32.mrb[0].mxu0
        %551 = vmatprep.mubr.f32.mxu0 0.0
        %552 = vmatmul.mubr.f32.gmra.mrb[0].mxu0 %v430
        %v553 = vpop.f32.mrb[0].mxu0
        %v554 = vadd.f32 0.0, %v553
        %v555 = vpop.f32.mrb[0].mxu0
        %556 = vmatprep.mubr.f32.mxu0 0.0
        %557 = vmatmul.mubr.f32.gmra.mrb[0].mxu0 %v431
        %v558 = vpop.f32.mrb[0].mxu0
        %v559 = vadd.f32 0.0, %v558
        %v560 = vpop.f32.mrb[0].mxu0
        %561 = vmatprep.mubr.f32.mxu0 0.0
        %562 = vmatmul.mubr.f32.gmra.mrb[0].mxu0 %v432
        %v563 = vpop.f32.mrb[0].mxu0
        %v564 = vadd.f32 0.0, %v563
        %v565 = vpop.f32.mrb[0].mxu0
        %566 = vmatprep.mubr.f32.mxu0 0.0
        %567 = vmatmul.mubr.f32.gmra.mrb[0].mxu0 %v433
        %v568 = vpop.f32.mrb[0].mxu0
        %v569 = vadd.f32 0.0, %v568
        %v570 = vpop.f32.mrb[0].mxu0
        %571 = vmatprep.mubr.f32.mxu0 0.0
        %572 = vmatmul.mubr.f32.gmra.mrb[0].mxu0 %v434
        %v573 = vpop.f32.mrb[0].mxu0
        %v574 = vadd.f32 0.0, %v573
        %v575 = vpop.f32.mrb[0].mxu0
        %576 = vmatprep.mubr.f32.mxu0 0.0
        %577 = vmatmul.mubr.f32.gmra.mrb[0].mxu0 %v435
        %v578 = vpop.f32.mrb[0].mxu0
        %v579 = vadd.f32 0.0, %v578
        %v580 = vpop.f32.mrb[0].mxu0
        %581 = vmatprep.mubr.f32.mxu0 0.0
        %582 = vmatmul.mubr.f32.gmra.mrb[0].mxu0 %v436
        %v583 = vpop.f32.mrb[0].mxu0
        %v584 = vadd.f32 0.0, %v583
        %v585 = vpop.f32.mrb[0].mxu0
        %586 = vmatprep.mubr.f32.mxu0 0.0
        %587 = vmatmul.mubr.f32.gmra.mrb[0].mxu0 %v437
        %v588 = vpop.f32.mrb[0].mxu0
        %v589 = vadd.f32 0.0, %v588
        %v590 = vpop.f32.mrb[0].mxu0
        %591 = vmatprep.mubr.f32.mxu0 0.0
        %592 = vmatmul.mubr.f32.gmra.mrb[0].mxu0 %v438
        %v593 = vpop.f32.mrb[0].mxu0
        %v594 = vadd.f32 0.0, %v593
        %v595 = vpop.f32.mrb[0].mxu0
        %596 = vmatprep.mubr.f32.mxu0 0.0
        %597 = vmatmul.mubr.f32.gmra.mrb[0].mxu0 %v439
        %v598 = vpop.f32.mrb[0].mxu0
        %v599 = vadd.f32 0.0, %v598
        %v600 = vpop.f32.mrb[0].mxu0
        %601 = vmatprep.mubr.f32.mxu0 0.0
        %602 = vmatmul.mubr.f32.gmra.mrb[0].mxu0 %v440
        %v603 = vpop.f32.mrb[0].mxu0
        %v604 = vadd.f32 0.0, %v603
        %v605 = vpop.f32.mrb[0].mxu0
        %606 = vmatprep.mubr.f32.mxu0 0.0
        %607 = vmatmul.mubr.f32.gmra.mrb[0].mxu0 %v441
        %v608 = vpop.f32.mrb[0].mxu0
        %v609 = vadd.f32 0.0, %v608
        %v610 = vpop.f32.mrb[0].mxu0
        %611 = vmatprep.mubr.f32.mxu0 0.0
        %612 = vmatmul.mubr.f32.gmra.mrb[0].mxu0 %v442
        %v613 = vpop.f32.mrb[0].mxu0
        %v614 = vadd.f32 0.0, %v613
        %v615 = vpop.f32.mrb[0].mxu0
        %616 = vmatprep.mubr.f32.mxu0 0.0
        %617 = vmatmul.mubr.f32.gmra.mrb[0].mxu0 %v443
        %v618 = vpop.f32.mrb[0].mxu0
        %v619 = vadd.f32 0.0, %v618
        %v620 = vpop.f32.mrb[0].mxu0
        %621 = vmatprep.mubr.f32.mxu0 0.0
        %622 = vmatmul.mubr.f32.gmra.mrb[0].mxu0 %v444
        %v623 = vpop.f32.mrb[0].mxu0
        %v624 = vadd.f32 0.0, %v623
        %v625 = vpop.f32.mrb[0].mxu0
        %626 = vmatprep.mubr.f32.mxu0 0.0
        %627 = vmatmul.mubr.f32.gmra.mrb[0].mxu0 %v445
        %v628 = vpop.f32.mrb[0].mxu0
        %v629 = vadd.f32 0.0, %v628
        %v630 = vpop.f32.mrb[0].mxu0
        %631 = vmatprep.mubr.f32.mxu0 0.0
        %632 = vmatmul.mubr.f32.gmra.mrb[0].mxu0 %v446
        %v633 = vpop.f32.mrb[0].mxu0
        %v634 = vadd.f32 0.0, %v633
        %v635 = vpop.f32.mrb[0].mxu0
        %636 = vmatprep.mubr.f32.mxu0 0.0
        %637 = vmatmul.mubr.f32.gmra.mrb[0].mxu0 %v447
        %v638 = vpop.f32.mrb[0].mxu0
        %v639 = vadd.f32 0.0, %v638
        %v640 = vpop.f32.mrb[0].mxu0
        %641 = vmatprep.mubr.f32.mxu0 0.0
        %642 = vmatmul.mubr.f32.gmra.mrb[0].mxu0 %v448
        %v643 = vpop.f32.mrb[0].mxu0
        %v644 = vadd.f32 0.0, %v643
        %v645 = vpop.f32.mrb[0].mxu0
        %646 = vmatprep.mubr.f32.mxu0 0.0
        %647 = vmatmul.mubr.f32.gmra.mrb[0].mxu0 %v449
        %v648 = vpop.f32.mrb[0].mxu0
        %v649 = vadd.f32 0.0, %v648
        %v650 = vpop.f32.mrb[0].mxu0
        %651 = vmatprep.mubr.f32.mxu0 0.0
        %652 = vmatmul.mubr.f32.gmra.mrb[0].mxu0 %v450
        %v653 = vpop.f32.mrb[0].mxu0
        %v654 = vadd.f32 0.0, %v653
        %v655 = vpop.f32.mrb[0].mxu0
        %656 = vmatprep.mubr.f32.mxu0 0.0
        %657 = vmatmul.mubr.f32.gmra.mrb[0].mxu0 %v451
        %v658 = vpop.f32.mrb[0].mxu0
        %v659 = vadd.f32 0.0, %v658
        %v660 = vpop.f32.mrb[0].mxu0
        %661 = vmatprep.mubr.f32.mxu0 0.0
        %662 = vmatmul.mubr.f32.gmra.mrb[0].mxu0 %v452
        %v663 = vpop.f32.mrb[0].mxu0
        %v664 = vadd.f32 0.0, %v663
        %v665 = vpop.f32.mrb[0].mxu0
        %666 = vmatprep.mubr.f32.mxu0 0.0
        %667 = vmatmul.mubr.f32.gmra.mrb[0].mxu0 %v453
        %v668 = vpop.f32.mrb[0].mxu0
        %v669 = vadd.f32 0.0, %v668
        %v670 = vpop.f32.mrb[0].mxu0
        %671 = vmatprep.mubr.f32.mxu0 0.0
        %672 = vmatmul.mubr.f32.gmra.mrb[0].mxu0 %v454
        %v673 = vpop.f32.mrb[0].mxu0
        %v674 = vadd.f32 0.0, %v673
        %v675 = vpop.f32.mrb[0].mxu0
        %676 = vmatprep.mubr.f32.mxu0 0.0
        %677 = vmatmul.mubr.f32.gmra.mrb[0].mxu0 %v455
        %v678 = vpop.f32.mrb[0].mxu0
        %v679 = vadd.f32 0.0, %v678
        %v680 = vpop.f32.mrb[0].mxu0
        %681 = vmatprep.mubr.f32.mxu0 0.0
        %682 = vmatmul.mubr.f32.gmra.mrb[0].mxu0 %v456
        %v683 = vpop.f32.mrb[0].mxu0
        %v684 = vadd.f32 0.0, %v683
        %v685 = vpop.f32.mrb[0].mxu0
        %686 = vmatprep.mubr.f32.mxu0 0.0
        %687 = vmatmul.mubr.f32.gmra.mrb[0].mxu0 %v457
        %v688 = vpop.f32.mrb[0].mxu0
        %v689 = vadd.f32 0.0, %v688
        %v690 = vpop.f32.mrb[0].mxu0
        %691 = vmatprep.mubr.f32.mxu0 0.0
        %692 = vmatmul.mubr.f32.gmra.mrb[0].mxu0 %v458
        %v693 = vpop.f32.mrb[0].mxu0
        %v694 = vadd.f32 0.0, %v693
        %v695 = vpop.f32.mrb[0].mxu0
        %696 = vmatprep.mubr.f32.mxu0 0.0
        %697 = vmatmul.mubr.f32.gmra.mrb[0].mxu0 %v459
        %v698 = vpop.f32.mrb[0].mxu0
        %v699 = vadd.f32 0.0, %v698
        %v700 = vpop.f32.mrb[0].mxu0
        %701 = vdwg.mxu0
        %702 = vmatprep.subr.mxu0 0.0
        %703 = vmatpush1.msra.mxu0 %v412
        %704 = vmatprep.subr.mxu0 0.0
        %705 = vmatpush1.msra.mxu0 %v413
        %706 = vmatprep.subr.mxu0 0.0
        %707 = vmatpush1.msra.mxu0 %v414
        %708 = vmatprep.subr.mxu0 0.0
        %709 = vmatpush1.msra.mxu0 %v415
        %710 = vmatprep.subr.mxu0 0.0
        %711 = vmatpush1.msra.mxu0 %v416
        %712 = vmatprep.subr.mxu0 0.0
        %713 = vmatpush1.msra.mxu0 %v417
        %714 = vmatprep.subr.mxu0 0.0
        %715 = vmatpush1.msra.mxu0 %v418
        %716 = vmatprep.subr.mxu0 0.0
        %717 = vmatpush1.msra.mxu0 %v419
        %718 = vmatprep.subr.mxu0 0.0
        %719 = vmatpush1.msra.mxu0 %v420
        %720 = vmatprep.subr.mxu0 0.0
        %721 = vmatpush1.msra.mxu0 %v421
        %722 = vmatprep.subr.mxu0 0.0
        %723 = vmatpush1.msra.mxu0 %v422
        %724 = vmatprep.subr.mxu0 0.0
        %725 = vmatpush1.msra.mxu0 %v423
        %726 = vmatprep.subr.mxu0 0.0
        %727 = vmatpush1.msra.mxu0 %v424
        %728 = vmatprep.subr.mxu0 0.0
        %729 = vmatpush1.msra.mxu0 %v425
        %730 = vmatprep.subr.mxu0 0.0
        %731 = vmatpush1.msra.mxu0 %v426
        %732 = vmatprep.subr.mxu0 0.0
        %733 = vmatpush1.msra.mxu0 %v427
        %734 = vmatprep.subr.mxu0 0.0
        %735 = vmatpush1.msra.mxu0 0.0
        %736 = vmatprep.subr.mxu0 0.0
        %737 = vmatpush1.msra.mxu0 0.0
        %738 = vmatprep.subr.mxu0 0.0
        %739 = vmatpush1.msra.mxu0 0.0
        %740 = vmatprep.subr.mxu0 0.0
        %741 = vmatpush1.msra.mxu0 0.0
        %742 = vmatprep.subr.mxu0 0.0
        %743 = vmatpush1.msra.mxu0 0.0
        %744 = vmatprep.subr.mxu0 0.0
        %745 = vmatpush1.msra.mxu0 0.0
        %746 = vmatprep.subr.mxu0 0.0
        %747 = vmatpush1.msra.mxu0 0.0
        %748 = vmatprep.subr.mxu0 0.0
        %749 = vmatpush1.msra.mxu0 0.0
        %750 = vmatprep.subr.mxu0 0.0
        %751 = vmatpush1.msra.mxu0 0.0
        %752 = vmatprep.subr.mxu0 0.0
        %753 = vmatpush1.msra.mxu0 0.0
        %754 = vmatprep.subr.mxu0 0.0
        %755 = vmatpush1.msra.mxu0 0.0
        %756 = vmatprep.subr.mxu0 0.0
        %757 = vmatpush1.msra.mxu0 0.0
        %758 = vmatprep.subr.mxu0 0.0
        %759 = vmatpush1.msra.mxu0 0.0
        %760 = vmatprep.subr.mxu0 0.0
        %761 = vmatpush1.msra.mxu0 0.0
        %762 = vmatprep.subr.mxu0 0.0
        %763 = vmatpush1.msra.mxu0 0.0
        %764 = vmatprep.subr.mxu0 0.0
        %765 = vmatpush1.msra.mxu0 0.0
        %766 = vmatprep.mubr.f32.mxu0 0.0
        %767 = vmatmul.mubr.f32.gmra.mrb[0].mxu0 %v380
        %v768 = vpop.f32.mrb[0].mxu0
        %v769 = vadd.f32 %v544, %v768
        %v770 = vpop.f32.mrb[0].mxu0
        %771 = vmatprep.mubr.f32.mxu0 0.0
        %772 = vmatmul.mubr.f32.gmra.mrb[0].mxu0 %v381
        %v773 = vpop.f32.mrb[0].mxu0
        %v774 = vadd.f32 %v549, %v773
        %v775 = vpop.f32.mrb[0].mxu0
        %776 = vmatprep.mubr.f32.mxu0 0.0
        %777 = vmatmul.mubr.f32.gmra.mrb[0].mxu0 %v382
        %v778 = vpop.f32.mrb[0].mxu0
        %v779 = vadd.f32 %v554, %v778
        %v780 = vpop.f32.mrb[0].mxu0
        %781 = vmatprep.mubr.f32.mxu0 0.0
        %782 = vmatmul.mubr.f32.gmra.mrb[0].mxu0 %v383
        %v783 = vpop.f32.mrb[0].mxu0
        %v784 = vadd.f32 %v559, %v783
        %v785 = vpop.f32.mrb[0].mxu0
        %786 = vmatprep.mubr.f32.mxu0 0.0
        %787 = vmatmul.mubr.f32.gmra.mrb[0].mxu0 %v384
        %v788 = vpop.f32.mrb[0].mxu0
        %v789 = vadd.f32 %v564, %v788
        %v790 = vpop.f32.mrb[0].mxu0
        %791 = vmatprep.mubr.f32.mxu0 0.0
        %792 = vmatmul.mubr.f32.gmra.mrb[0].mxu0 %v385
        %v793 = vpop.f32.mrb[0].mxu0
        %v794 = vadd.f32 %v569, %v793
        %v795 = vpop.f32.mrb[0].mxu0
        %796 = vmatprep.mubr.f32.mxu0 0.0
        %797 = vmatmul.mubr.f32.gmra.mrb[0].mxu0 %v386
        %v798 = vpop.f32.mrb[0].mxu0
        %v799 = vadd.f32 %v574, %v798
        %v800 = vpop.f32.mrb[0].mxu0
        %801 = vmatprep.mubr.f32.mxu0 0.0
        %802 = vmatmul.mubr.f32.gmra.mrb[0].mxu0 %v387
        %v803 = vpop.f32.mrb[0].mxu0
        %v804 = vadd.f32 %v579, %v803
        %v805 = vpop.f32.mrb[0].mxu0
        %806 = vmatprep.mubr.f32.mxu0 0.0
        %807 = vmatmul.mubr.f32.gmra.mrb[0].mxu0 %v388
        %v808 = vpop.f32.mrb[0].mxu0
        %v809 = vadd.f32 %v584, %v808
        %v810 = vpop.f32.mrb[0].mxu0
        %811 = vmatprep.mubr.f32.mxu0 0.0
        %812 = vmatmul.mubr.f32.gmra.mrb[0].mxu0 %v389
        %v813 = vpop.f32.mrb[0].mxu0
        %v814 = vadd.f32 %v589, %v813
        %v815 = vpop.f32.mrb[0].mxu0
        %816 = vmatprep.mubr.f32.mxu0 0.0
        %817 = vmatmul.mubr.f32.gmra.mrb[0].mxu0 %v390
        %v818 = vpop.f32.mrb[0].mxu0
        %v819 = vadd.f32 %v594, %v818
        %v820 = vpop.f32.mrb[0].mxu0
        %821 = vmatprep.mubr.f32.mxu0 0.0
        %822 = vmatmul.mubr.f32.gmra.mrb[0].mxu0 %v391
        %v823 = vpop.f32.mrb[0].mxu0
        %v824 = vadd.f32 %v599, %v823
        %v825 = vpop.f32.mrb[0].mxu0
        %826 = vmatprep.mubr.f32.mxu0 0.0
        %827 = vmatmul.mubr.f32.gmra.mrb[0].mxu0 %v392
        %v828 = vpop.f32.mrb[0].mxu0
        %v829 = vadd.f32 %v604, %v828
        %v830 = vpop.f32.mrb[0].mxu0
        %831 = vmatprep.mubr.f32.mxu0 0.0
        %832 = vmatmul.mubr.f32.gmra.mrb[0].mxu0 %v393
        %v833 = vpop.f32.mrb[0].mxu0
        %v834 = vadd.f32 %v609, %v833
        %v835 = vpop.f32.mrb[0].mxu0
        %836 = vmatprep.mubr.f32.mxu0 0.0
        %837 = vmatmul.mubr.f32.gmra.mrb[0].mxu0 %v394
        %v838 = vpop.f32.mrb[0].mxu0
        %v839 = vadd.f32 %v614, %v838
        %v840 = vpop.f32.mrb[0].mxu0
        %841 = vmatprep.mubr.f32.mxu0 0.0
        %842 = vmatmul.mubr.f32.gmra.mrb[0].mxu0 %v395
        %v843 = vpop.f32.mrb[0].mxu0
        %v844 = vadd.f32 %v619, %v843
        %v845 = vpop.f32.mrb[0].mxu0
        %846 = vmatprep.mubr.f32.mxu0 0.0
        %847 = vmatmul.mubr.f32.gmra.mrb[0].mxu0 %v396
        %v848 = vpop.f32.mrb[0].mxu0
        %v849 = vadd.f32 %v624, %v848
        %v850 = vpop.f32.mrb[0].mxu0
        %851 = vmatprep.mubr.f32.mxu0 0.0
        %852 = vmatmul.mubr.f32.gmra.mrb[0].mxu0 %v397
        %v853 = vpop.f32.mrb[0].mxu0
        %v854 = vadd.f32 %v629, %v853
        %v855 = vpop.f32.mrb[0].mxu0
        %856 = vmatprep.mubr.f32.mxu0 0.0
        %857 = vmatmul.mubr.f32.gmra.mrb[0].mxu0 %v398
        %v858 = vpop.f32.mrb[0].mxu0
        %v859 = vadd.f32 %v634, %v858
        %v860 = vpop.f32.mrb[0].mxu0
        %861 = vmatprep.mubr.f32.mxu0 0.0
        %862 = vmatmul.mubr.f32.gmra.mrb[0].mxu0 %v399
        %v863 = vpop.f32.mrb[0].mxu0
        %v864 = vadd.f32 %v639, %v863
        %v865 = vpop.f32.mrb[0].mxu0
        %866 = vmatprep.mubr.f32.mxu0 0.0
        %867 = vmatmul.mubr.f32.gmra.mrb[0].mxu0 %v400
        %v868 = vpop.f32.mrb[0].mxu0
        %v869 = vadd.f32 %v644, %v868
        %v870 = vpop.f32.mrb[0].mxu0
        %871 = vmatprep.mubr.f32.mxu0 0.0
        %872 = vmatmul.mubr.f32.gmra.mrb[0].mxu0 %v401
        %v873 = vpop.f32.mrb[0].mxu0
        %v874 = vadd.f32 %v649, %v873
        %v875 = vpop.f32.mrb[0].mxu0
        %876 = vmatprep.mubr.f32.mxu0 0.0
        %877 = vmatmul.mubr.f32.gmra.mrb[0].mxu0 %v402
        %v878 = vpop.f32.mrb[0].mxu0
        %v879 = vadd.f32 %v654, %v878
        %v880 = vpop.f32.mrb[0].mxu0
        %881 = vmatprep.mubr.f32.mxu0 0.0
        %882 = vmatmul.mubr.f32.gmra.mrb[0].mxu0 %v403
        %v883 = vpop.f32.mrb[0].mxu0
        %v884 = vadd.f32 %v659, %v883
        %v885 = vpop.f32.mrb[0].mxu0
        %886 = vmatprep.mubr.f32.mxu0 0.0
        %887 = vmatmul.mubr.f32.gmra.mrb[0].mxu0 %v404
        %v888 = vpop.f32.mrb[0].mxu0
        %v889 = vadd.f32 %v664, %v888
        %v890 = vpop.f32.mrb[0].mxu0
        %891 = vmatprep.mubr.f32.mxu0 0.0
        %892 = vmatmul.mubr.f32.gmra.mrb[0].mxu0 %v405
        %v893 = vpop.f32.mrb[0].mxu0
        %v894 = vadd.f32 %v669, %v893
        %v895 = vpop.f32.mrb[0].mxu0
        %896 = vmatprep.mubr.f32.mxu0 0.0
        %897 = vmatmul.mubr.f32.gmra.mrb[0].mxu0 %v406
        %v898 = vpop.f32.mrb[0].mxu0
        %v899 = vadd.f32 %v674, %v898
        %v900 = vpop.f32.mrb[0].mxu0
        %901 = vmatprep.mubr.f32.mxu0 0.0
        %902 = vmatmul.mubr.f32.gmra.mrb[0].mxu0 %v407
        %v903 = vpop.f32.mrb[0].mxu0
        %v904 = vadd.f32 %v679, %v903
        %v905 = vpop.f32.mrb[0].mxu0
        %906 = vmatprep.mubr.f32.mxu0 0.0
        %907 = vmatmul.mubr.f32.gmra.mrb[0].mxu0 %v408
        %v908 = vpop.f32.mrb[0].mxu0
        %v909 = vadd.f32 %v684, %v908
        %v910 = vpop.f32.mrb[0].mxu0
        %911 = vmatprep.mubr.f32.mxu0 0.0
        %912 = vmatmul.mubr.f32.gmra.mrb[0].mxu0 %v409
        %v913 = vpop.f32.mrb[0].mxu0
        %v914 = vadd.f32 %v689, %v913
        %v915 = vpop.f32.mrb[0].mxu0
        %916 = vmatprep.mubr.f32.mxu0 0.0
        %917 = vmatmul.mubr.f32.gmra.mrb[0].mxu0 %v410
        %v918 = vpop.f32.mrb[0].mxu0
        %v919 = vadd.f32 %v694, %v918
        %v920 = vpop.f32.mrb[0].mxu0
        %921 = vmatprep.mubr.f32.mxu0 0.0
        %922 = vmatmul.mubr.f32.gmra.mrb[0].mxu0 %v411
        %v923 = vpop.f32.mrb[0].mxu0
        %v924 = vadd.f32 %v699, %v923
        %v925 = vpop.f32.mrb[0].mxu0
        %926 = vdwg.mxu0
        %v927 = vld [vmem:[#allocation2 + $0x2] sm:$0xff]
        %v928 = vld [vmem:[#allocation2 + $0xa] sm:$0xff]
        %v929 = vld [vmem:[#allocation2 + $0x1a] sm:$0xff]
        %v930 = vld [vmem:[#allocation2 + $0x22] sm:$0xff]
        %v931 = vld [vmem:[#allocation2 + $0x32] sm:$0xff]
        %v932 = vld [vmem:[#allocation2 + $0x3a] sm:$0xff]
        %v933 = vld [vmem:[#allocation2 + $0x4a] sm:$0xff]
        %v934 = vld [vmem:[#allocation2 + $0x52] sm:$0xff]
        %v935 = vld [vmem:[#allocation2 + $0x62] sm:$0xff]
        %v936 = vld [vmem:[#allocation2 + $0x6a] sm:$0xff]
        %v937 = vld [vmem:[#allocation2 + $0x7a] sm:$0xff]
        %v938 = vld [vmem:[#allocation2 + $0x82] sm:$0xff]
        %v939 = vld [vmem:[#allocation2 + $0x92] sm:$0xff]
        %v940 = vld [vmem:[#allocation2 + $0x9a] sm:$0xff]
        %v941 = vld [vmem:[#allocation2 + $0xaa] sm:$0xff]
        %v942 = vld [vmem:[#allocation2 + $0xb2] sm:$0xff]
        %v943 = vld [vmem:[#allocation2 + $0xc2] sm:$0xff]
        %v944 = vld [vmem:[#allocation2 + $0xca] sm:$0xff]
        %v945 = vld [vmem:[#allocation2 + $0xda] sm:$0xff]
        %v946 = vld [vmem:[#allocation2 + $0xe2] sm:$0xff]
        %v947 = vld [vmem:[#allocation2 + $0xf2] sm:$0xff]
        %v948 = vld [vmem:[#allocation2 + $0xfa] sm:$0xff]
        %v949 = vld [vmem:[#allocation2 + $0x10a] sm:$0xff]
        %v950 = vld [vmem:[#allocation2 + $0x112] sm:$0xff]
        %v951 = vld [vmem:[#allocation2 + $0x122] sm:$0xff]
        %v952 = vld [vmem:[#allocation2 + $0x12a] sm:$0xff]
        %v953 = vld [vmem:[#allocation2 + $0x13a] sm:$0xff]
        %v954 = vld [vmem:[#allocation2 + $0x142] sm:$0xff]
        %v955 = vld [vmem:[#allocation2 + $0x152] sm:$0xff]
        %v956 = vld [vmem:[#allocation2 + $0x15a] sm:$0xff]
        %v957 = vld [vmem:[#allocation2 + $0x16a] sm:$0xff]
        %v958 = vld [vmem:[#allocation2 + $0x172] sm:$0xff]
        %s959 = scalar_lea.vmem %s173, 256
        %v960 = vld [vmem:[%s959] sm:$0xff]
        %v961 = vld [vmem:[%s959 + $0x8] sm:$0xff]
        %v962 = vld [vmem:[%s959 + $0x10] sm:$0xff]
        %v963 = vld [vmem:[%s959 + $0x18] sm:$0xff]
        %v964 = vld [vmem:[%s959 + $0x20] sm:$0xff]
        %v965 = vld [vmem:[%s959 + $0x28] sm:$0xff]
        %v966 = vld [vmem:[%s959 + $0x30] sm:$0xff]
        %v967 = vld [vmem:[%s959 + $0x38] sm:$0xff]
        %v968 = vld [vmem:[%s959 + $0x40] sm:$0xff]
        %v969 = vld [vmem:[%s959 + $0x48] sm:$0xff]
        %v970 = vld [vmem:[%s959 + $0x50] sm:$0xff]
        %v971 = vld [vmem:[%s959 + $0x58] sm:$0xff]
        %v972 = vld [vmem:[%s959 + $0x60] sm:$0xff]
        %v973 = vld [vmem:[%s959 + $0x68] sm:$0xff]
        %v974 = vld [vmem:[%s959 + $0x70] sm:$0xff]
        %v975 = vld [vmem:[%s959 + $0x78] sm:$0xff]
        %976 = vmatprep.subr.mxu0 0.0
        %977 = vmatpush1.msra.mxu0 %v960
        %978 = vmatprep.subr.mxu0 0.0
        %979 = vmatpush1.msra.mxu0 %v961
        %980 = vmatprep.subr.mxu0 0.0
        %981 = vmatpush1.msra.mxu0 %v962
        %982 = vmatprep.subr.mxu0 0.0
        %983 = vmatpush1.msra.mxu0 %v963
        %984 = vmatprep.subr.mxu0 0.0
        %985 = vmatpush1.msra.mxu0 %v964
        %986 = vmatprep.subr.mxu0 0.0
        %987 = vmatpush1.msra.mxu0 %v965
        %988 = vmatprep.subr.mxu0 0.0
        %989 = vmatpush1.msra.mxu0 %v966
        %990 = vmatprep.subr.mxu0 0.0
        %991 = vmatpush1.msra.mxu0 %v967
        %992 = vmatprep.subr.mxu0 0.0
        %993 = vmatpush1.msra.mxu0 %v968
        %994 = vmatprep.subr.mxu0 0.0
        %995 = vmatpush1.msra.mxu0 %v969
        %996 = vmatprep.subr.mxu0 0.0
        %997 = vmatpush1.msra.mxu0 %v970
        %998 = vmatprep.subr.mxu0 0.0
        %999 = vmatpush1.msra.mxu0 %v971
        %1000 = vmatprep.subr.mxu0 0.0
        %1001 = vmatpush1.msra.mxu0 %v972
        %1002 = vmatprep.subr.mxu0 0.0
        %1003 = vmatpush1.msra.mxu0 %v973
        %1004 = vmatprep.subr.mxu0 0.0
        %1005 = vmatpush1.msra.mxu0 %v974
        %1006 = vmatprep.subr.mxu0 0.0
        %1007 = vmatpush1.msra.mxu0 %v975
        %1008 = vmatprep.subr.mxu0 0.0
        %1009 = vmatpush1.msra.mxu0 0.0
        %1010 = vmatprep.subr.mxu0 0.0
        %1011 = vmatpush1.msra.mxu0 0.0
        %1012 = vmatprep.subr.mxu0 0.0
        %1013 = vmatpush1.msra.mxu0 0.0
        %1014 = vmatprep.subr.mxu0 0.0
        %1015 = vmatpush1.msra.mxu0 0.0
        %1016 = vmatprep.subr.mxu0 0.0
        %1017 = vmatpush1.msra.mxu0 0.0
        %1018 = vmatprep.subr.mxu0 0.0
        %1019 = vmatpush1.msra.mxu0 0.0
        %1020 = vmatprep.subr.mxu0 0.0
        %1021 = vmatpush1.msra.mxu0 0.0
        %1022 = vmatprep.subr.mxu0 0.0
        %1023 = vmatpush1.msra.mxu0 0.0
        %1024 = vmatprep.subr.mxu0 0.0
        %1025 = vmatpush1.msra.mxu0 0.0
        %1026 = vmatprep.subr.mxu0 0.0
        %1027 = vmatpush1.msra.mxu0 0.0
        %1028 = vmatprep.subr.mxu0 0.0
        %1029 = vmatpush1.msra.mxu0 0.0
        %1030 = vmatprep.subr.mxu0 0.0
        %1031 = vmatpush1.msra.mxu0 0.0
        %1032 = vmatprep.subr.mxu0 0.0
        %1033 = vmatpush1.msra.mxu0 0.0
        %1034 = vmatprep.subr.mxu0 0.0
        %1035 = vmatpush1.msra.mxu0 0.0
        %1036 = vmatprep.subr.mxu0 0.0
        %1037 = vmatpush1.msra.mxu0 0.0
        %1038 = vmatprep.subr.mxu0 0.0
        %1039 = vmatpush1.msra.mxu0 0.0
        %1040 = vmatprep.mubr.f32.mxu0 0.0
        %1041 = vmatmul.mubr.f32.gmra.mrb[0].mxu0 %v927
        %v1042 = vpop.f32.mrb[0].mxu0
        %v1043 = vadd.f32 0.0, %v1042
        %v1044 = vpop.f32.mrb[0].mxu0
        %1045 = vmatprep.mubr.f32.mxu0 0.0
        %1046 = vmatmul.mubr.f32.gmra.mrb[0].mxu0 %v928
        %v1047 = vpop.f32.mrb[0].mxu0
        %v1048 = vadd.f32 0.0, %v1047
        %v1049 = vpop.f32.mrb[0].mxu0
        %1050 = vmatprep.mubr.f32.mxu0 0.0
        %1051 = vmatmul.mubr.f32.gmra.mrb[0].mxu0 %v929
        %v1052 = vpop.f32.mrb[0].mxu0
        %v1053 = vadd.f32 0.0, %v1052
        %v1054 = vpop.f32.mrb[0].mxu0
        %1055 = vmatprep.mubr.f32.mxu0 0.0
        %1056 = vmatmul.mubr.f32.gmra.mrb[0].mxu0 %v930
        %v1057 = vpop.f32.mrb[0].mxu0
        %v1058 = vadd.f32 0.0, %v1057
        %v1059 = vpop.f32.mrb[0].mxu0
        %1060 = vmatprep.mubr.f32.mxu0 0.0
        %1061 = vmatmul.mubr.f32.gmra.mrb[0].mxu0 %v931
        %v1062 = vpop.f32.mrb[0].mxu0
        %v1063 = vadd.f32 0.0, %v1062
        %v1064 = vpop.f32.mrb[0].mxu0
        %1065 = vmatprep.mubr.f32.mxu0 0.0
        %1066 = vmatmul.mubr.f32.gmra.mrb[0].mxu0 %v932
        %v1067 = vpop.f32.mrb[0].mxu0
        %v1068 = vadd.f32 0.0, %v1067
        %v1069 = vpop.f32.mrb[0].mxu0
        %1070 = vmatprep.mubr.f32.mxu0 0.0
        %1071 = vmatmul.mubr.f32.gmra.mrb[0].mxu0 %v933
        %v1072 = vpop.f32.mrb[0].mxu0
        %v1073 = vadd.f32 0.0, %v1072
        %v1074 = vpop.f32.mrb[0].mxu0
        %1075 = vmatprep.mubr.f32.mxu0 0.0
        %1076 = vmatmul.mubr.f32.gmra.mrb[0].mxu0 %v934
        %v1077 = vpop.f32.mrb[0].mxu0
        %v1078 = vadd.f32 0.0, %v1077
        %v1079 = vpop.f32.mrb[0].mxu0
        %1080 = vmatprep.mubr.f32.mxu0 0.0
        %1081 = vmatmul.mubr.f32.gmra.mrb[0].mxu0 %v935
        %v1082 = vpop.f32.mrb[0].mxu0
        %v1083 = vadd.f32 0.0, %v1082
        %v1084 = vpop.f32.mrb[0].mxu0
        %1085 = vmatprep.mubr.f32.mxu0 0.0
        %1086 = vmatmul.mubr.f32.gmra.mrb[0].mxu0 %v936
        %v1087 = vpop.f32.mrb[0].mxu0
        %v1088 = vadd.f32 0.0, %v1087
        %v1089 = vpop.f32.mrb[0].mxu0
        %1090 = vmatprep.mubr.f32.mxu0 0.0
        %1091 = vmatmul.mubr.f32.gmra.mrb[0].mxu0 %v937
        %v1092 = vpop.f32.mrb[0].mxu0
        %v1093 = vadd.f32 0.0, %v1092
        %v1094 = vpop.f32.mrb[0].mxu0
        %1095 = vmatprep.mubr.f32.mxu0 0.0
        %1096 = vmatmul.mubr.f32.gmra.mrb[0].mxu0 %v938
        %v1097 = vpop.f32.mrb[0].mxu0
        %v1098 = vadd.f32 0.0, %v1097
        %v1099 = vpop.f32.mrb[0].mxu0
        %1100 = vmatprep.mubr.f32.mxu0 0.0
        %1101 = vmatmul.mubr.f32.gmra.mrb[0].mxu0 %v939
        %v1102 = vpop.f32.mrb[0].mxu0
        %v1103 = vadd.f32 0.0, %v1102
        %v1104 = vpop.f32.mrb[0].mxu0
        %1105 = vmatprep.mubr.f32.mxu0 0.0
        %1106 = vmatmul.mubr.f32.gmra.mrb[0].mxu0 %v940
        %v1107 = vpop.f32.mrb[0].mxu0
        %v1108 = vadd.f32 0.0, %v1107
        %v1109 = vpop.f32.mrb[0].mxu0
        %1110 = vmatprep.mubr.f32.mxu0 0.0
        %1111 = vmatmul.mubr.f32.gmra.mrb[0].mxu0 %v941
        %v1112 = vpop.f32.mrb[0].mxu0
        %v1113 = vadd.f32 0.0, %v1112
        %v1114 = vpop.f32.mrb[0].mxu0
        %1115 = vmatprep.mubr.f32.mxu0 0.0
        %1116 = vmatmul.mubr.f32.gmra.mrb[0].mxu0 %v942
        %v1117 = vpop.f32.mrb[0].mxu0
        %v1118 = vadd.f32 0.0, %v1117
        %v1119 = vpop.f32.mrb[0].mxu0
        %1120 = vmatprep.mubr.f32.mxu0 0.0
        %1121 = vmatmul.mubr.f32.gmra.mrb[0].mxu0 %v943
        %v1122 = vpop.f32.mrb[0].mxu0
        %v1123 = vadd.f32 0.0, %v1122
        %v1124 = vpop.f32.mrb[0].mxu0
        %1125 = vmatprep.mubr.f32.mxu0 0.0
        %1126 = vmatmul.mubr.f32.gmra.mrb[0].mxu0 %v944
        %v1127 = vpop.f32.mrb[0].mxu0
        %v1128 = vadd.f32 0.0, %v1127
        %v1129 = vpop.f32.mrb[0].mxu0
        %1130 = vmatprep.mubr.f32.mxu0 0.0
        %1131 = vmatmul.mubr.f32.gmra.mrb[0].mxu0 %v945
        %v1132 = vpop.f32.mrb[0].mxu0
        %v1133 = vadd.f32 0.0, %v1132
        %v1134 = vpop.f32.mrb[0].mxu0
        %1135 = vmatprep.mubr.f32.mxu0 0.0
        %1136 = vmatmul.mubr.f32.gmra.mrb[0].mxu0 %v946
        %v1137 = vpop.f32.mrb[0].mxu0
        %v1138 = vadd.f32 0.0, %v1137
        %v1139 = vpop.f32.mrb[0].mxu0
        %1140 = vmatprep.mubr.f32.mxu0 0.0
        %1141 = vmatmul.mubr.f32.gmra.mrb[0].mxu0 %v947
        %v1142 = vpop.f32.mrb[0].mxu0
        %v1143 = vadd.f32 0.0, %v1142
        %v1144 = vpop.f32.mrb[0].mxu0
        %1145 = vmatprep.mubr.f32.mxu0 0.0
        %1146 = vmatmul.mubr.f32.gmra.mrb[0].mxu0 %v948
        %v1147 = vpop.f32.mrb[0].mxu0
        %v1148 = vadd.f32 0.0, %v1147
        %v1149 = vpop.f32.mrb[0].mxu0
        %1150 = vmatprep.mubr.f32.mxu0 0.0
        %1151 = vmatmul.mubr.f32.gmra.mrb[0].mxu0 %v949
        %v1152 = vpop.f32.mrb[0].mxu0
        %v1153 = vadd.f32 0.0, %v1152
        %v1154 = vpop.f32.mrb[0].mxu0
        %1155 = vmatprep.mubr.f32.mxu0 0.0
        %1156 = vmatmul.mubr.f32.gmra.mrb[0].mxu0 %v950
        %v1157 = vpop.f32.mrb[0].mxu0
        %v1158 = vadd.f32 0.0, %v1157
        %v1159 = vpop.f32.mrb[0].mxu0
        %1160 = vmatprep.mubr.f32.mxu0 0.0
        %1161 = vmatmul.mubr.f32.gmra.mrb[0].mxu0 %v951
        %v1162 = vpop.f32.mrb[0].mxu0
        %v1163 = vadd.f32 0.0, %v1162
        %v1164 = vpop.f32.mrb[0].mxu0
        %1165 = vmatprep.mubr.f32.mxu0 0.0
        %1166 = vmatmul.mubr.f32.gmra.mrb[0].mxu0 %v952
        %v1167 = vpop.f32.mrb[0].mxu0
        %v1168 = vadd.f32 0.0, %v1167
        %v1169 = vpop.f32.mrb[0].mxu0
        %1170 = vmatprep.mubr.f32.mxu0 0.0
        %1171 = vmatmul.mubr.f32.gmra.mrb[0].mxu0 %v953
        %v1172 = vpop.f32.mrb[0].mxu0
        %v1173 = vadd.f32 0.0, %v1172
        %v1174 = vpop.f32.mrb[0].mxu0
        %1175 = vmatprep.mubr.f32.mxu0 0.0
        %1176 = vmatmul.mubr.f32.gmra.mrb[0].mxu0 %v954
        %v1177 = vpop.f32.mrb[0].mxu0
        %v1178 = vadd.f32 0.0, %v1177
        %v1179 = vpop.f32.mrb[0].mxu0
        %1180 = vmatprep.mubr.f32.mxu0 0.0
        %1181 = vmatmul.mubr.f32.gmra.mrb[0].mxu0 %v955
        %v1182 = vpop.f32.mrb[0].mxu0
        %v1183 = vadd.f32 0.0, %v1182
        %v1184 = vpop.f32.mrb[0].mxu0
        %1185 = vmatprep.mubr.f32.mxu0 0.0
        %1186 = vmatmul.mubr.f32.gmra.mrb[0].mxu0 %v956
        %v1187 = vpop.f32.mrb[0].mxu0
        %v1188 = vadd.f32 0.0, %v1187
        %v1189 = vpop.f32.mrb[0].mxu0
        %1190 = vmatprep.mubr.f32.mxu0 0.0
        %1191 = vmatmul.mubr.f32.gmra.mrb[0].mxu0 %v957
        %v1192 = vpop.f32.mrb[0].mxu0
        %v1193 = vadd.f32 0.0, %v1192
        %v1194 = vpop.f32.mrb[0].mxu0
        %1195 = vmatprep.mubr.f32.mxu0 0.0
        %1196 = vmatmul.mubr.f32.gmra.mrb[0].mxu0 %v958
        %v1197 = vpop.f32.mrb[0].mxu0
        %v1198 = vadd.f32 0.0, %v1197
        %v1199 = vpop.f32.mrb[0].mxu0
        %1200 = vdwg.mxu0
        %v1201 = vadd.f32 %v769, %v1043
        %v1202 = vadd.f32 %v774, %v1048
        %v1203 = vadd.f32 %v779, %v1053
        %v1204 = vadd.f32 %v784, %v1058
        %v1205 = vadd.f32 %v789, %v1063
        %v1206 = vadd.f32 %v794, %v1068
        %v1207 = vadd.f32 %v799, %v1073
        %v1208 = vadd.f32 %v804, %v1078
        %v1209 = vadd.f32 %v809, %v1083
        %v1210 = vadd.f32 %v814, %v1088
        %v1211 = vadd.f32 %v819, %v1093
        %v1212 = vadd.f32 %v824, %v1098
        %v1213 = vadd.f32 %v829, %v1103
        %v1214 = vadd.f32 %v834, %v1108
        %v1215 = vadd.f32 %v839, %v1113
        %v1216 = vadd.f32 %v844, %v1118
        %v1217 = vadd.f32 %v849, %v1123
        %v1218 = vadd.f32 %v854, %v1128
        %v1219 = vadd.f32 %v859, %v1133
        %v1220 = vadd.f32 %v864, %v1138
        %v1221 = vadd.f32 %v869, %v1143
        %v1222 = vadd.f32 %v874, %v1148
        %v1223 = vadd.f32 %v879, %v1153
        %v1224 = vadd.f32 %v884, %v1158
        %v1225 = vadd.f32 %v889, %v1163
        %v1226 = vadd.f32 %v894, %v1168
        %v1227 = vadd.f32 %v899, %v1173
        %v1228 = vadd.f32 %v904, %v1178
        %v1229 = vadd.f32 %v909, %v1183
        %v1230 = vadd.f32 %v914, %v1188
        %v1231 = vadd.f32 %v919, %v1193
        %v1232 = vadd.f32 %v924, %v1198
        %s1233 = scalar_lea.vmem [#allocation2], 24
        %v1234 = vld [vmem:[%s1233] sm:$0xff]
        %v1235 = vld [vmem:[%s1233 + $0x8] sm:$0xff]
        %v1236 = vld [vmem:[%s1233 + $0x18] sm:$0xff]
        %v1237 = vld [vmem:[%s1233 + $0x20] sm:$0xff]
        %v1238 = vld [vmem:[%s1233 + $0x30] sm:$0xff]
        %v1239 = vld [vmem:[%s1233 + $0x38] sm:$0xff]
        %v1240 = vld [vmem:[%s1233 + $0x48] sm:$0xff]
        %v1241 = vld [vmem:[%s1233 + $0x50] sm:$0xff]
        %v1242 = vld [vmem:[%s1233 + $0x60] sm:$0xff]
        %v1243 = vld [vmem:[%s1233 + $0x68] sm:$0xff]
        %v1244 = vld [vmem:[%s1233 + $0x78] sm:$0xff]
        %v1245 = vld [vmem:[%s1233 + $0x80] sm:$0xff]
        %v1246 = vld [vmem:[%s1233 + $0x90] sm:$0xff]
        %v1247 = vld [vmem:[%s1233 + $0x98] sm:$0xff]
        %v1248 = vld [vmem:[%s1233 + $0xa8] sm:$0xff]
        %v1249 = vld [vmem:[%s1233 + $0xb0] sm:$0xff]
        %v1250 = vld [vmem:[%s1233 + $0xc0] sm:$0xff]
        %v1251 = vld [vmem:[%s1233 + $0xc8] sm:$0xff]
        %v1252 = vld [vmem:[%s1233 + $0xd8] sm:$0xff]
        %v1253 = vld [vmem:[%s1233 + $0xe0] sm:$0xff]
        %v1254 = vld [vmem:[%s1233 + $0xf0] sm:$0xff]
        %v1255 = vld [vmem:[%s1233 + $0xf8] sm:$0xff]
        %v1256 = vld [vmem:[%s1233 + $0x108] sm:$0xff]
        %v1257 = vld [vmem:[%s1233 + $0x110] sm:$0xff]
        %v1258 = vld [vmem:[%s1233 + $0x120] sm:$0xff]
        %v1259 = vld [vmem:[%s1233 + $0x128] sm:$0xff]
        %v1260 = vld [vmem:[%s1233 + $0x138] sm:$0xff]
        %v1261 = vld [vmem:[%s1233 + $0x140] sm:$0xff]
        %v1262 = vld [vmem:[%s1233 + $0x150] sm:$0xff]
        %v1263 = vld [vmem:[%s1233 + $0x158] sm:$0xff]
        %v1264 = vld [vmem:[%s1233 + $0x168] sm:$0xff]
        %v1265 = vld [vmem:[%s1233 + $0x170] sm:$0xff]
        %s1266 = scalar_lea.vmem %s173, 384
        %v1267 = vld [vmem:[%s1266] sm:$0xff]
        %v1268 = vld [vmem:[%s1266 + $0x8] sm:$0xff]
        %v1269 = vld [vmem:[%s1266 + $0x10] sm:$0xff]
        %v1270 = vld [vmem:[%s1266 + $0x18] sm:$0xff]
        %v1271 = vld [vmem:[%s1266 + $0x20] sm:$0xff]
        %v1272 = vld [vmem:[%s1266 + $0x28] sm:$0xff]
        %v1273 = vld [vmem:[%s1266 + $0x30] sm:$0xff]
        %v1274 = vld [vmem:[%s1266 + $0x38] sm:$0xff]
        %v1275 = vld [vmem:[%s1266 + $0x40] sm:$0xff]
        %v1276 = vld [vmem:[%s1266 + $0x48] sm:$0xff]
        %v1277 = vld [vmem:[%s1266 + $0x50] sm:$0xff]
        %v1278 = vld [vmem:[%s1266 + $0x58] sm:$0xff]
        %v1279 = vld [vmem:[%s1266 + $0x60] sm:$0xff]
        %v1280 = vld [vmem:[%s1266 + $0x68] sm:$0xff]
        %v1281 = vld [vmem:[%s1266 + $0x70] sm:$0xff]
        %v1282 = vld [vmem:[%s1266 + $0x78] sm:$0xff]
        %1283 = vmatprep.subr.mxu0 0.0
        %1284 = vmatpush1.msra.mxu0 %v1267
        %1285 = vmatprep.subr.mxu0 0.0
        %1286 = vmatpush1.msra.mxu0 %v1268
        %1287 = vmatprep.subr.mxu0 0.0
        %1288 = vmatpush1.msra.mxu0 %v1269
        %1289 = vmatprep.subr.mxu0 0.0
        %1290 = vmatpush1.msra.mxu0 %v1270
        %1291 = vmatprep.subr.mxu0 0.0
        %1292 = vmatpush1.msra.mxu0 %v1271
        %1293 = vmatprep.subr.mxu0 0.0
        %1294 = vmatpush1.msra.mxu0 %v1272
        %1295 = vmatprep.subr.mxu0 0.0
        %1296 = vmatpush1.msra.mxu0 %v1273
        %1297 = vmatprep.subr.mxu0 0.0
        %1298 = vmatpush1.msra.mxu0 %v1274
        %1299 = vmatprep.subr.mxu0 0.0
        %1300 = vmatpush1.msra.mxu0 %v1275
        %1301 = vmatprep.subr.mxu0 0.0
        %1302 = vmatpush1.msra.mxu0 %v1276
        %1303 = vmatprep.subr.mxu0 0.0
        %1304 = vmatpush1.msra.mxu0 %v1277
        %1305 = vmatprep.subr.mxu0 0.0
        %1306 = vmatpush1.msra.mxu0 %v1278
        %1307 = vmatprep.subr.mxu0 0.0
        %1308 = vmatpush1.msra.mxu0 %v1279
        %1309 = vmatprep.subr.mxu0 0.0
        %1310 = vmatpush1.msra.mxu0 %v1280
        %1311 = vmatprep.subr.mxu0 0.0
        %1312 = vmatpush1.msra.mxu0 %v1281
        %1313 = vmatprep.subr.mxu0 0.0
        %1314 = vmatpush1.msra.mxu0 %v1282
        %1315 = vmatprep.subr.mxu0 0.0
        %1316 = vmatpush1.msra.mxu0 0.0
        %1317 = vmatprep.subr.mxu0 0.0
        %1318 = vmatpush1.msra.mxu0 0.0
        %1319 = vmatprep.subr.mxu0 0.0
        %1320 = vmatpush1.msra.mxu0 0.0
        %1321 = vmatprep.subr.mxu0 0.0
        %1322 = vmatpush1.msra.mxu0 0.0
        %1323 = vmatprep.subr.mxu0 0.0
        %1324 = vmatpush1.msra.mxu0 0.0
        %1325 = vmatprep.subr.mxu0 0.0
        %1326 = vmatpush1.msra.mxu0 0.0
        %1327 = vmatprep.subr.mxu0 0.0
        %1328 = vmatpush1.msra.mxu0 0.0
        %1329 = vmatprep.subr.mxu0 0.0
        %1330 = vmatpush1.msra.mxu0 0.0
        %1331 = vmatprep.subr.mxu0 0.0
        %1332 = vmatpush1.msra.mxu0 0.0
        %1333 = vmatprep.subr.mxu0 0.0
        %1334 = vmatpush1.msra.mxu0 0.0
        %1335 = vmatprep.subr.mxu0 0.0
        %1336 = vmatpush1.msra.mxu0 0.0
        %1337 = vmatprep.subr.mxu0 0.0
        %1338 = vmatpush1.msra.mxu0 0.0
        %1339 = vmatprep.subr.mxu0 0.0
        %1340 = vmatpush1.msra.mxu0 0.0
        %1341 = vmatprep.subr.mxu0 0.0
        %1342 = vmatpush1.msra.mxu0 0.0
        %1343 = vmatprep.subr.mxu0 0.0
        %1344 = vmatpush1.msra.mxu0 0.0
        %1345 = vmatprep.subr.mxu0 0.0
        %1346 = vmatpush1.msra.mxu0 0.0
        %1347 = vmatprep.mubr.f32.mxu0 0.0
        %1348 = vmatmul.mubr.f32.gmra.mrb[0].mxu0 %v1234
        %v1349 = vpop.f32.mrb[0].mxu0
        %v1350 = vadd.f32 0.0, %v1349
        %v1351 = vpop.f32.mrb[0].mxu0
        %1352 = vmatprep.mubr.f32.mxu0 0.0
        %1353 = vmatmul.mubr.f32.gmra.mrb[0].mxu0 %v1235
        %v1354 = vpop.f32.mrb[0].mxu0
        %v1355 = vadd.f32 0.0, %v1354
        %v1356 = vpop.f32.mrb[0].mxu0
        %1357 = vmatprep.mubr.f32.mxu0 0.0
        %1358 = vmatmul.mubr.f32.gmra.mrb[0].mxu0 %v1236
        %v1359 = vpop.f32.mrb[0].mxu0
        %v1360 = vadd.f32 0.0, %v1359
        %v1361 = vpop.f32.mrb[0].mxu0
        %1362 = vmatprep.mubr.f32.mxu0 0.0
        %1363 = vmatmul.mubr.f32.gmra.mrb[0].mxu0 %v1237
        %v1364 = vpop.f32.mrb[0].mxu0
        %v1365 = vadd.f32 0.0, %v1364
        %v1366 = vpop.f32.mrb[0].mxu0
        %1367 = vmatprep.mubr.f32.mxu0 0.0
        %1368 = vmatmul.mubr.f32.gmra.mrb[0].mxu0 %v1238
        %v1369 = vpop.f32.mrb[0].mxu0
        %v1370 = vadd.f32 0.0, %v1369
        %v1371 = vpop.f32.mrb[0].mxu0
        %1372 = vmatprep.mubr.f32.mxu0 0.0
        %1373 = vmatmul.mubr.f32.gmra.mrb[0].mxu0 %v1239
        %v1374 = vpop.f32.mrb[0].mxu0
        %v1375 = vadd.f32 0.0, %v1374
        %v1376 = vpop.f32.mrb[0].mxu0
        %1377 = vmatprep.mubr.f32.mxu0 0.0
        %1378 = vmatmul.mubr.f32.gmra.mrb[0].mxu0 %v1240
        %v1379 = vpop.f32.mrb[0].mxu0
        %v1380 = vadd.f32 0.0, %v1379
        %v1381 = vpop.f32.mrb[0].mxu0
        %1382 = vmatprep.mubr.f32.mxu0 0.0
        %1383 = vmatmul.mubr.f32.gmra.mrb[0].mxu0 %v1241
        %v1384 = vpop.f32.mrb[0].mxu0
        %v1385 = vadd.f32 0.0, %v1384
        %v1386 = vpop.f32.mrb[0].mxu0
        %1387 = vmatprep.mubr.f32.mxu0 0.0
        %1388 = vmatmul.mubr.f32.gmra.mrb[0].mxu0 %v1242
        %v1389 = vpop.f32.mrb[0].mxu0
        %v1390 = vadd.f32 0.0, %v1389
        %v1391 = vpop.f32.mrb[0].mxu0
        %1392 = vmatprep.mubr.f32.mxu0 0.0
        %1393 = vmatmul.mubr.f32.gmra.mrb[0].mxu0 %v1243
        %v1394 = vpop.f32.mrb[0].mxu0
        %v1395 = vadd.f32 0.0, %v1394
        %v1396 = vpop.f32.mrb[0].mxu0
        %1397 = vmatprep.mubr.f32.mxu0 0.0
        %1398 = vmatmul.mubr.f32.gmra.mrb[0].mxu0 %v1244
        %v1399 = vpop.f32.mrb[0].mxu0
        %v1400 = vadd.f32 0.0, %v1399
        %v1401 = vpop.f32.mrb[0].mxu0
        %1402 = vmatprep.mubr.f32.mxu0 0.0
        %1403 = vmatmul.mubr.f32.gmra.mrb[0].mxu0 %v1245
        %v1404 = vpop.f32.mrb[0].mxu0
        %v1405 = vadd.f32 0.0, %v1404
        %v1406 = vpop.f32.mrb[0].mxu0
        %1407 = vmatprep.mubr.f32.mxu0 0.0
        %1408 = vmatmul.mubr.f32.gmra.mrb[0].mxu0 %v1246
        %v1409 = vpop.f32.mrb[0].mxu0
        %v1410 = vadd.f32 0.0, %v1409
        %v1411 = vpop.f32.mrb[0].mxu0
        %1412 = vmatprep.mubr.f32.mxu0 0.0
        %1413 = vmatmul.mubr.f32.gmra.mrb[0].mxu0 %v1247
        %v1414 = vpop.f32.mrb[0].mxu0
        %v1415 = vadd.f32 0.0, %v1414
        %v1416 = vpop.f32.mrb[0].mxu0
        %1417 = vmatprep.mubr.f32.mxu0 0.0
        %1418 = vmatmul.mubr.f32.gmra.mrb[0].mxu0 %v1248
        %v1419 = vpop.f32.mrb[0].mxu0
        %v1420 = vadd.f32 0.0, %v1419
        %v1421 = vpop.f32.mrb[0].mxu0
        %1422 = vmatprep.mubr.f32.mxu0 0.0
        %1423 = vmatmul.mubr.f32.gmra.mrb[0].mxu0 %v1249
        %v1424 = vpop.f32.mrb[0].mxu0
        %v1425 = vadd.f32 0.0, %v1424
        %v1426 = vpop.f32.mrb[0].mxu0
        %1427 = vmatprep.mubr.f32.mxu0 0.0
        %1428 = vmatmul.mubr.f32.gmra.mrb[0].mxu0 %v1250
        %v1429 = vpop.f32.mrb[0].mxu0
        %v1430 = vadd.f32 0.0, %v1429
        %v1431 = vpop.f32.mrb[0].mxu0
        %1432 = vmatprep.mubr.f32.mxu0 0.0
        %1433 = vmatmul.mubr.f32.gmra.mrb[0].mxu0 %v1251
        %v1434 = vpop.f32.mrb[0].mxu0
        %v1435 = vadd.f32 0.0, %v1434
        %v1436 = vpop.f32.mrb[0].mxu0
        %1437 = vmatprep.mubr.f32.mxu0 0.0
        %1438 = vmatmul.mubr.f32.gmra.mrb[0].mxu0 %v1252
        %v1439 = vpop.f32.mrb[0].mxu0
        %v1440 = vadd.f32 0.0, %v1439
        %v1441 = vpop.f32.mrb[0].mxu0
        %1442 = vmatprep.mubr.f32.mxu0 0.0
        %1443 = vmatmul.mubr.f32.gmra.mrb[0].mxu0 %v1253
        %v1444 = vpop.f32.mrb[0].mxu0
        %v1445 = vadd.f32 0.0, %v1444
        %v1446 = vpop.f32.mrb[0].mxu0
        %1447 = vmatprep.mubr.f32.mxu0 0.0
        %1448 = vmatmul.mubr.f32.gmra.mrb[0].mxu0 %v1254
        %v1449 = vpop.f32.mrb[0].mxu0
        %v1450 = vadd.f32 0.0, %v1449
        %v1451 = vpop.f32.mrb[0].mxu0
        %1452 = vmatprep.mubr.f32.mxu0 0.0
        %1453 = vmatmul.mubr.f32.gmra.mrb[0].mxu0 %v1255
        %v1454 = vpop.f32.mrb[0].mxu0
        %v1455 = vadd.f32 0.0, %v1454
        %v1456 = vpop.f32.mrb[0].mxu0
        %1457 = vmatprep.mubr.f32.mxu0 0.0
        %1458 = vmatmul.mubr.f32.gmra.mrb[0].mxu0 %v1256
        %v1459 = vpop.f32.mrb[0].mxu0
        %v1460 = vadd.f32 0.0, %v1459
        %v1461 = vpop.f32.mrb[0].mxu0
        %1462 = vmatprep.mubr.f32.mxu0 0.0
        %1463 = vmatmul.mubr.f32.gmra.mrb[0].mxu0 %v1257
        %v1464 = vpop.f32.mrb[0].mxu0
        %v1465 = vadd.f32 0.0, %v1464
        %v1466 = vpop.f32.mrb[0].mxu0
        %1467 = vmatprep.mubr.f32.mxu0 0.0
        %1468 = vmatmul.mubr.f32.gmra.mrb[0].mxu0 %v1258
        %v1469 = vpop.f32.mrb[0].mxu0
        %v1470 = vadd.f32 0.0, %v1469
        %v1471 = vpop.f32.mrb[0].mxu0
        %1472 = vmatprep.mubr.f32.mxu0 0.0
        %1473 = vmatmul.mubr.f32.gmra.mrb[0].mxu0 %v1259
        %v1474 = vpop.f32.mrb[0].mxu0
        %v1475 = vadd.f32 0.0, %v1474
        %v1476 = vpop.f32.mrb[0].mxu0
        %1477 = vmatprep.mubr.f32.mxu0 0.0
        %1478 = vmatmul.mubr.f32.gmra.mrb[0].mxu0 %v1260
        %v1479 = vpop.f32.mrb[0].mxu0
        %v1480 = vadd.f32 0.0, %v1479
        %v1481 = vpop.f32.mrb[0].mxu0
        %1482 = vmatprep.mubr.f32.mxu0 0.0
        %1483 = vmatmul.mubr.f32.gmra.mrb[0].mxu0 %v1261
        %v1484 = vpop.f32.mrb[0].mxu0
        %v1485 = vadd.f32 0.0, %v1484
        %v1486 = vpop.f32.mrb[0].mxu0
        %1487 = vmatprep.mubr.f32.mxu0 0.0
        %1488 = vmatmul.mubr.f32.gmra.mrb[0].mxu0 %v1262
        %v1489 = vpop.f32.mrb[0].mxu0
        %v1490 = vadd.f32 0.0, %v1489
        %v1491 = vpop.f32.mrb[0].mxu0
        %1492 = vmatprep.mubr.f32.mxu0 0.0
        %1493 = vmatmul.mubr.f32.gmra.mrb[0].mxu0 %v1263
        %v1494 = vpop.f32.mrb[0].mxu0
        %v1495 = vadd.f32 0.0, %v1494
        %v1496 = vpop.f32.mrb[0].mxu0
        %1497 = vmatprep.mubr.f32.mxu0 0.0
        %1498 = vmatmul.mubr.f32.gmra.mrb[0].mxu0 %v1264
        %v1499 = vpop.f32.mrb[0].mxu0
        %v1500 = vadd.f32 0.0, %v1499
        %v1501 = vpop.f32.mrb[0].mxu0
        %1502 = vmatprep.mubr.f32.mxu0 0.0
        %1503 = vmatmul.mubr.f32.gmra.mrb[0].mxu0 %v1265
        %v1504 = vpop.f32.mrb[0].mxu0
        %v1505 = vadd.f32 0.0, %v1504
        %v1506 = vpop.f32.mrb[0].mxu0
        %1507 = vdwg.mxu0
        %v1508 = vadd.f32 %v1201, %v1350
        %v1509 = vadd.f32 %v1202, %v1355
        %v1510 = vadd.f32 %v1203, %v1360
        %v1511 = vadd.f32 %v1204, %v1365
        %v1512 = vadd.f32 %v1205, %v1370
        %v1513 = vadd.f32 %v1206, %v1375
        %v1514 = vadd.f32 %v1207, %v1380
        %v1515 = vadd.f32 %v1208, %v1385
        %v1516 = vadd.f32 %v1209, %v1390
        %v1517 = vadd.f32 %v1210, %v1395
        %v1518 = vadd.f32 %v1211, %v1400
        %v1519 = vadd.f32 %v1212, %v1405
        %v1520 = vadd.f32 %v1213, %v1410
        %v1521 = vadd.f32 %v1214, %v1415
        %v1522 = vadd.f32 %v1215, %v1420
        %v1523 = vadd.f32 %v1216, %v1425
        %v1524 = vadd.f32 %v1217, %v1430
        %v1525 = vadd.f32 %v1218, %v1435
        %v1526 = vadd.f32 %v1219, %v1440
        %v1527 = vadd.f32 %v1220, %v1445
        %v1528 = vadd.f32 %v1221, %v1450
        %v1529 = vadd.f32 %v1222, %v1455
        %v1530 = vadd.f32 %v1223, %v1460
        %v1531 = vadd.f32 %v1224, %v1465
        %v1532 = vadd.f32 %v1225, %v1470
        %v1533 = vadd.f32 %v1226, %v1475
        %v1534 = vadd.f32 %v1227, %v1480
        %v1535 = vadd.f32 %v1228, %v1485
        %v1536 = vadd.f32 %v1229, %v1490
        %v1537 = vadd.f32 %v1230, %v1495
        %v1538 = vadd.f32 %v1231, %v1500
        %v1539 = vadd.f32 %v1232, %v1505
        %v1540 = vld [vmem:[%s1233 + $0x1] sm:$0xff]
        %v1541 = vld [vmem:[%s1233 + $0x9] sm:$0xff]
        %v1542 = vld [vmem:[%s1233 + $0x19] sm:$0xff]
        %v1543 = vld [vmem:[%s1233 + $0x21] sm:$0xff]
        %v1544 = vld [vmem:[%s1233 + $0x31] sm:$0xff]
        %v1545 = vld [vmem:[%s1233 + $0x39] sm:$0xff]
        %v1546 = vld [vmem:[%s1233 + $0x49] sm:$0xff]
        %v1547 = vld [vmem:[%s1233 + $0x51] sm:$0xff]
        %v1548 = vld [vmem:[%s1233 + $0x61] sm:$0xff]
        %v1549 = vld [vmem:[%s1233 + $0x69] sm:$0xff]
        %v1550 = vld [vmem:[%s1233 + $0x79] sm:$0xff]
        %v1551 = vld [vmem:[%s1233 + $0x81] sm:$0xff]
        %v1552 = vld [vmem:[%s1233 + $0x91] sm:$0xff]
        %v1553 = vld [vmem:[%s1233 + $0x99] sm:$0xff]
        %v1554 = vld [vmem:[%s1233 + $0xa9] sm:$0xff]
        %v1555 = vld [vmem:[%s1233 + $0xb1] sm:$0xff]
        %v1556 = vld [vmem:[%s1233 + $0xc1] sm:$0xff]
        %v1557 = vld [vmem:[%s1233 + $0xc9] sm:$0xff]
        %v1558 = vld [vmem:[%s1233 + $0xd9] sm:$0xff]
        %v1559 = vld [vmem:[%s1233 + $0xe1] sm:$0xff]
        %v1560 = vld [vmem:[%s1233 + $0xf1] sm:$0xff]
        %v1561 = vld [vmem:[%s1233 + $0xf9] sm:$0xff]
        %v1562 = vld [vmem:[%s1233 + $0x109] sm:$0xff]
        %v1563 = vld [vmem:[%s1233 + $0x111] sm:$0xff]
        %v1564 = vld [vmem:[%s1233 + $0x121] sm:$0xff]
        %v1565 = vld [vmem:[%s1233 + $0x129] sm:$0xff]
        %v1566 = vld [vmem:[%s1233 + $0x139] sm:$0xff]
        %v1567 = vld [vmem:[%s1233 + $0x141] sm:$0xff]
        %v1568 = vld [vmem:[%s1233 + $0x151] sm:$0xff]
        %v1569 = vld [vmem:[%s1233 + $0x159] sm:$0xff]
        %v1570 = vld [vmem:[%s1233 + $0x169] sm:$0xff]
        %v1571 = vld [vmem:[%s1233 + $0x171] sm:$0xff]
        %s1572 = scalar_lea.vmem %s173, 512
        %v1573 = vld [vmem:[%s1572] sm:$0xff]
        %v1574 = vld [vmem:[%s1572 + $0x8] sm:$0xff]
        %v1575 = vld [vmem:[%s1572 + $0x10] sm:$0xff]
        %v1576 = vld [vmem:[%s1572 + $0x18] sm:$0xff]
        %v1577 = vld [vmem:[%s1572 + $0x20] sm:$0xff]
        %v1578 = vld [vmem:[%s1572 + $0x28] sm:$0xff]
        %v1579 = vld [vmem:[%s1572 + $0x30] sm:$0xff]
        %v1580 = vld [vmem:[%s1572 + $0x38] sm:$0xff]
        %v1581 = vld [vmem:[%s1572 + $0x40] sm:$0xff]
        %v1582 = vld [vmem:[%s1572 + $0x48] sm:$0xff]
        %v1583 = vld [vmem:[%s1572 + $0x50] sm:$0xff]
        %v1584 = vld [vmem:[%s1572 + $0x58] sm:$0xff]
        %v1585 = vld [vmem:[%s1572 + $0x60] sm:$0xff]
        %v1586 = vld [vmem:[%s1572 + $0x68] sm:$0xff]
        %v1587 = vld [vmem:[%s1572 + $0x70] sm:$0xff]
        %v1588 = vld [vmem:[%s1572 + $0x78] sm:$0xff]
        %1589 = vmatprep.subr.mxu0 0.0
        %1590 = vmatpush1.msra.mxu0 %v1573
        %1591 = vmatprep.subr.mxu0 0.0
        %1592 = vmatpush1.msra.mxu0 %v1574
        %1593 = vmatprep.subr.mxu0 0.0
        %1594 = vmatpush1.msra.mxu0 %v1575
        %1595 = vmatprep.subr.mxu0 0.0
        %1596 = vmatpush1.msra.mxu0 %v1576
        %1597 = vmatprep.subr.mxu0 0.0
        %1598 = vmatpush1.msra.mxu0 %v1577
        %1599 = vmatprep.subr.mxu0 0.0
        %1600 = vmatpush1.msra.mxu0 %v1578
        %1601 = vmatprep.subr.mxu0 0.0
        %1602 = vmatpush1.msra.mxu0 %v1579
        %1603 = vmatprep.subr.mxu0 0.0
        %1604 = vmatpush1.msra.mxu0 %v1580
        %1605 = vmatprep.subr.mxu0 0.0
        %1606 = vmatpush1.msra.mxu0 %v1581
        %1607 = vmatprep.subr.mxu0 0.0
        %1608 = vmatpush1.msra.mxu0 %v1582
        %1609 = vmatprep.subr.mxu0 0.0
        %1610 = vmatpush1.msra.mxu0 %v1583
        %1611 = vmatprep.subr.mxu0 0.0
        %1612 = vmatpush1.msra.mxu0 %v1584
        %1613 = vmatprep.subr.mxu0 0.0
        %1614 = vmatpush1.msra.mxu0 %v1585
        %1615 = vmatprep.subr.mxu0 0.0
        %1616 = vmatpush1.msra.mxu0 %v1586
        %1617 = vmatprep.subr.mxu0 0.0
        %1618 = vmatpush1.msra.mxu0 %v1587
        %1619 = vmatprep.subr.mxu0 0.0
        %1620 = vmatpush1.msra.mxu0 %v1588
        %1621 = vmatprep.subr.mxu0 0.0
        %1622 = vmatpush1.msra.mxu0 0.0
        %1623 = vmatprep.subr.mxu0 0.0
        %1624 = vmatpush1.msra.mxu0 0.0
        %1625 = vmatprep.subr.mxu0 0.0
        %1626 = vmatpush1.msra.mxu0 0.0
        %1627 = vmatprep.subr.mxu0 0.0
        %1628 = vmatpush1.msra.mxu0 0.0
        %1629 = vmatprep.subr.mxu0 0.0
        %1630 = vmatpush1.msra.mxu0 0.0
        %1631 = vmatprep.subr.mxu0 0.0
        %1632 = vmatpush1.msra.mxu0 0.0
        %1633 = vmatprep.subr.mxu0 0.0
        %1634 = vmatpush1.msra.mxu0 0.0
        %1635 = vmatprep.subr.mxu0 0.0
        %1636 = vmatpush1.msra.mxu0 0.0
        %1637 = vmatprep.subr.mxu0 0.0
        %1638 = vmatpush1.msra.mxu0 0.0
        %1639 = vmatprep.subr.mxu0 0.0
        %1640 = vmatpush1.msra.mxu0 0.0
        %1641 = vmatprep.subr.mxu0 0.0
        %1642 = vmatpush1.msra.mxu0 0.0
        %1643 = vmatprep.subr.mxu0 0.0
        %1644 = vmatpush1.msra.mxu0 0.0
        %1645 = vmatprep.subr.mxu0 0.0
        %1646 = vmatpush1.msra.mxu0 0.0
        %1647 = vmatprep.subr.mxu0 0.0
        %1648 = vmatpush1.msra.mxu0 0.0
        %1649 = vmatprep.subr.mxu0 0.0
        %1650 = vmatpush1.msra.mxu0 0.0
        %1651 = vmatprep.subr.mxu0 0.0
        %1652 = vmatpush1.msra.mxu0 0.0
        %1653 = vmatprep.mubr.f32.mxu0 0.0
        %1654 = vmatmul.mubr.f32.gmra.mrb[0].mxu0 %v1540
        %v1655 = vpop.f32.mrb[0].mxu0
        %v1656 = vadd.f32 0.0, %v1655
        %v1657 = vpop.f32.mrb[0].mxu0
        %1658 = vmatprep.mubr.f32.mxu0 0.0
        %1659 = vmatmul.mubr.f32.gmra.mrb[0].mxu0 %v1541
        %v1660 = vpop.f32.mrb[0].mxu0
        %v1661 = vadd.f32 0.0, %v1660
        %v1662 = vpop.f32.mrb[0].mxu0
        %1663 = vmatprep.mubr.f32.mxu0 0.0
        %1664 = vmatmul.mubr.f32.gmra.mrb[0].mxu0 %v1542
        %v1665 = vpop.f32.mrb[0].mxu0
        %v1666 = vadd.f32 0.0, %v1665
        %v1667 = vpop.f32.mrb[0].mxu0
        %1668 = vmatprep.mubr.f32.mxu0 0.0
        %1669 = vmatmul.mubr.f32.gmra.mrb[0].mxu0 %v1543
        %v1670 = vpop.f32.mrb[0].mxu0
        %v1671 = vadd.f32 0.0, %v1670
        %v1672 = vpop.f32.mrb[0].mxu0
        %1673 = vmatprep.mubr.f32.mxu0 0.0
        %1674 = vmatmul.mubr.f32.gmra.mrb[0].mxu0 %v1544
        %v1675 = vpop.f32.mrb[0].mxu0
        %v1676 = vadd.f32 0.0, %v1675
        %v1677 = vpop.f32.mrb[0].mxu0
        %1678 = vmatprep.mubr.f32.mxu0 0.0
        %1679 = vmatmul.mubr.f32.gmra.mrb[0].mxu0 %v1545
        %v1680 = vpop.f32.mrb[0].mxu0
        %v1681 = vadd.f32 0.0, %v1680
        %v1682 = vpop.f32.mrb[0].mxu0
        %1683 = vmatprep.mubr.f32.mxu0 0.0
        %1684 = vmatmul.mubr.f32.gmra.mrb[0].mxu0 %v1546
        %v1685 = vpop.f32.mrb[0].mxu0
        %v1686 = vadd.f32 0.0, %v1685
        %v1687 = vpop.f32.mrb[0].mxu0
        %1688 = vmatprep.mubr.f32.mxu0 0.0
        %1689 = vmatmul.mubr.f32.gmra.mrb[0].mxu0 %v1547
        %v1690 = vpop.f32.mrb[0].mxu0
        %v1691 = vadd.f32 0.0, %v1690
        %v1692 = vpop.f32.mrb[0].mxu0
        %1693 = vmatprep.mubr.f32.mxu0 0.0
        %1694 = vmatmul.mubr.f32.gmra.mrb[0].mxu0 %v1548
        %v1695 = vpop.f32.mrb[0].mxu0
        %v1696 = vadd.f32 0.0, %v1695
        %v1697 = vpop.f32.mrb[0].mxu0
        %1698 = vmatprep.mubr.f32.mxu0 0.0
        %1699 = vmatmul.mubr.f32.gmra.mrb[0].mxu0 %v1549
        %v1700 = vpop.f32.mrb[0].mxu0
        %v1701 = vadd.f32 0.0, %v1700
        %v1702 = vpop.f32.mrb[0].mxu0
        %1703 = vmatprep.mubr.f32.mxu0 0.0
        %1704 = vmatmul.mubr.f32.gmra.mrb[0].mxu0 %v1550
        %v1705 = vpop.f32.mrb[0].mxu0
        %v1706 = vadd.f32 0.0, %v1705
        %v1707 = vpop.f32.mrb[0].mxu0
        %1708 = vmatprep.mubr.f32.mxu0 0.0
        %1709 = vmatmul.mubr.f32.gmra.mrb[0].mxu0 %v1551
        %v1710 = vpop.f32.mrb[0].mxu0
        %v1711 = vadd.f32 0.0, %v1710
        %v1712 = vpop.f32.mrb[0].mxu0
        %1713 = vmatprep.mubr.f32.mxu0 0.0
        %1714 = vmatmul.mubr.f32.gmra.mrb[0].mxu0 %v1552
        %v1715 = vpop.f32.mrb[0].mxu0
        %v1716 = vadd.f32 0.0, %v1715
        %v1717 = vpop.f32.mrb[0].mxu0
        %1718 = vmatprep.mubr.f32.mxu0 0.0
        %1719 = vmatmul.mubr.f32.gmra.mrb[0].mxu0 %v1553
        %v1720 = vpop.f32.mrb[0].mxu0
        %v1721 = vadd.f32 0.0, %v1720
        %v1722 = vpop.f32.mrb[0].mxu0
        %1723 = vmatprep.mubr.f32.mxu0 0.0
        %1724 = vmatmul.mubr.f32.gmra.mrb[0].mxu0 %v1554
        %v1725 = vpop.f32.mrb[0].mxu0
        %v1726 = vadd.f32 0.0, %v1725
        %v1727 = vpop.f32.mrb[0].mxu0
        %1728 = vmatprep.mubr.f32.mxu0 0.0
        %1729 = vmatmul.mubr.f32.gmra.mrb[0].mxu0 %v1555
        %v1730 = vpop.f32.mrb[0].mxu0
        %v1731 = vadd.f32 0.0, %v1730
        %v1732 = vpop.f32.mrb[0].mxu0
        %1733 = vmatprep.mubr.f32.mxu0 0.0
        %1734 = vmatmul.mubr.f32.gmra.mrb[0].mxu0 %v1556
        %v1735 = vpop.f32.mrb[0].mxu0
        %v1736 = vadd.f32 0.0, %v1735
        %v1737 = vpop.f32.mrb[0].mxu0
        %1738 = vmatprep.mubr.f32.mxu0 0.0
        %1739 = vmatmul.mubr.f32.gmra.mrb[0].mxu0 %v1557
        %v1740 = vpop.f32.mrb[0].mxu0
        %v1741 = vadd.f32 0.0, %v1740
        %v1742 = vpop.f32.mrb[0].mxu0
        %1743 = vmatprep.mubr.f32.mxu0 0.0
        %1744 = vmatmul.mubr.f32.gmra.mrb[0].mxu0 %v1558
        %v1745 = vpop.f32.mrb[0].mxu0
        %v1746 = vadd.f32 0.0, %v1745
        %v1747 = vpop.f32.mrb[0].mxu0
        %1748 = vmatprep.mubr.f32.mxu0 0.0
        %1749 = vmatmul.mubr.f32.gmra.mrb[0].mxu0 %v1559
        %v1750 = vpop.f32.mrb[0].mxu0
        %v1751 = vadd.f32 0.0, %v1750
        %v1752 = vpop.f32.mrb[0].mxu0
        %1753 = vmatprep.mubr.f32.mxu0 0.0
        %1754 = vmatmul.mubr.f32.gmra.mrb[0].mxu0 %v1560
        %v1755 = vpop.f32.mrb[0].mxu0
        %v1756 = vadd.f32 0.0, %v1755
        %v1757 = vpop.f32.mrb[0].mxu0
        %1758 = vmatprep.mubr.f32.mxu0 0.0
        %1759 = vmatmul.mubr.f32.gmra.mrb[0].mxu0 %v1561
        %v1760 = vpop.f32.mrb[0].mxu0
        %v1761 = vadd.f32 0.0, %v1760
        %v1762 = vpop.f32.mrb[0].mxu0
        %1763 = vmatprep.mubr.f32.mxu0 0.0
        %1764 = vmatmul.mubr.f32.gmra.mrb[0].mxu0 %v1562
        %v1765 = vpop.f32.mrb[0].mxu0
        %v1766 = vadd.f32 0.0, %v1765
        %v1767 = vpop.f32.mrb[0].mxu0
        %1768 = vmatprep.mubr.f32.mxu0 0.0
        %1769 = vmatmul.mubr.f32.gmra.mrb[0].mxu0 %v1563
        %v1770 = vpop.f32.mrb[0].mxu0
        %v1771 = vadd.f32 0.0, %v1770
        %v1772 = vpop.f32.mrb[0].mxu0
        %1773 = vmatprep.mubr.f32.mxu0 0.0
        %1774 = vmatmul.mubr.f32.gmra.mrb[0].mxu0 %v1564
        %v1775 = vpop.f32.mrb[0].mxu0
        %v1776 = vadd.f32 0.0, %v1775
        %v1777 = vpop.f32.mrb[0].mxu0
        %1778 = vmatprep.mubr.f32.mxu0 0.0
        %1779 = vmatmul.mubr.f32.gmra.mrb[0].mxu0 %v1565
        %v1780 = vpop.f32.mrb[0].mxu0
        %v1781 = vadd.f32 0.0, %v1780
        %v1782 = vpop.f32.mrb[0].mxu0
        %1783 = vmatprep.mubr.f32.mxu0 0.0
        %1784 = vmatmul.mubr.f32.gmra.mrb[0].mxu0 %v1566
        %v1785 = vpop.f32.mrb[0].mxu0
        %v1786 = vadd.f32 0.0, %v1785
        %v1787 = vpop.f32.mrb[0].mxu0
        %1788 = vmatprep.mubr.f32.mxu0 0.0
        %1789 = vmatmul.mubr.f32.gmra.mrb[0].mxu0 %v1567
        %v1790 = vpop.f32.mrb[0].mxu0
        %v1791 = vadd.f32 0.0, %v1790
        %v1792 = vpop.f32.mrb[0].mxu0
        %1793 = vmatprep.mubr.f32.mxu0 0.0
        %1794 = vmatmul.mubr.f32.gmra.mrb[0].mxu0 %v1568
        %v1795 = vpop.f32.mrb[0].mxu0
        %v1796 = vadd.f32 0.0, %v1795
        %v1797 = vpop.f32.mrb[0].mxu0
        %1798 = vmatprep.mubr.f32.mxu0 0.0
        %1799 = vmatmul.mubr.f32.gmra.mrb[0].mxu0 %v1569
        %v1800 = vpop.f32.mrb[0].mxu0
        %v1801 = vadd.f32 0.0, %v1800
        %v1802 = vpop.f32.mrb[0].mxu0
        %1803 = vmatprep.mubr.f32.mxu0 0.0
        %1804 = vmatmul.mubr.f32.gmra.mrb[0].mxu0 %v1570
        %v1805 = vpop.f32.mrb[0].mxu0
        %v1806 = vadd.f32 0.0, %v1805
        %v1807 = vpop.f32.mrb[0].mxu0
        %1808 = vmatprep.mubr.f32.mxu0 0.0
        %1809 = vmatmul.mubr.f32.gmra.mrb[0].mxu0 %v1571
        %v1810 = vpop.f32.mrb[0].mxu0
        %v1811 = vadd.f32 0.0, %v1810
        %v1812 = vpop.f32.mrb[0].mxu0
        %1813 = vdwg.mxu0
        %v1814 = vadd.f32 %v1508, %v1656
        %v1815 = vadd.f32 %v1509, %v1661
        %v1816 = vadd.f32 %v1510, %v1666
        %v1817 = vadd.f32 %v1511, %v1671
        %v1818 = vadd.f32 %v1512, %v1676
        %v1819 = vadd.f32 %v1513, %v1681
        %v1820 = vadd.f32 %v1514, %v1686
        %v1821 = vadd.f32 %v1515, %v1691
        %v1822 = vadd.f32 %v1516, %v1696
        %v1823 = vadd.f32 %v1517, %v1701
        %v1824 = vadd.f32 %v1518, %v1706
        %v1825 = vadd.f32 %v1519, %v1711
        %v1826 = vadd.f32 %v1520, %v1716
        %v1827 = vadd.f32 %v1521, %v1721
        %v1828 = vadd.f32 %v1522, %v1726
        %v1829 = vadd.f32 %v1523, %v1731
        %v1830 = vadd.f32 %v1524, %v1736
        %v1831 = vadd.f32 %v1525, %v1741
        %v1832 = vadd.f32 %v1526, %v1746
        %v1833 = vadd.f32 %v1527, %v1751
        %v1834 = vadd.f32 %v1528, %v1756
        %v1835 = vadd.f32 %v1529, %v1761
        %v1836 = vadd.f32 %v1530, %v1766
        %v1837 = vadd.f32 %v1531, %v1771
        %v1838 = vadd.f32 %v1532, %v1776
        %v1839 = vadd.f32 %v1533, %v1781
        %v1840 = vadd.f32 %v1534, %v1786
        %v1841 = vadd.f32 %v1535, %v1791
        %v1842 = vadd.f32 %v1536, %v1796
        %v1843 = vadd.f32 %v1537, %v1801
        %v1844 = vadd.f32 %v1538, %v1806
        %v1845 = vadd.f32 %v1539, %v1811
        %v1846 = vld [vmem:[%s1233 + $0x2] sm:$0xff]
        %v1847 = vld [vmem:[%s1233 + $0xa] sm:$0xff]
        %v1848 = vld [vmem:[%s1233 + $0x1a] sm:$0xff]
        %v1849 = vld [vmem:[%s1233 + $0x22] sm:$0xff]
        %v1850 = vld [vmem:[%s1233 + $0x32] sm:$0xff]
        %v1851 = vld [vmem:[%s1233 + $0x3a] sm:$0xff]
        %v1852 = vld [vmem:[%s1233 + $0x4a] sm:$0xff]
        %v1853 = vld [vmem:[%s1233 + $0x52] sm:$0xff]
        %v1854 = vld [vmem:[%s1233 + $0x62] sm:$0xff]
        %v1855 = vld [vmem:[%s1233 + $0x6a] sm:$0xff]
        %v1856 = vld [vmem:[%s1233 + $0x7a] sm:$0xff]
        %v1857 = vld [vmem:[%s1233 + $0x82] sm:$0xff]
        %v1858 = vld [vmem:[%s1233 + $0x92] sm:$0xff]
        %v1859 = vld [vmem:[%s1233 + $0x9a] sm:$0xff]
        %v1860 = vld [vmem:[%s1233 + $0xaa] sm:$0xff]
        %v1861 = vld [vmem:[%s1233 + $0xb2] sm:$0xff]
        %v1862 = vld [vmem:[%s1233 + $0xc2] sm:$0xff]
        %v1863 = vld [vmem:[%s1233 + $0xca] sm:$0xff]
        %v1864 = vld [vmem:[%s1233 + $0xda] sm:$0xff]
        %v1865 = vld [vmem:[%s1233 + $0xe2] sm:$0xff]
        %v1866 = vld [vmem:[%s1233 + $0xf2] sm:$0xff]
        %v1867 = vld [vmem:[%s1233 + $0xfa] sm:$0xff]
        %v1868 = vld [vmem:[%s1233 + $0x10a] sm:$0xff]
        %v1869 = vld [vmem:[%s1233 + $0x112] sm:$0xff]
        %v1870 = vld [vmem:[%s1233 + $0x122] sm:$0xff]
        %v1871 = vld [vmem:[%s1233 + $0x12a] sm:$0xff]
        %v1872 = vld [vmem:[%s1233 + $0x13a] sm:$0xff]
        %v1873 = vld [vmem:[%s1233 + $0x142] sm:$0xff]
        %v1874 = vld [vmem:[%s1233 + $0x152] sm:$0xff]
        %v1875 = vld [vmem:[%s1233 + $0x15a] sm:$0xff]
        %v1876 = vld [vmem:[%s1233 + $0x16a] sm:$0xff]
        %v1877 = vld [vmem:[%s1233 + $0x172] sm:$0xff]
        %s1878 = scalar_lea.vmem %s173, 640
        %v1879 = vld [vmem:[%s1878] sm:$0xff]
        %v1880 = vld [vmem:[%s1878 + $0x8] sm:$0xff]
        %v1881 = vld [vmem:[%s1878 + $0x10] sm:$0xff]
        %v1882 = vld [vmem:[%s1878 + $0x18] sm:$0xff]
        %v1883 = vld [vmem:[%s1878 + $0x20] sm:$0xff]
        %v1884 = vld [vmem:[%s1878 + $0x28] sm:$0xff]
        %v1885 = vld [vmem:[%s1878 + $0x30] sm:$0xff]
        %v1886 = vld [vmem:[%s1878 + $0x38] sm:$0xff]
        %v1887 = vld [vmem:[%s1878 + $0x40] sm:$0xff]
        %v1888 = vld [vmem:[%s1878 + $0x48] sm:$0xff]
        %v1889 = vld [vmem:[%s1878 + $0x50] sm:$0xff]
        %v1890 = vld [vmem:[%s1878 + $0x58] sm:$0xff]
        %v1891 = vld [vmem:[%s1878 + $0x60] sm:$0xff]
        %v1892 = vld [vmem:[%s1878 + $0x68] sm:$0xff]
        %v1893 = vld [vmem:[%s1878 + $0x70] sm:$0xff]
        %v1894 = vld [vmem:[%s1878 + $0x78] sm:$0xff]
        %1895 = vmatprep.subr.mxu0 0.0
        %1896 = vmatpush1.msra.mxu0 %v1879
        %1897 = vmatprep.subr.mxu0 0.0
        %1898 = vmatpush1.msra.mxu0 %v1880
        %1899 = vmatprep.subr.mxu0 0.0
        %1900 = vmatpush1.msra.mxu0 %v1881
        %1901 = vmatprep.subr.mxu0 0.0
        %1902 = vmatpush1.msra.mxu0 %v1882
        %1903 = vmatprep.subr.mxu0 0.0
        %1904 = vmatpush1.msra.mxu0 %v1883
        %1905 = vmatprep.subr.mxu0 0.0
        %1906 = vmatpush1.msra.mxu0 %v1884
        %1907 = vmatprep.subr.mxu0 0.0
        %1908 = vmatpush1.msra.mxu0 %v1885
        %1909 = vmatprep.subr.mxu0 0.0
        %1910 = vmatpush1.msra.mxu0 %v1886
        %1911 = vmatprep.subr.mxu0 0.0
        %1912 = vmatpush1.msra.mxu0 %v1887
        %1913 = vmatprep.subr.mxu0 0.0
        %1914 = vmatpush1.msra.mxu0 %v1888
        %1915 = vmatprep.subr.mxu0 0.0
        %1916 = vmatpush1.msra.mxu0 %v1889
        %1917 = vmatprep.subr.mxu0 0.0
        %1918 = vmatpush1.msra.mxu0 %v1890
        %1919 = vmatprep.subr.mxu0 0.0
        %1920 = vmatpush1.msra.mxu0 %v1891
        %1921 = vmatprep.subr.mxu0 0.0
        %1922 = vmatpush1.msra.mxu0 %v1892
        %1923 = vmatprep.subr.mxu0 0.0
        %1924 = vmatpush1.msra.mxu0 %v1893
        %1925 = vmatprep.subr.mxu0 0.0
        %1926 = vmatpush1.msra.mxu0 %v1894
        %1927 = vmatprep.subr.mxu0 0.0
        %1928 = vmatpush1.msra.mxu0 0.0
        %1929 = vmatprep.subr.mxu0 0.0
        %1930 = vmatpush1.msra.mxu0 0.0
        %1931 = vmatprep.subr.mxu0 0.0
        %1932 = vmatpush1.msra.mxu0 0.0
        %1933 = vmatprep.subr.mxu0 0.0
        %1934 = vmatpush1.msra.mxu0 0.0
        %1935 = vmatprep.subr.mxu0 0.0
        %1936 = vmatpush1.msra.mxu0 0.0
        %1937 = vmatprep.subr.mxu0 0.0
        %1938 = vmatpush1.msra.mxu0 0.0
        %1939 = vmatprep.subr.mxu0 0.0
        %1940 = vmatpush1.msra.mxu0 0.0
        %1941 = vmatprep.subr.mxu0 0.0
        %1942 = vmatpush1.msra.mxu0 0.0
        %1943 = vmatprep.subr.mxu0 0.0
        %1944 = vmatpush1.msra.mxu0 0.0
        %1945 = vmatprep.subr.mxu0 0.0
        %1946 = vmatpush1.msra.mxu0 0.0
        %1947 = vmatprep.subr.mxu0 0.0
        %1948 = vmatpush1.msra.mxu0 0.0
        %1949 = vmatprep.subr.mxu0 0.0
        %1950 = vmatpush1.msra.mxu0 0.0
        %1951 = vmatprep.subr.mxu0 0.0
        %1952 = vmatpush1.msra.mxu0 0.0
        %1953 = vmatprep.subr.mxu0 0.0
        %1954 = vmatpush1.msra.mxu0 0.0
        %1955 = vmatprep.subr.mxu0 0.0
        %1956 = vmatpush1.msra.mxu0 0.0
        %1957 = vmatprep.subr.mxu0 0.0
        %1958 = vmatpush1.msra.mxu0 0.0
        %1959 = vmatprep.mubr.f32.mxu0 0.0
        %1960 = vmatmul.mubr.f32.gmra.mrb[0].mxu0 %v1846
        %v1961 = vpop.f32.mrb[0].mxu0
        %v1962 = vadd.f32 0.0, %v1961
        %v1963 = vpop.f32.mrb[0].mxu0
        %1964 = vmatprep.mubr.f32.mxu0 0.0
        %1965 = vmatmul.mubr.f32.gmra.mrb[0].mxu0 %v1847
        %v1966 = vpop.f32.mrb[0].mxu0
        %v1967 = vadd.f32 0.0, %v1966
        %v1968 = vpop.f32.mrb[0].mxu0
        %1969 = vmatprep.mubr.f32.mxu0 0.0
        %1970 = vmatmul.mubr.f32.gmra.mrb[0].mxu0 %v1848
        %v1971 = vpop.f32.mrb[0].mxu0
        %v1972 = vadd.f32 0.0, %v1971
        %v1973 = vpop.f32.mrb[0].mxu0
        %1974 = vmatprep.mubr.f32.mxu0 0.0
        %1975 = vmatmul.mubr.f32.gmra.mrb[0].mxu0 %v1849
        %v1976 = vpop.f32.mrb[0].mxu0
        %v1977 = vadd.f32 0.0, %v1976
        %v1978 = vpop.f32.mrb[0].mxu0
        %1979 = vmatprep.mubr.f32.mxu0 0.0
        %1980 = vmatmul.mubr.f32.gmra.mrb[0].mxu0 %v1850
        %v1981 = vpop.f32.mrb[0].mxu0
        %v1982 = vadd.f32 0.0, %v1981
        %v1983 = vpop.f32.mrb[0].mxu0
        %1984 = vmatprep.mubr.f32.mxu0 0.0
        %1985 = vmatmul.mubr.f32.gmra.mrb[0].mxu0 %v1851
        %v1986 = vpop.f32.mrb[0].mxu0
        %v1987 = vadd.f32 0.0, %v1986
        %v1988 = vpop.f32.mrb[0].mxu0
        %1989 = vmatprep.mubr.f32.mxu0 0.0
        %1990 = vmatmul.mubr.f32.gmra.mrb[0].mxu0 %v1852
        %v1991 = vpop.f32.mrb[0].mxu0
        %v1992 = vadd.f32 0.0, %v1991
        %v1993 = vpop.f32.mrb[0].mxu0
        %1994 = vmatprep.mubr.f32.mxu0 0.0
        %1995 = vmatmul.mubr.f32.gmra.mrb[0].mxu0 %v1853
        %v1996 = vpop.f32.mrb[0].mxu0
        %v1997 = vadd.f32 0.0, %v1996
        %v1998 = vpop.f32.mrb[0].mxu0
        %1999 = vmatprep.mubr.f32.mxu0 0.0
        %2000 = vmatmul.mubr.f32.gmra.mrb[0].mxu0 %v1854
        %v2001 = vpop.f32.mrb[0].mxu0
        %v2002 = vadd.f32 0.0, %v2001
        %v2003 = vpop.f32.mrb[0].mxu0
        %2004 = vmatprep.mubr.f32.mxu0 0.0
        %2005 = vmatmul.mubr.f32.gmra.mrb[0].mxu0 %v1855
        %v2006 = vpop.f32.mrb[0].mxu0
        %v2007 = vadd.f32 0.0, %v2006
        %v2008 = vpop.f32.mrb[0].mxu0
        %2009 = vmatprep.mubr.f32.mxu0 0.0
        %2010 = vmatmul.mubr.f32.gmra.mrb[0].mxu0 %v1856
        %v2011 = vpop.f32.mrb[0].mxu0
        %v2012 = vadd.f32 0.0, %v2011
        %v2013 = vpop.f32.mrb[0].mxu0
        %2014 = vmatprep.mubr.f32.mxu0 0.0
        %2015 = vmatmul.mubr.f32.gmra.mrb[0].mxu0 %v1857
        %v2016 = vpop.f32.mrb[0].mxu0
        %v2017 = vadd.f32 0.0, %v2016
        %v2018 = vpop.f32.mrb[0].mxu0
        %2019 = vmatprep.mubr.f32.mxu0 0.0
        %2020 = vmatmul.mubr.f32.gmra.mrb[0].mxu0 %v1858
        %v2021 = vpop.f32.mrb[0].mxu0
        %v2022 = vadd.f32 0.0, %v2021
        %v2023 = vpop.f32.mrb[0].mxu0
        %2024 = vmatprep.mubr.f32.mxu0 0.0
        %2025 = vmatmul.mubr.f32.gmra.mrb[0].mxu0 %v1859
        %v2026 = vpop.f32.mrb[0].mxu0
        %v2027 = vadd.f32 0.0, %v2026
        %v2028 = vpop.f32.mrb[0].mxu0
        %2029 = vmatprep.mubr.f32.mxu0 0.0
        %2030 = vmatmul.mubr.f32.gmra.mrb[0].mxu0 %v1860
        %v2031 = vpop.f32.mrb[0].mxu0
        %v2032 = vadd.f32 0.0, %v2031
        %v2033 = vpop.f32.mrb[0].mxu0
        %2034 = vmatprep.mubr.f32.mxu0 0.0
        %2035 = vmatmul.mubr.f32.gmra.mrb[0].mxu0 %v1861
        %v2036 = vpop.f32.mrb[0].mxu0
        %v2037 = vadd.f32 0.0, %v2036
        %v2038 = vpop.f32.mrb[0].mxu0
        %2039 = vmatprep.mubr.f32.mxu0 0.0
        %2040 = vmatmul.mubr.f32.gmra.mrb[0].mxu0 %v1862
        %v2041 = vpop.f32.mrb[0].mxu0
        %v2042 = vadd.f32 0.0, %v2041
        %v2043 = vpop.f32.mrb[0].mxu0
        %2044 = vmatprep.mubr.f32.mxu0 0.0
        %2045 = vmatmul.mubr.f32.gmra.mrb[0].mxu0 %v1863
        %v2046 = vpop.f32.mrb[0].mxu0
        %v2047 = vadd.f32 0.0, %v2046
        %v2048 = vpop.f32.mrb[0].mxu0
        %2049 = vmatprep.mubr.f32.mxu0 0.0
        %2050 = vmatmul.mubr.f32.gmra.mrb[0].mxu0 %v1864
        %v2051 = vpop.f32.mrb[0].mxu0
        %v2052 = vadd.f32 0.0, %v2051
        %v2053 = vpop.f32.mrb[0].mxu0
        %2054 = vmatprep.mubr.f32.mxu0 0.0
        %2055 = vmatmul.mubr.f32.gmra.mrb[0].mxu0 %v1865
        %v2056 = vpop.f32.mrb[0].mxu0
        %v2057 = vadd.f32 0.0, %v2056
        %v2058 = vpop.f32.mrb[0].mxu0
        %2059 = vmatprep.mubr.f32.mxu0 0.0
        %2060 = vmatmul.mubr.f32.gmra.mrb[0].mxu0 %v1866
        %v2061 = vpop.f32.mrb[0].mxu0
        %v2062 = vadd.f32 0.0, %v2061
        %v2063 = vpop.f32.mrb[0].mxu0
        %2064 = vmatprep.mubr.f32.mxu0 0.0
        %2065 = vmatmul.mubr.f32.gmra.mrb[0].mxu0 %v1867
        %v2066 = vpop.f32.mrb[0].mxu0
        %v2067 = vadd.f32 0.0, %v2066
        %v2068 = vpop.f32.mrb[0].mxu0
        %2069 = vmatprep.mubr.f32.mxu0 0.0
        %2070 = vmatmul.mubr.f32.gmra.mrb[0].mxu0 %v1868
        %v2071 = vpop.f32.mrb[0].mxu0
        %v2072 = vadd.f32 0.0, %v2071
        %v2073 = vpop.f32.mrb[0].mxu0
        %2074 = vmatprep.mubr.f32.mxu0 0.0
        %2075 = vmatmul.mubr.f32.gmra.mrb[0].mxu0 %v1869
        %v2076 = vpop.f32.mrb[0].mxu0
        %v2077 = vadd.f32 0.0, %v2076
        %v2078 = vpop.f32.mrb[0].mxu0
        %2079 = vmatprep.mubr.f32.mxu0 0.0
        %2080 = vmatmul.mubr.f32.gmra.mrb[0].mxu0 %v1870
        %v2081 = vpop.f32.mrb[0].mxu0
        %v2082 = vadd.f32 0.0, %v2081
        %v2083 = vpop.f32.mrb[0].mxu0
        %2084 = vmatprep.mubr.f32.mxu0 0.0
        %2085 = vmatmul.mubr.f32.gmra.mrb[0].mxu0 %v1871
        %v2086 = vpop.f32.mrb[0].mxu0
        %v2087 = vadd.f32 0.0, %v2086
        %v2088 = vpop.f32.mrb[0].mxu0
        %2089 = vmatprep.mubr.f32.mxu0 0.0
        %2090 = vmatmul.mubr.f32.gmra.mrb[0].mxu0 %v1872
        %v2091 = vpop.f32.mrb[0].mxu0
        %v2092 = vadd.f32 0.0, %v2091
        %v2093 = vpop.f32.mrb[0].mxu0
        %2094 = vmatprep.mubr.f32.mxu0 0.0
        %2095 = vmatmul.mubr.f32.gmra.mrb[0].mxu0 %v1873
        %v2096 = vpop.f32.mrb[0].mxu0
        %v2097 = vadd.f32 0.0, %v2096
        %v2098 = vpop.f32.mrb[0].mxu0
        %2099 = vmatprep.mubr.f32.mxu0 0.0
        %2100 = vmatmul.mubr.f32.gmra.mrb[0].mxu0 %v1874
        %v2101 = vpop.f32.mrb[0].mxu0
        %v2102 = vadd.f32 0.0, %v2101
        %v2103 = vpop.f32.mrb[0].mxu0
        %2104 = vmatprep.mubr.f32.mxu0 0.0
        %2105 = vmatmul.mubr.f32.gmra.mrb[0].mxu0 %v1875
        %v2106 = vpop.f32.mrb[0].mxu0
        %v2107 = vadd.f32 0.0, %v2106
        %v2108 = vpop.f32.mrb[0].mxu0
        %2109 = vmatprep.mubr.f32.mxu0 0.0
        %2110 = vmatmul.mubr.f32.gmra.mrb[0].mxu0 %v1876
        %v2111 = vpop.f32.mrb[0].mxu0
        %v2112 = vadd.f32 0.0, %v2111
        %v2113 = vpop.f32.mrb[0].mxu0
        %2114 = vmatprep.mubr.f32.mxu0 0.0
        %2115 = vmatmul.mubr.f32.gmra.mrb[0].mxu0 %v1877
        %v2116 = vpop.f32.mrb[0].mxu0
        %v2117 = vadd.f32 0.0, %v2116
        %v2118 = vpop.f32.mrb[0].mxu0
        %2119 = vdwg.mxu0
        %v2120 = vadd.f32 %v1814, %v1962
        %v2121 = vadd.f32 %v1815, %v1967
        %v2122 = vadd.f32 %v1816, %v1972
        %v2123 = vadd.f32 %v1817, %v1977
        %v2124 = vadd.f32 %v1818, %v1982
        %v2125 = vadd.f32 %v1819, %v1987
        %v2126 = vadd.f32 %v1820, %v1992
        %v2127 = vadd.f32 %v1821, %v1997
        %v2128 = vadd.f32 %v1822, %v2002
        %v2129 = vadd.f32 %v1823, %v2007
        %v2130 = vadd.f32 %v1824, %v2012
        %v2131 = vadd.f32 %v1825, %v2017
        %v2132 = vadd.f32 %v1826, %v2022
        %v2133 = vadd.f32 %v1827, %v2027
        %v2134 = vadd.f32 %v1828, %v2032
        %v2135 = vadd.f32 %v1829, %v2037
        %v2136 = vadd.f32 %v1830, %v2042
        %v2137 = vadd.f32 %v1831, %v2047
        %v2138 = vadd.f32 %v1832, %v2052
        %v2139 = vadd.f32 %v1833, %v2057
        %v2140 = vadd.f32 %v1834, %v2062
        %v2141 = vadd.f32 %v1835, %v2067
        %v2142 = vadd.f32 %v1836, %v2072
        %v2143 = vadd.f32 %v1837, %v2077
        %v2144 = vadd.f32 %v1838, %v2082
        %v2145 = vadd.f32 %v1839, %v2087
        %v2146 = vadd.f32 %v1840, %v2092
        %v2147 = vadd.f32 %v1841, %v2097
        %v2148 = vadd.f32 %v1842, %v2102
        %v2149 = vadd.f32 %v1843, %v2107
        %v2150 = vadd.f32 %v1844, %v2112
        %v2151 = vadd.f32 %v1845, %v2117
        %s2152 = scalar_lea.vmem [#allocation2], 48
        %v2153 = vld [vmem:[%s2152] sm:$0xff]
        %v2154 = vld [vmem:[%s2152 + $0x8] sm:$0xff]
        %v2155 = vld [vmem:[%s2152 + $0x18] sm:$0xff]
        %v2156 = vld [vmem:[%s2152 + $0x20] sm:$0xff]
        %v2157 = vld [vmem:[%s2152 + $0x30] sm:$0xff]
        %v2158 = vld [vmem:[%s2152 + $0x38] sm:$0xff]
        %v2159 = vld [vmem:[%s2152 + $0x48] sm:$0xff]
        %v2160 = vld [vmem:[%s2152 + $0x50] sm:$0xff]
        %v2161 = vld [vmem:[%s2152 + $0x60] sm:$0xff]
        %v2162 = vld [vmem:[%s2152 + $0x68] sm:$0xff]
        %v2163 = vld [vmem:[%s2152 + $0x78] sm:$0xff]
        %v2164 = vld [vmem:[%s2152 + $0x80] sm:$0xff]
        %v2165 = vld [vmem:[%s2152 + $0x90] sm:$0xff]
        %v2166 = vld [vmem:[%s2152 + $0x98] sm:$0xff]
        %v2167 = vld [vmem:[%s2152 + $0xa8] sm:$0xff]
        %v2168 = vld [vmem:[%s2152 + $0xb0] sm:$0xff]
        %v2169 = vld [vmem:[%s2152 + $0xc0] sm:$0xff]
        %v2170 = vld [vmem:[%s2152 + $0xc8] sm:$0xff]
        %v2171 = vld [vmem:[%s2152 + $0xd8] sm:$0xff]
        %v2172 = vld [vmem:[%s2152 + $0xe0] sm:$0xff]
        %v2173 = vld [vmem:[%s2152 + $0xf0] sm:$0xff]
        %v2174 = vld [vmem:[%s2152 + $0xf8] sm:$0xff]
        %v2175 = vld [vmem:[%s2152 + $0x108] sm:$0xff]
        %v2176 = vld [vmem:[%s2152 + $0x110] sm:$0xff]
        %v2177 = vld [vmem:[%s2152 + $0x120] sm:$0xff]
        %v2178 = vld [vmem:[%s2152 + $0x128] sm:$0xff]
        %v2179 = vld [vmem:[%s2152 + $0x138] sm:$0xff]
        %v2180 = vld [vmem:[%s2152 + $0x140] sm:$0xff]
        %v2181 = vld [vmem:[%s2152 + $0x150] sm:$0xff]
        %v2182 = vld [vmem:[%s2152 + $0x158] sm:$0xff]
        %v2183 = vld [vmem:[%s2152 + $0x168] sm:$0xff]
        %v2184 = vld [vmem:[%s2152 + $0x170] sm:$0xff]
        %s2185 = scalar_lea.vmem %s173, 768
        %v2186 = vld [vmem:[%s2185] sm:$0xff]
        %v2187 = vld [vmem:[%s2185 + $0x8] sm:$0xff]
        %v2188 = vld [vmem:[%s2185 + $0x10] sm:$0xff]
        %v2189 = vld [vmem:[%s2185 + $0x18] sm:$0xff]
        %v2190 = vld [vmem:[%s2185 + $0x20] sm:$0xff]
        %v2191 = vld [vmem:[%s2185 + $0x28] sm:$0xff]
        %v2192 = vld [vmem:[%s2185 + $0x30] sm:$0xff]
        %v2193 = vld [vmem:[%s2185 + $0x38] sm:$0xff]
        %v2194 = vld [vmem:[%s2185 + $0x40] sm:$0xff]
        %v2195 = vld [vmem:[%s2185 + $0x48] sm:$0xff]
        %v2196 = vld [vmem:[%s2185 + $0x50] sm:$0xff]
        %v2197 = vld [vmem:[%s2185 + $0x58] sm:$0xff]
        %v2198 = vld [vmem:[%s2185 + $0x60] sm:$0xff]
        %v2199 = vld [vmem:[%s2185 + $0x68] sm:$0xff]
        %v2200 = vld [vmem:[%s2185 + $0x70] sm:$0xff]
        %v2201 = vld [vmem:[%s2185 + $0x78] sm:$0xff]
        %2202 = vmatprep.subr.mxu0 0.0
        %2203 = vmatpush1.msra.mxu0 %v2186
        %2204 = vmatprep.subr.mxu0 0.0
        %2205 = vmatpush1.msra.mxu0 %v2187
        %2206 = vmatprep.subr.mxu0 0.0
        %2207 = vmatpush1.msra.mxu0 %v2188
        %2208 = vmatprep.subr.mxu0 0.0
        %2209 = vmatpush1.msra.mxu0 %v2189
        %2210 = vmatprep.subr.mxu0 0.0
        %2211 = vmatpush1.msra.mxu0 %v2190
        %2212 = vmatprep.subr.mxu0 0.0
        %2213 = vmatpush1.msra.mxu0 %v2191
        %2214 = vmatprep.subr.mxu0 0.0
        %2215 = vmatpush1.msra.mxu0 %v2192
        %2216 = vmatprep.subr.mxu0 0.0
        %2217 = vmatpush1.msra.mxu0 %v2193
        %2218 = vmatprep.subr.mxu0 0.0
        %2219 = vmatpush1.msra.mxu0 %v2194
        %2220 = vmatprep.subr.mxu0 0.0
        %2221 = vmatpush1.msra.mxu0 %v2195
        %2222 = vmatprep.subr.mxu0 0.0
        %2223 = vmatpush1.msra.mxu0 %v2196
        %2224 = vmatprep.subr.mxu0 0.0
        %2225 = vmatpush1.msra.mxu0 %v2197
        %2226 = vmatprep.subr.mxu0 0.0
        %2227 = vmatpush1.msra.mxu0 %v2198
        %2228 = vmatprep.subr.mxu0 0.0
        %2229 = vmatpush1.msra.mxu0 %v2199
        %2230 = vmatprep.subr.mxu0 0.0
        %2231 = vmatpush1.msra.mxu0 %v2200
        %2232 = vmatprep.subr.mxu0 0.0
        %2233 = vmatpush1.msra.mxu0 %v2201
        %2234 = vmatprep.subr.mxu0 0.0
        %2235 = vmatpush1.msra.mxu0 0.0
        %2236 = vmatprep.subr.mxu0 0.0
        %2237 = vmatpush1.msra.mxu0 0.0
        %2238 = vmatprep.subr.mxu0 0.0
        %2239 = vmatpush1.msra.mxu0 0.0
        %2240 = vmatprep.subr.mxu0 0.0
        %2241 = vmatpush1.msra.mxu0 0.0
        %2242 = vmatprep.subr.mxu0 0.0
        %2243 = vmatpush1.msra.mxu0 0.0
        %2244 = vmatprep.subr.mxu0 0.0
        %2245 = vmatpush1.msra.mxu0 0.0
        %2246 = vmatprep.subr.mxu0 0.0
        %2247 = vmatpush1.msra.mxu0 0.0
        %2248 = vmatprep.subr.mxu0 0.0
        %2249 = vmatpush1.msra.mxu0 0.0
        %2250 = vmatprep.subr.mxu0 0.0
        %2251 = vmatpush1.msra.mxu0 0.0
        %2252 = vmatprep.subr.mxu0 0.0
        %2253 = vmatpush1.msra.mxu0 0.0
        %2254 = vmatprep.subr.mxu0 0.0
        %2255 = vmatpush1.msra.mxu0 0.0
        %2256 = vmatprep.subr.mxu0 0.0
        %2257 = vmatpush1.msra.mxu0 0.0
        %2258 = vmatprep.subr.mxu0 0.0
        %2259 = vmatpush1.msra.mxu0 0.0
        %2260 = vmatprep.subr.mxu0 0.0
        %2261 = vmatpush1.msra.mxu0 0.0
        %2262 = vmatprep.subr.mxu0 0.0
        %2263 = vmatpush1.msra.mxu0 0.0
        %2264 = vmatprep.subr.mxu0 0.0
        %2265 = vmatpush1.msra.mxu0 0.0
        %2266 = vmatprep.mubr.f32.mxu0 0.0
        %2267 = vmatmul.mubr.f32.gmra.mrb[0].mxu0 %v2153
        %v2268 = vpop.f32.mrb[0].mxu0
        %v2269 = vadd.f32 0.0, %v2268
        %v2270 = vpop.f32.mrb[0].mxu0
        %2271 = vmatprep.mubr.f32.mxu0 0.0
        %2272 = vmatmul.mubr.f32.gmra.mrb[0].mxu0 %v2154
        %v2273 = vpop.f32.mrb[0].mxu0
        %v2274 = vadd.f32 0.0, %v2273
        %v2275 = vpop.f32.mrb[0].mxu0
        %2276 = vmatprep.mubr.f32.mxu0 0.0
        %2277 = vmatmul.mubr.f32.gmra.mrb[0].mxu0 %v2155
        %v2278 = vpop.f32.mrb[0].mxu0
        %v2279 = vadd.f32 0.0, %v2278
        %v2280 = vpop.f32.mrb[0].mxu0
        %2281 = vmatprep.mubr.f32.mxu0 0.0
        %2282 = vmatmul.mubr.f32.gmra.mrb[0].mxu0 %v2156
        %v2283 = vpop.f32.mrb[0].mxu0
        %v2284 = vadd.f32 0.0, %v2283
        %v2285 = vpop.f32.mrb[0].mxu0
        %2286 = vmatprep.mubr.f32.mxu0 0.0
        %2287 = vmatmul.mubr.f32.gmra.mrb[0].mxu0 %v2157
        %v2288 = vpop.f32.mrb[0].mxu0
        %v2289 = vadd.f32 0.0, %v2288
        %v2290 = vpop.f32.mrb[0].mxu0
        %2291 = vmatprep.mubr.f32.mxu0 0.0
        %2292 = vmatmul.mubr.f32.gmra.mrb[0].mxu0 %v2158
        %v2293 = vpop.f32.mrb[0].mxu0
        %v2294 = vadd.f32 0.0, %v2293
        %v2295 = vpop.f32.mrb[0].mxu0
        %2296 = vmatprep.mubr.f32.mxu0 0.0
        %2297 = vmatmul.mubr.f32.gmra.mrb[0].mxu0 %v2159
        %v2298 = vpop.f32.mrb[0].mxu0
        %v2299 = vadd.f32 0.0, %v2298
        %v2300 = vpop.f32.mrb[0].mxu0
        %2301 = vmatprep.mubr.f32.mxu0 0.0
        %2302 = vmatmul.mubr.f32.gmra.mrb[0].mxu0 %v2160
        %v2303 = vpop.f32.mrb[0].mxu0
        %v2304 = vadd.f32 0.0, %v2303
        %v2305 = vpop.f32.mrb[0].mxu0
        %2306 = vmatprep.mubr.f32.mxu0 0.0
        %2307 = vmatmul.mubr.f32.gmra.mrb[0].mxu0 %v2161
        %v2308 = vpop.f32.mrb[0].mxu0
        %v2309 = vadd.f32 0.0, %v2308
        %v2310 = vpop.f32.mrb[0].mxu0
        %2311 = vmatprep.mubr.f32.mxu0 0.0
        %2312 = vmatmul.mubr.f32.gmra.mrb[0].mxu0 %v2162
        %v2313 = vpop.f32.mrb[0].mxu0
        %v2314 = vadd.f32 0.0, %v2313
        %v2315 = vpop.f32.mrb[0].mxu0
        %2316 = vmatprep.mubr.f32.mxu0 0.0
        %2317 = vmatmul.mubr.f32.gmra.mrb[0].mxu0 %v2163
        %v2318 = vpop.f32.mrb[0].mxu0
        %v2319 = vadd.f32 0.0, %v2318
        %v2320 = vpop.f32.mrb[0].mxu0
        %2321 = vmatprep.mubr.f32.mxu0 0.0
        %2322 = vmatmul.mubr.f32.gmra.mrb[0].mxu0 %v2164
        %v2323 = vpop.f32.mrb[0].mxu0
        %v2324 = vadd.f32 0.0, %v2323
        %v2325 = vpop.f32.mrb[0].mxu0
        %2326 = vmatprep.mubr.f32.mxu0 0.0
        %2327 = vmatmul.mubr.f32.gmra.mrb[0].mxu0 %v2165
        %v2328 = vpop.f32.mrb[0].mxu0
        %v2329 = vadd.f32 0.0, %v2328
        %v2330 = vpop.f32.mrb[0].mxu0
        %2331 = vmatprep.mubr.f32.mxu0 0.0
        %2332 = vmatmul.mubr.f32.gmra.mrb[0].mxu0 %v2166
        %v2333 = vpop.f32.mrb[0].mxu0
        %v2334 = vadd.f32 0.0, %v2333
        %v2335 = vpop.f32.mrb[0].mxu0
        %2336 = vmatprep.mubr.f32.mxu0 0.0
        %2337 = vmatmul.mubr.f32.gmra.mrb[0].mxu0 %v2167
        %v2338 = vpop.f32.mrb[0].mxu0
        %v2339 = vadd.f32 0.0, %v2338
        %v2340 = vpop.f32.mrb[0].mxu0
        %2341 = vmatprep.mubr.f32.mxu0 0.0
        %2342 = vmatmul.mubr.f32.gmra.mrb[0].mxu0 %v2168
        %v2343 = vpop.f32.mrb[0].mxu0
        %v2344 = vadd.f32 0.0, %v2343
        %v2345 = vpop.f32.mrb[0].mxu0
        %2346 = vmatprep.mubr.f32.mxu0 0.0
        %2347 = vmatmul.mubr.f32.gmra.mrb[0].mxu0 %v2169
        %v2348 = vpop.f32.mrb[0].mxu0
        %v2349 = vadd.f32 0.0, %v2348
        %v2350 = vpop.f32.mrb[0].mxu0
        %2351 = vmatprep.mubr.f32.mxu0 0.0
        %2352 = vmatmul.mubr.f32.gmra.mrb[0].mxu0 %v2170
        %v2353 = vpop.f32.mrb[0].mxu0
        %v2354 = vadd.f32 0.0, %v2353
        %v2355 = vpop.f32.mrb[0].mxu0
        %2356 = vmatprep.mubr.f32.mxu0 0.0
        %2357 = vmatmul.mubr.f32.gmra.mrb[0].mxu0 %v2171
        %v2358 = vpop.f32.mrb[0].mxu0
        %v2359 = vadd.f32 0.0, %v2358
        %v2360 = vpop.f32.mrb[0].mxu0
        %2361 = vmatprep.mubr.f32.mxu0 0.0
        %2362 = vmatmul.mubr.f32.gmra.mrb[0].mxu0 %v2172
        %v2363 = vpop.f32.mrb[0].mxu0
        %v2364 = vadd.f32 0.0, %v2363
        %v2365 = vpop.f32.mrb[0].mxu0
        %2366 = vmatprep.mubr.f32.mxu0 0.0
        %2367 = vmatmul.mubr.f32.gmra.mrb[0].mxu0 %v2173
        %v2368 = vpop.f32.mrb[0].mxu0
        %v2369 = vadd.f32 0.0, %v2368
        %v2370 = vpop.f32.mrb[0].mxu0
        %2371 = vmatprep.mubr.f32.mxu0 0.0
        %2372 = vmatmul.mubr.f32.gmra.mrb[0].mxu0 %v2174
        %v2373 = vpop.f32.mrb[0].mxu0
        %v2374 = vadd.f32 0.0, %v2373
        %v2375 = vpop.f32.mrb[0].mxu0
        %2376 = vmatprep.mubr.f32.mxu0 0.0
        %2377 = vmatmul.mubr.f32.gmra.mrb[0].mxu0 %v2175
        %v2378 = vpop.f32.mrb[0].mxu0
        %v2379 = vadd.f32 0.0, %v2378
        %v2380 = vpop.f32.mrb[0].mxu0
        %2381 = vmatprep.mubr.f32.mxu0 0.0
        %2382 = vmatmul.mubr.f32.gmra.mrb[0].mxu0 %v2176
        %v2383 = vpop.f32.mrb[0].mxu0
        %v2384 = vadd.f32 0.0, %v2383
        %v2385 = vpop.f32.mrb[0].mxu0
        %2386 = vmatprep.mubr.f32.mxu0 0.0
        %2387 = vmatmul.mubr.f32.gmra.mrb[0].mxu0 %v2177
        %v2388 = vpop.f32.mrb[0].mxu0
        %v2389 = vadd.f32 0.0, %v2388
        %v2390 = vpop.f32.mrb[0].mxu0
        %2391 = vmatprep.mubr.f32.mxu0 0.0
        %2392 = vmatmul.mubr.f32.gmra.mrb[0].mxu0 %v2178
        %v2393 = vpop.f32.mrb[0].mxu0
        %v2394 = vadd.f32 0.0, %v2393
        %v2395 = vpop.f32.mrb[0].mxu0
        %2396 = vmatprep.mubr.f32.mxu0 0.0
        %2397 = vmatmul.mubr.f32.gmra.mrb[0].mxu0 %v2179
        %v2398 = vpop.f32.mrb[0].mxu0
        %v2399 = vadd.f32 0.0, %v2398
        %v2400 = vpop.f32.mrb[0].mxu0
        %2401 = vmatprep.mubr.f32.mxu0 0.0
        %2402 = vmatmul.mubr.f32.gmra.mrb[0].mxu0 %v2180
        %v2403 = vpop.f32.mrb[0].mxu0
        %v2404 = vadd.f32 0.0, %v2403
        %v2405 = vpop.f32.mrb[0].mxu0
        %2406 = vmatprep.mubr.f32.mxu0 0.0
        %2407 = vmatmul.mubr.f32.gmra.mrb[0].mxu0 %v2181
        %v2408 = vpop.f32.mrb[0].mxu0
        %v2409 = vadd.f32 0.0, %v2408
        %v2410 = vpop.f32.mrb[0].mxu0
        %2411 = vmatprep.mubr.f32.mxu0 0.0
        %2412 = vmatmul.mubr.f32.gmra.mrb[0].mxu0 %v2182
        %v2413 = vpop.f32.mrb[0].mxu0
        %v2414 = vadd.f32 0.0, %v2413
        %v2415 = vpop.f32.mrb[0].mxu0
        %2416 = vmatprep.mubr.f32.mxu0 0.0
        %2417 = vmatmul.mubr.f32.gmra.mrb[0].mxu0 %v2183
        %v2418 = vpop.f32.mrb[0].mxu0
        %v2419 = vadd.f32 0.0, %v2418
        %v2420 = vpop.f32.mrb[0].mxu0
        %2421 = vmatprep.mubr.f32.mxu0 0.0
        %2422 = vmatmul.mubr.f32.gmra.mrb[0].mxu0 %v2184
        %v2423 = vpop.f32.mrb[0].mxu0
        %v2424 = vadd.f32 0.0, %v2423
        %v2425 = vpop.f32.mrb[0].mxu0
        %2426 = vdwg.mxu0
        %v2427 = vadd.f32 %v2120, %v2269
        %v2428 = vadd.f32 %v2121, %v2274
        %v2429 = vadd.f32 %v2122, %v2279
        %v2430 = vadd.f32 %v2123, %v2284
        %v2431 = vadd.f32 %v2124, %v2289
        %v2432 = vadd.f32 %v2125, %v2294
        %v2433 = vadd.f32 %v2126, %v2299
        %v2434 = vadd.f32 %v2127, %v2304
        %v2435 = vadd.f32 %v2128, %v2309
        %v2436 = vadd.f32 %v2129, %v2314
        %v2437 = vadd.f32 %v2130, %v2319
        %v2438 = vadd.f32 %v2131, %v2324
        %v2439 = vadd.f32 %v2132, %v2329
        %v2440 = vadd.f32 %v2133, %v2334
        %v2441 = vadd.f32 %v2134, %v2339
        %v2442 = vadd.f32 %v2135, %v2344
        %v2443 = vadd.f32 %v2136, %v2349
        %v2444 = vadd.f32 %v2137, %v2354
        %v2445 = vadd.f32 %v2138, %v2359
        %v2446 = vadd.f32 %v2139, %v2364
        %v2447 = vadd.f32 %v2140, %v2369
        %v2448 = vadd.f32 %v2141, %v2374
        %v2449 = vadd.f32 %v2142, %v2379
        %v2450 = vadd.f32 %v2143, %v2384
        %v2451 = vadd.f32 %v2144, %v2389
        %v2452 = vadd.f32 %v2145, %v2394
        %v2453 = vadd.f32 %v2146, %v2399
        %v2454 = vadd.f32 %v2147, %v2404
        %v2455 = vadd.f32 %v2148, %v2409
        %v2456 = vadd.f32 %v2149, %v2414
        %v2457 = vadd.f32 %v2150, %v2419
        %v2458 = vadd.f32 %v2151, %v2424
        %v2459 = vld [vmem:[%s2152 + $0x1] sm:$0xff]
        %v2460 = vld [vmem:[%s2152 + $0x9] sm:$0xff]
        %v2461 = vld [vmem:[%s2152 + $0x19] sm:$0xff]
        %v2462 = vld [vmem:[%s2152 + $0x21] sm:$0xff]
        %v2463 = vld [vmem:[%s2152 + $0x31] sm:$0xff]
        %v2464 = vld [vmem:[%s2152 + $0x39] sm:$0xff]
        %v2465 = vld [vmem:[%s2152 + $0x49] sm:$0xff]
        %v2466 = vld [vmem:[%s2152 + $0x51] sm:$0xff]
        %v2467 = vld [vmem:[%s2152 + $0x61] sm:$0xff]
        %v2468 = vld [vmem:[%s2152 + $0x69] sm:$0xff]
        %v2469 = vld [vmem:[%s2152 + $0x79] sm:$0xff]
        %v2470 = vld [vmem:[%s2152 + $0x81] sm:$0xff]
        %v2471 = vld [vmem:[%s2152 + $0x91] sm:$0xff]
        %v2472 = vld [vmem:[%s2152 + $0x99] sm:$0xff]
        %v2473 = vld [vmem:[%s2152 + $0xa9] sm:$0xff]
        %v2474 = vld [vmem:[%s2152 + $0xb1] sm:$0xff]
        %v2475 = vld [vmem:[%s2152 + $0xc1] sm:$0xff]
        %v2476 = vld [vmem:[%s2152 + $0xc9] sm:$0xff]
        %v2477 = vld [vmem:[%s2152 + $0xd9] sm:$0xff]
        %v2478 = vld [vmem:[%s2152 + $0xe1] sm:$0xff]
        %v2479 = vld [vmem:[%s2152 + $0xf1] sm:$0xff]
        %v2480 = vld [vmem:[%s2152 + $0xf9] sm:$0xff]
        %v2481 = vld [vmem:[%s2152 + $0x109] sm:$0xff]
        %v2482 = vld [vmem:[%s2152 + $0x111] sm:$0xff]
        %v2483 = vld [vmem:[%s2152 + $0x121] sm:$0xff]
        %v2484 = vld [vmem:[%s2152 + $0x129] sm:$0xff]
        %v2485 = vld [vmem:[%s2152 + $0x139] sm:$0xff]
        %v2486 = vld [vmem:[%s2152 + $0x141] sm:$0xff]
        %v2487 = vld [vmem:[%s2152 + $0x151] sm:$0xff]
        %v2488 = vld [vmem:[%s2152 + $0x159] sm:$0xff]
        %v2489 = vld [vmem:[%s2152 + $0x169] sm:$0xff]
        %v2490 = vld [vmem:[%s2152 + $0x171] sm:$0xff]
        %s2491 = scalar_lea.vmem %s173, 896
        %v2492 = vld [vmem:[%s2491] sm:$0xff]
        %v2493 = vld [vmem:[%s2491 + $0x8] sm:$0xff]
        %v2494 = vld [vmem:[%s2491 + $0x10] sm:$0xff]
        %v2495 = vld [vmem:[%s2491 + $0x18] sm:$0xff]
        %v2496 = vld [vmem:[%s2491 + $0x20] sm:$0xff]
        %v2497 = vld [vmem:[%s2491 + $0x28] sm:$0xff]
        %v2498 = vld [vmem:[%s2491 + $0x30] sm:$0xff]
        %v2499 = vld [vmem:[%s2491 + $0x38] sm:$0xff]
        %v2500 = vld [vmem:[%s2491 + $0x40] sm:$0xff]
        %v2501 = vld [vmem:[%s2491 + $0x48] sm:$0xff]
        %v2502 = vld [vmem:[%s2491 + $0x50] sm:$0xff]
        %v2503 = vld [vmem:[%s2491 + $0x58] sm:$0xff]
        %v2504 = vld [vmem:[%s2491 + $0x60] sm:$0xff]
        %v2505 = vld [vmem:[%s2491 + $0x68] sm:$0xff]
        %v2506 = vld [vmem:[%s2491 + $0x70] sm:$0xff]
        %v2507 = vld [vmem:[%s2491 + $0x78] sm:$0xff]
        %2508 = vmatprep.subr.mxu0 0.0
        %2509 = vmatpush1.msra.mxu0 %v2492
        %2510 = vmatprep.subr.mxu0 0.0
        %2511 = vmatpush1.msra.mxu0 %v2493
        %2512 = vmatprep.subr.mxu0 0.0
        %2513 = vmatpush1.msra.mxu0 %v2494
        %2514 = vmatprep.subr.mxu0 0.0
        %2515 = vmatpush1.msra.mxu0 %v2495
        %2516 = vmatprep.subr.mxu0 0.0
        %2517 = vmatpush1.msra.mxu0 %v2496
        %2518 = vmatprep.subr.mxu0 0.0
        %2519 = vmatpush1.msra.mxu0 %v2497
        %2520 = vmatprep.subr.mxu0 0.0
        %2521 = vmatpush1.msra.mxu0 %v2498
        %2522 = vmatprep.subr.mxu0 0.0
        %2523 = vmatpush1.msra.mxu0 %v2499
        %2524 = vmatprep.subr.mxu0 0.0
        %2525 = vmatpush1.msra.mxu0 %v2500
        %2526 = vmatprep.subr.mxu0 0.0
        %2527 = vmatpush1.msra.mxu0 %v2501
        %2528 = vmatprep.subr.mxu0 0.0
        %2529 = vmatpush1.msra.mxu0 %v2502
        %2530 = vmatprep.subr.mxu0 0.0
        %2531 = vmatpush1.msra.mxu0 %v2503
        %2532 = vmatprep.subr.mxu0 0.0
        %2533 = vmatpush1.msra.mxu0 %v2504
        %2534 = vmatprep.subr.mxu0 0.0
        %2535 = vmatpush1.msra.mxu0 %v2505
        %2536 = vmatprep.subr.mxu0 0.0
        %2537 = vmatpush1.msra.mxu0 %v2506
        %2538 = vmatprep.subr.mxu0 0.0
        %2539 = vmatpush1.msra.mxu0 %v2507
        %2540 = vmatprep.subr.mxu0 0.0
        %2541 = vmatpush1.msra.mxu0 0.0
        %2542 = vmatprep.subr.mxu0 0.0
        %2543 = vmatpush1.msra.mxu0 0.0
        %2544 = vmatprep.subr.mxu0 0.0
        %2545 = vmatpush1.msra.mxu0 0.0
        %2546 = vmatprep.subr.mxu0 0.0
        %2547 = vmatpush1.msra.mxu0 0.0
        %2548 = vmatprep.subr.mxu0 0.0
        %2549 = vmatpush1.msra.mxu0 0.0
        %2550 = vmatprep.subr.mxu0 0.0
        %2551 = vmatpush1.msra.mxu0 0.0
        %2552 = vmatprep.subr.mxu0 0.0
        %2553 = vmatpush1.msra.mxu0 0.0
        %2554 = vmatprep.subr.mxu0 0.0
        %2555 = vmatpush1.msra.mxu0 0.0
        %2556 = vmatprep.subr.mxu0 0.0
        %2557 = vmatpush1.msra.mxu0 0.0
        %2558 = vmatprep.subr.mxu0 0.0
        %2559 = vmatpush1.msra.mxu0 0.0
        %2560 = vmatprep.subr.mxu0 0.0
        %2561 = vmatpush1.msra.mxu0 0.0
        %2562 = vmatprep.subr.mxu0 0.0
        %2563 = vmatpush1.msra.mxu0 0.0
        %2564 = vmatprep.subr.mxu0 0.0
        %2565 = vmatpush1.msra.mxu0 0.0
        %2566 = vmatprep.subr.mxu0 0.0
        %2567 = vmatpush1.msra.mxu0 0.0
        %2568 = vmatprep.subr.mxu0 0.0
        %2569 = vmatpush1.msra.mxu0 0.0
        %2570 = vmatprep.subr.mxu0 0.0
        %2571 = vmatpush1.msra.mxu0 0.0
        %2572 = vmatprep.mubr.f32.mxu0 0.0
        %2573 = vmatmul.mubr.f32.gmra.mrb[0].mxu0 %v2459
        %v2574 = vpop.f32.mrb[0].mxu0
        %v2575 = vadd.f32 0.0, %v2574
        %v2576 = vpop.f32.mrb[0].mxu0
        %2577 = vmatprep.mubr.f32.mxu0 0.0
        %2578 = vmatmul.mubr.f32.gmra.mrb[0].mxu0 %v2460
        %v2579 = vpop.f32.mrb[0].mxu0
        %v2580 = vadd.f32 0.0, %v2579
        %v2581 = vpop.f32.mrb[0].mxu0
        %2582 = vmatprep.mubr.f32.mxu0 0.0
        %2583 = vmatmul.mubr.f32.gmra.mrb[0].mxu0 %v2461
        %v2584 = vpop.f32.mrb[0].mxu0
        %v2585 = vadd.f32 0.0, %v2584
        %v2586 = vpop.f32.mrb[0].mxu0
        %2587 = vmatprep.mubr.f32.mxu0 0.0
        %2588 = vmatmul.mubr.f32.gmra.mrb[0].mxu0 %v2462
        %v2589 = vpop.f32.mrb[0].mxu0
        %v2590 = vadd.f32 0.0, %v2589
        %v2591 = vpop.f32.mrb[0].mxu0
        %2592 = vmatprep.mubr.f32.mxu0 0.0
        %2593 = vmatmul.mubr.f32.gmra.mrb[0].mxu0 %v2463
        %v2594 = vpop.f32.mrb[0].mxu0
        %v2595 = vadd.f32 0.0, %v2594
        %v2596 = vpop.f32.mrb[0].mxu0
        %2597 = vmatprep.mubr.f32.mxu0 0.0
        %2598 = vmatmul.mubr.f32.gmra.mrb[0].mxu0 %v2464
        %v2599 = vpop.f32.mrb[0].mxu0
        %v2600 = vadd.f32 0.0, %v2599
        %v2601 = vpop.f32.mrb[0].mxu0
        %2602 = vmatprep.mubr.f32.mxu0 0.0
        %2603 = vmatmul.mubr.f32.gmra.mrb[0].mxu0 %v2465
        %v2604 = vpop.f32.mrb[0].mxu0
        %v2605 = vadd.f32 0.0, %v2604
        %v2606 = vpop.f32.mrb[0].mxu0
        %2607 = vmatprep.mubr.f32.mxu0 0.0
        %2608 = vmatmul.mubr.f32.gmra.mrb[0].mxu0 %v2466
        %v2609 = vpop.f32.mrb[0].mxu0
        %v2610 = vadd.f32 0.0, %v2609
        %v2611 = vpop.f32.mrb[0].mxu0
        %2612 = vmatprep.mubr.f32.mxu0 0.0
        %2613 = vmatmul.mubr.f32.gmra.mrb[0].mxu0 %v2467
        %v2614 = vpop.f32.mrb[0].mxu0
        %v2615 = vadd.f32 0.0, %v2614
        %v2616 = vpop.f32.mrb[0].mxu0
        %2617 = vmatprep.mubr.f32.mxu0 0.0
        %2618 = vmatmul.mubr.f32.gmra.mrb[0].mxu0 %v2468
        %v2619 = vpop.f32.mrb[0].mxu0
        %v2620 = vadd.f32 0.0, %v2619
        %v2621 = vpop.f32.mrb[0].mxu0
        %2622 = vmatprep.mubr.f32.mxu0 0.0
        %2623 = vmatmul.mubr.f32.gmra.mrb[0].mxu0 %v2469
        %v2624 = vpop.f32.mrb[0].mxu0
        %v2625 = vadd.f32 0.0, %v2624
        %v2626 = vpop.f32.mrb[0].mxu0
        %2627 = vmatprep.mubr.f32.mxu0 0.0
        %2628 = vmatmul.mubr.f32.gmra.mrb[0].mxu0 %v2470
        %v2629 = vpop.f32.mrb[0].mxu0
        %v2630 = vadd.f32 0.0, %v2629
        %v2631 = vpop.f32.mrb[0].mxu0
        %2632 = vmatprep.mubr.f32.mxu0 0.0
        %2633 = vmatmul.mubr.f32.gmra.mrb[0].mxu0 %v2471
        %v2634 = vpop.f32.mrb[0].mxu0
        %v2635 = vadd.f32 0.0, %v2634
        %v2636 = vpop.f32.mrb[0].mxu0
        %2637 = vmatprep.mubr.f32.mxu0 0.0
        %2638 = vmatmul.mubr.f32.gmra.mrb[0].mxu0 %v2472
        %v2639 = vpop.f32.mrb[0].mxu0
        %v2640 = vadd.f32 0.0, %v2639
        %v2641 = vpop.f32.mrb[0].mxu0
        %2642 = vmatprep.mubr.f32.mxu0 0.0
        %2643 = vmatmul.mubr.f32.gmra.mrb[0].mxu0 %v2473
        %v2644 = vpop.f32.mrb[0].mxu0
        %v2645 = vadd.f32 0.0, %v2644
        %v2646 = vpop.f32.mrb[0].mxu0
        %2647 = vmatprep.mubr.f32.mxu0 0.0
        %2648 = vmatmul.mubr.f32.gmra.mrb[0].mxu0 %v2474
        %v2649 = vpop.f32.mrb[0].mxu0
        %v2650 = vadd.f32 0.0, %v2649
        %v2651 = vpop.f32.mrb[0].mxu0
        %2652 = vmatprep.mubr.f32.mxu0 0.0
        %2653 = vmatmul.mubr.f32.gmra.mrb[0].mxu0 %v2475
        %v2654 = vpop.f32.mrb[0].mxu0
        %v2655 = vadd.f32 0.0, %v2654
        %v2656 = vpop.f32.mrb[0].mxu0
        %2657 = vmatprep.mubr.f32.mxu0 0.0
        %2658 = vmatmul.mubr.f32.gmra.mrb[0].mxu0 %v2476
        %v2659 = vpop.f32.mrb[0].mxu0
        %v2660 = vadd.f32 0.0, %v2659
        %v2661 = vpop.f32.mrb[0].mxu0
        %2662 = vmatprep.mubr.f32.mxu0 0.0
        %2663 = vmatmul.mubr.f32.gmra.mrb[0].mxu0 %v2477
        %v2664 = vpop.f32.mrb[0].mxu0
        %v2665 = vadd.f32 0.0, %v2664
        %v2666 = vpop.f32.mrb[0].mxu0
        %2667 = vmatprep.mubr.f32.mxu0 0.0
        %2668 = vmatmul.mubr.f32.gmra.mrb[0].mxu0 %v2478
        %v2669 = vpop.f32.mrb[0].mxu0
        %v2670 = vadd.f32 0.0, %v2669
        %v2671 = vpop.f32.mrb[0].mxu0
        %2672 = vmatprep.mubr.f32.mxu0 0.0
        %2673 = vmatmul.mubr.f32.gmra.mrb[0].mxu0 %v2479
        %v2674 = vpop.f32.mrb[0].mxu0
        %v2675 = vadd.f32 0.0, %v2674
        %v2676 = vpop.f32.mrb[0].mxu0
        %2677 = vmatprep.mubr.f32.mxu0 0.0
        %2678 = vmatmul.mubr.f32.gmra.mrb[0].mxu0 %v2480
        %v2679 = vpop.f32.mrb[0].mxu0
        %v2680 = vadd.f32 0.0, %v2679
        %v2681 = vpop.f32.mrb[0].mxu0
        %2682 = vmatprep.mubr.f32.mxu0 0.0
        %2683 = vmatmul.mubr.f32.gmra.mrb[0].mxu0 %v2481
        %v2684 = vpop.f32.mrb[0].mxu0
        %v2685 = vadd.f32 0.0, %v2684
        %v2686 = vpop.f32.mrb[0].mxu0
        %2687 = vmatprep.mubr.f32.mxu0 0.0
        %2688 = vmatmul.mubr.f32.gmra.mrb[0].mxu0 %v2482
        %v2689 = vpop.f32.mrb[0].mxu0
        %v2690 = vadd.f32 0.0, %v2689
        %v2691 = vpop.f32.mrb[0].mxu0
        %2692 = vmatprep.mubr.f32.mxu0 0.0
        %2693 = vmatmul.mubr.f32.gmra.mrb[0].mxu0 %v2483
        %v2694 = vpop.f32.mrb[0].mxu0
        %v2695 = vadd.f32 0.0, %v2694
        %v2696 = vpop.f32.mrb[0].mxu0
        %2697 = vmatprep.mubr.f32.mxu0 0.0
        %2698 = vmatmul.mubr.f32.gmra.mrb[0].mxu0 %v2484
        %v2699 = vpop.f32.mrb[0].mxu0
        %v2700 = vadd.f32 0.0, %v2699
        %v2701 = vpop.f32.mrb[0].mxu0
        %2702 = vmatprep.mubr.f32.mxu0 0.0
        %2703 = vmatmul.mubr.f32.gmra.mrb[0].mxu0 %v2485
        %v2704 = vpop.f32.mrb[0].mxu0
        %v2705 = vadd.f32 0.0, %v2704
        %v2706 = vpop.f32.mrb[0].mxu0
        %2707 = vmatprep.mubr.f32.mxu0 0.0
        %2708 = vmatmul.mubr.f32.gmra.mrb[0].mxu0 %v2486
        %v2709 = vpop.f32.mrb[0].mxu0
        %v2710 = vadd.f32 0.0, %v2709
        %v2711 = vpop.f32.mrb[0].mxu0
        %2712 = vmatprep.mubr.f32.mxu0 0.0
        %2713 = vmatmul.mubr.f32.gmra.mrb[0].mxu0 %v2487
        %v2714 = vpop.f32.mrb[0].mxu0
        %v2715 = vadd.f32 0.0, %v2714
        %v2716 = vpop.f32.mrb[0].mxu0
        %2717 = vmatprep.mubr.f32.mxu0 0.0
        %2718 = vmatmul.mubr.f32.gmra.mrb[0].mxu0 %v2488
        %v2719 = vpop.f32.mrb[0].mxu0
        %v2720 = vadd.f32 0.0, %v2719
        %v2721 = vpop.f32.mrb[0].mxu0
        %2722 = vmatprep.mubr.f32.mxu0 0.0
        %2723 = vmatmul.mubr.f32.gmra.mrb[0].mxu0 %v2489
        %v2724 = vpop.f32.mrb[0].mxu0
        %v2725 = vadd.f32 0.0, %v2724
        %v2726 = vpop.f32.mrb[0].mxu0
        %2727 = vmatprep.mubr.f32.mxu0 0.0
        %2728 = vmatmul.mubr.f32.gmra.mrb[0].mxu0 %v2490
        %v2729 = vpop.f32.mrb[0].mxu0
        %v2730 = vadd.f32 0.0, %v2729
        %v2731 = vpop.f32.mrb[0].mxu0
        %2732 = vdwg.mxu0
        %v2733 = vadd.f32 %v2427, %v2575
        %v2734 = vadd.f32 %v2428, %v2580
        %v2735 = vadd.f32 %v2429, %v2585
        %v2736 = vadd.f32 %v2430, %v2590
        %v2737 = vadd.f32 %v2431, %v2595
        %v2738 = vadd.f32 %v2432, %v2600
        %v2739 = vadd.f32 %v2433, %v2605
        %v2740 = vadd.f32 %v2434, %v2610
        %v2741 = vadd.f32 %v2435, %v2615
        %v2742 = vadd.f32 %v2436, %v2620
        %v2743 = vadd.f32 %v2437, %v2625
        %v2744 = vadd.f32 %v2438, %v2630
        %v2745 = vadd.f32 %v2439, %v2635
        %v2746 = vadd.f32 %v2440, %v2640
        %v2747 = vadd.f32 %v2441, %v2645
        %v2748 = vadd.f32 %v2442, %v2650
        %v2749 = vadd.f32 %v2443, %v2655
        %v2750 = vadd.f32 %v2444, %v2660
        %v2751 = vadd.f32 %v2445, %v2665
        %v2752 = vadd.f32 %v2446, %v2670
        %v2753 = vadd.f32 %v2447, %v2675
        %v2754 = vadd.f32 %v2448, %v2680
        %v2755 = vadd.f32 %v2449, %v2685
        %v2756 = vadd.f32 %v2450, %v2690
        %v2757 = vadd.f32 %v2451, %v2695
        %v2758 = vadd.f32 %v2452, %v2700
        %v2759 = vadd.f32 %v2453, %v2705
        %v2760 = vadd.f32 %v2454, %v2710
        %v2761 = vadd.f32 %v2455, %v2715
        %v2762 = vadd.f32 %v2456, %v2720
        %v2763 = vadd.f32 %v2457, %v2725
        %v2764 = vadd.f32 %v2458, %v2730
        %v2765 = vld [vmem:[%s2152 + $0x2] sm:$0xff]
        %v2766 = vld [vmem:[%s2152 + $0xa] sm:$0xff]
        %v2767 = vld [vmem:[%s2152 + $0x1a] sm:$0xff]
        %v2768 = vld [vmem:[%s2152 + $0x22] sm:$0xff]
        %v2769 = vld [vmem:[%s2152 + $0x32] sm:$0xff]
        %v2770 = vld [vmem:[%s2152 + $0x3a] sm:$0xff]
        %v2771 = vld [vmem:[%s2152 + $0x4a] sm:$0xff]
        %v2772 = vld [vmem:[%s2152 + $0x52] sm:$0xff]
        %v2773 = vld [vmem:[%s2152 + $0x62] sm:$0xff]
        %v2774 = vld [vmem:[%s2152 + $0x6a] sm:$0xff]
        %v2775 = vld [vmem:[%s2152 + $0x7a] sm:$0xff]
        %v2776 = vld [vmem:[%s2152 + $0x82] sm:$0xff]
        %v2777 = vld [vmem:[%s2152 + $0x92] sm:$0xff]
        %v2778 = vld [vmem:[%s2152 + $0x9a] sm:$0xff]
        %v2779 = vld [vmem:[%s2152 + $0xaa] sm:$0xff]
        %v2780 = vld [vmem:[%s2152 + $0xb2] sm:$0xff]
        %v2781 = vld [vmem:[%s2152 + $0xc2] sm:$0xff]
        %v2782 = vld [vmem:[%s2152 + $0xca] sm:$0xff]
        %v2783 = vld [vmem:[%s2152 + $0xda] sm:$0xff]
        %v2784 = vld [vmem:[%s2152 + $0xe2] sm:$0xff]
        %v2785 = vld [vmem:[%s2152 + $0xf2] sm:$0xff]
        %v2786 = vld [vmem:[%s2152 + $0xfa] sm:$0xff]
        %v2787 = vld [vmem:[%s2152 + $0x10a] sm:$0xff]
        %v2788 = vld [vmem:[%s2152 + $0x112] sm:$0xff]
        %v2789 = vld [vmem:[%s2152 + $0x122] sm:$0xff]
        %v2790 = vld [vmem:[%s2152 + $0x12a] sm:$0xff]
        %v2791 = vld [vmem:[%s2152 + $0x13a] sm:$0xff]
        %v2792 = vld [vmem:[%s2152 + $0x142] sm:$0xff]
        %v2793 = vld [vmem:[%s2152 + $0x152] sm:$0xff]
        %v2794 = vld [vmem:[%s2152 + $0x15a] sm:$0xff]
        %v2795 = vld [vmem:[%s2152 + $0x16a] sm:$0xff]
        %v2796 = vld [vmem:[%s2152 + $0x172] sm:$0xff]
        %s2797 = scalar_lea.vmem %s173, 1024
        %v2798 = vld [vmem:[%s2797] sm:$0xff]
        %v2799 = vld [vmem:[%s2797 + $0x8] sm:$0xff]
        %v2800 = vld [vmem:[%s2797 + $0x10] sm:$0xff]
        %v2801 = vld [vmem:[%s2797 + $0x18] sm:$0xff]
        %v2802 = vld [vmem:[%s2797 + $0x20] sm:$0xff]
        %v2803 = vld [vmem:[%s2797 + $0x28] sm:$0xff]
        %v2804 = vld [vmem:[%s2797 + $0x30] sm:$0xff]
        %v2805 = vld [vmem:[%s2797 + $0x38] sm:$0xff]
        %v2806 = vld [vmem:[%s2797 + $0x40] sm:$0xff]
        %v2807 = vld [vmem:[%s2797 + $0x48] sm:$0xff]
        %v2808 = vld [vmem:[%s2797 + $0x50] sm:$0xff]
        %v2809 = vld [vmem:[%s2797 + $0x58] sm:$0xff]
        %v2810 = vld [vmem:[%s2797 + $0x60] sm:$0xff]
        %v2811 = vld [vmem:[%s2797 + $0x68] sm:$0xff]
        %v2812 = vld [vmem:[%s2797 + $0x70] sm:$0xff]
        %v2813 = vld [vmem:[%s2797 + $0x78] sm:$0xff]
        %2814 = vmatprep.subr.mxu0 0.0
        %2815 = vmatpush1.msra.mxu0 %v2798
        %2816 = vmatprep.subr.mxu0 0.0
        %2817 = vmatpush1.msra.mxu0 %v2799
        %2818 = vmatprep.subr.mxu0 0.0
        %2819 = vmatpush1.msra.mxu0 %v2800
        %2820 = vmatprep.subr.mxu0 0.0
        %2821 = vmatpush1.msra.mxu0 %v2801
        %2822 = vmatprep.subr.mxu0 0.0
        %2823 = vmatpush1.msra.mxu0 %v2802
        %2824 = vmatprep.subr.mxu0 0.0
        %2825 = vmatpush1.msra.mxu0 %v2803
        %2826 = vmatprep.subr.mxu0 0.0
        %2827 = vmatpush1.msra.mxu0 %v2804
        %2828 = vmatprep.subr.mxu0 0.0
        %2829 = vmatpush1.msra.mxu0 %v2805
        %2830 = vmatprep.subr.mxu0 0.0
        %2831 = vmatpush1.msra.mxu0 %v2806
        %2832 = vmatprep.subr.mxu0 0.0
        %2833 = vmatpush1.msra.mxu0 %v2807
        %2834 = vmatprep.subr.mxu0 0.0
        %2835 = vmatpush1.msra.mxu0 %v2808
        %2836 = vmatprep.subr.mxu0 0.0
        %2837 = vmatpush1.msra.mxu0 %v2809
        %2838 = vmatprep.subr.mxu0 0.0
        %2839 = vmatpush1.msra.mxu0 %v2810
        %2840 = vmatprep.subr.mxu0 0.0
        %2841 = vmatpush1.msra.mxu0 %v2811
        %2842 = vmatprep.subr.mxu0 0.0
        %2843 = vmatpush1.msra.mxu0 %v2812
        %2844 = vmatprep.subr.mxu0 0.0
        %2845 = vmatpush1.msra.mxu0 %v2813
        %2846 = vmatprep.subr.mxu0 0.0
        %2847 = vmatpush1.msra.mxu0 0.0
        %2848 = vmatprep.subr.mxu0 0.0
        %2849 = vmatpush1.msra.mxu0 0.0
        %2850 = vmatprep.subr.mxu0 0.0
        %2851 = vmatpush1.msra.mxu0 0.0
        %2852 = vmatprep.subr.mxu0 0.0
        %2853 = vmatpush1.msra.mxu0 0.0
        %2854 = vmatprep.subr.mxu0 0.0
        %2855 = vmatpush1.msra.mxu0 0.0
        %2856 = vmatprep.subr.mxu0 0.0
        %2857 = vmatpush1.msra.mxu0 0.0
        %2858 = vmatprep.subr.mxu0 0.0
        %2859 = vmatpush1.msra.mxu0 0.0
        %2860 = vmatprep.subr.mxu0 0.0
        %2861 = vmatpush1.msra.mxu0 0.0
        %2862 = vmatprep.subr.mxu0 0.0
        %2863 = vmatpush1.msra.mxu0 0.0
        %2864 = vmatprep.subr.mxu0 0.0
        %2865 = vmatpush1.msra.mxu0 0.0
        %2866 = vmatprep.subr.mxu0 0.0
        %2867 = vmatpush1.msra.mxu0 0.0
        %2868 = vmatprep.subr.mxu0 0.0
        %2869 = vmatpush1.msra.mxu0 0.0
        %2870 = vmatprep.subr.mxu0 0.0
        %2871 = vmatpush1.msra.mxu0 0.0
        %2872 = vmatprep.subr.mxu0 0.0
        %2873 = vmatpush1.msra.mxu0 0.0
        %2874 = vmatprep.subr.mxu0 0.0
        %2875 = vmatpush1.msra.mxu0 0.0
        %2876 = vmatprep.subr.mxu0 0.0
        %2877 = vmatpush1.msra.mxu0 0.0
        %2878 = vmatprep.mubr.f32.mxu0 0.0
        %2879 = vmatmul.mubr.f32.gmra.mrb[0].mxu0 %v2765
        %v2880 = vpop.f32.mrb[0].mxu0
        %v2881 = vadd.f32 0.0, %v2880
        %v2882 = vpop.f32.mrb[0].mxu0
        %2883 = vmatprep.mubr.f32.mxu0 0.0
        %2884 = vmatmul.mubr.f32.gmra.mrb[0].mxu0 %v2766
        %v2885 = vpop.f32.mrb[0].mxu0
        %v2886 = vadd.f32 0.0, %v2885
        %v2887 = vpop.f32.mrb[0].mxu0
        %2888 = vmatprep.mubr.f32.mxu0 0.0
        %2889 = vmatmul.mubr.f32.gmra.mrb[0].mxu0 %v2767
        %v2890 = vpop.f32.mrb[0].mxu0
        %v2891 = vadd.f32 0.0, %v2890
        %v2892 = vpop.f32.mrb[0].mxu0
        %2893 = vmatprep.mubr.f32.mxu0 0.0
        %2894 = vmatmul.mubr.f32.gmra.mrb[0].mxu0 %v2768
        %v2895 = vpop.f32.mrb[0].mxu0
        %v2896 = vadd.f32 0.0, %v2895
        %v2897 = vpop.f32.mrb[0].mxu0
        %2898 = vmatprep.mubr.f32.mxu0 0.0
        %2899 = vmatmul.mubr.f32.gmra.mrb[0].mxu0 %v2769
        %v2900 = vpop.f32.mrb[0].mxu0
        %v2901 = vadd.f32 0.0, %v2900
        %v2902 = vpop.f32.mrb[0].mxu0
        %2903 = vmatprep.mubr.f32.mxu0 0.0
        %2904 = vmatmul.mubr.f32.gmra.mrb[0].mxu0 %v2770
        %v2905 = vpop.f32.mrb[0].mxu0
        %v2906 = vadd.f32 0.0, %v2905
        %v2907 = vpop.f32.mrb[0].mxu0
        %2908 = vmatprep.mubr.f32.mxu0 0.0
        %2909 = vmatmul.mubr.f32.gmra.mrb[0].mxu0 %v2771
        %v2910 = vpop.f32.mrb[0].mxu0
        %v2911 = vadd.f32 0.0, %v2910
        %v2912 = vpop.f32.mrb[0].mxu0
        %2913 = vmatprep.mubr.f32.mxu0 0.0
        %2914 = vmatmul.mubr.f32.gmra.mrb[0].mxu0 %v2772
        %v2915 = vpop.f32.mrb[0].mxu0
        %v2916 = vadd.f32 0.0, %v2915
        %v2917 = vpop.f32.mrb[0].mxu0
        %2918 = vmatprep.mubr.f32.mxu0 0.0
        %2919 = vmatmul.mubr.f32.gmra.mrb[0].mxu0 %v2773
        %v2920 = vpop.f32.mrb[0].mxu0
        %v2921 = vadd.f32 0.0, %v2920
        %v2922 = vpop.f32.mrb[0].mxu0
        %2923 = vmatprep.mubr.f32.mxu0 0.0
        %2924 = vmatmul.mubr.f32.gmra.mrb[0].mxu0 %v2774
        %v2925 = vpop.f32.mrb[0].mxu0
        %v2926 = vadd.f32 0.0, %v2925
        %v2927 = vpop.f32.mrb[0].mxu0
        %2928 = vmatprep.mubr.f32.mxu0 0.0
        %2929 = vmatmul.mubr.f32.gmra.mrb[0].mxu0 %v2775
        %v2930 = vpop.f32.mrb[0].mxu0
        %v2931 = vadd.f32 0.0, %v2930
        %v2932 = vpop.f32.mrb[0].mxu0
        %2933 = vmatprep.mubr.f32.mxu0 0.0
        %2934 = vmatmul.mubr.f32.gmra.mrb[0].mxu0 %v2776
        %v2935 = vpop.f32.mrb[0].mxu0
        %v2936 = vadd.f32 0.0, %v2935
        %v2937 = vpop.f32.mrb[0].mxu0
        %2938 = vmatprep.mubr.f32.mxu0 0.0
        %2939 = vmatmul.mubr.f32.gmra.mrb[0].mxu0 %v2777
        %v2940 = vpop.f32.mrb[0].mxu0
        %v2941 = vadd.f32 0.0, %v2940
        %v2942 = vpop.f32.mrb[0].mxu0
        %2943 = vmatprep.mubr.f32.mxu0 0.0
        %2944 = vmatmul.mubr.f32.gmra.mrb[0].mxu0 %v2778
        %v2945 = vpop.f32.mrb[0].mxu0
        %v2946 = vadd.f32 0.0, %v2945
        %v2947 = vpop.f32.mrb[0].mxu0
        %2948 = vmatprep.mubr.f32.mxu0 0.0
        %2949 = vmatmul.mubr.f32.gmra.mrb[0].mxu0 %v2779
        %v2950 = vpop.f32.mrb[0].mxu0
        %v2951 = vadd.f32 0.0, %v2950
        %v2952 = vpop.f32.mrb[0].mxu0
        %2953 = vmatprep.mubr.f32.mxu0 0.0
        %2954 = vmatmul.mubr.f32.gmra.mrb[0].mxu0 %v2780
        %v2955 = vpop.f32.mrb[0].mxu0
        %v2956 = vadd.f32 0.0, %v2955
        %v2957 = vpop.f32.mrb[0].mxu0
        %2958 = vmatprep.mubr.f32.mxu0 0.0
        %2959 = vmatmul.mubr.f32.gmra.mrb[0].mxu0 %v2781
        %v2960 = vpop.f32.mrb[0].mxu0
        %v2961 = vadd.f32 0.0, %v2960
        %v2962 = vpop.f32.mrb[0].mxu0
        %2963 = vmatprep.mubr.f32.mxu0 0.0
        %2964 = vmatmul.mubr.f32.gmra.mrb[0].mxu0 %v2782
        %v2965 = vpop.f32.mrb[0].mxu0
        %v2966 = vadd.f32 0.0, %v2965
        %v2967 = vpop.f32.mrb[0].mxu0
        %2968 = vmatprep.mubr.f32.mxu0 0.0
        %2969 = vmatmul.mubr.f32.gmra.mrb[0].mxu0 %v2783
        %v2970 = vpop.f32.mrb[0].mxu0
        %v2971 = vadd.f32 0.0, %v2970
        %v2972 = vpop.f32.mrb[0].mxu0
        %2973 = vmatprep.mubr.f32.mxu0 0.0
        %2974 = vmatmul.mubr.f32.gmra.mrb[0].mxu0 %v2784
        %v2975 = vpop.f32.mrb[0].mxu0
        %v2976 = vadd.f32 0.0, %v2975
        %v2977 = vpop.f32.mrb[0].mxu0
        %2978 = vmatprep.mubr.f32.mxu0 0.0
        %2979 = vmatmul.mubr.f32.gmra.mrb[0].mxu0 %v2785
        %v2980 = vpop.f32.mrb[0].mxu0
        %v2981 = vadd.f32 0.0, %v2980
        %v2982 = vpop.f32.mrb[0].mxu0
        %2983 = vmatprep.mubr.f32.mxu0 0.0
        %2984 = vmatmul.mubr.f32.gmra.mrb[0].mxu0 %v2786
        %v2985 = vpop.f32.mrb[0].mxu0
        %v2986 = vadd.f32 0.0, %v2985
        %v2987 = vpop.f32.mrb[0].mxu0
        %2988 = vmatprep.mubr.f32.mxu0 0.0
        %2989 = vmatmul.mubr.f32.gmra.mrb[0].mxu0 %v2787
        %v2990 = vpop.f32.mrb[0].mxu0
        %v2991 = vadd.f32 0.0, %v2990
        %v2992 = vpop.f32.mrb[0].mxu0
        %2993 = vmatprep.mubr.f32.mxu0 0.0
        %2994 = vmatmul.mubr.f32.gmra.mrb[0].mxu0 %v2788
        %v2995 = vpop.f32.mrb[0].mxu0
        %v2996 = vadd.f32 0.0, %v2995
        %v2997 = vpop.f32.mrb[0].mxu0
        %2998 = vmatprep.mubr.f32.mxu0 0.0
        %2999 = vmatmul.mubr.f32.gmra.mrb[0].mxu0 %v2789
        %v3000 = vpop.f32.mrb[0].mxu0
        %v3001 = vadd.f32 0.0, %v3000
        %v3002 = vpop.f32.mrb[0].mxu0
        %3003 = vmatprep.mubr.f32.mxu0 0.0
        %3004 = vmatmul.mubr.f32.gmra.mrb[0].mxu0 %v2790
        %v3005 = vpop.f32.mrb[0].mxu0
        %v3006 = vadd.f32 0.0, %v3005
        %v3007 = vpop.f32.mrb[0].mxu0
        %3008 = vmatprep.mubr.f32.mxu0 0.0
        %3009 = vmatmul.mubr.f32.gmra.mrb[0].mxu0 %v2791
        %v3010 = vpop.f32.mrb[0].mxu0
        %v3011 = vadd.f32 0.0, %v3010
        %v3012 = vpop.f32.mrb[0].mxu0
        %3013 = vmatprep.mubr.f32.mxu0 0.0
        %3014 = vmatmul.mubr.f32.gmra.mrb[0].mxu0 %v2792
        %v3015 = vpop.f32.mrb[0].mxu0
        %v3016 = vadd.f32 0.0, %v3015
        %v3017 = vpop.f32.mrb[0].mxu0
        %3018 = vmatprep.mubr.f32.mxu0 0.0
        %3019 = vmatmul.mubr.f32.gmra.mrb[0].mxu0 %v2793
        %v3020 = vpop.f32.mrb[0].mxu0
        %v3021 = vadd.f32 0.0, %v3020
        %v3022 = vpop.f32.mrb[0].mxu0
        %3023 = vmatprep.mubr.f32.mxu0 0.0
        %3024 = vmatmul.mubr.f32.gmra.mrb[0].mxu0 %v2794
        %v3025 = vpop.f32.mrb[0].mxu0
        %v3026 = vadd.f32 0.0, %v3025
        %v3027 = vpop.f32.mrb[0].mxu0
        %3028 = vmatprep.mubr.f32.mxu0 0.0
        %3029 = vmatmul.mubr.f32.gmra.mrb[0].mxu0 %v2795
        %v3030 = vpop.f32.mrb[0].mxu0
        %v3031 = vadd.f32 0.0, %v3030
        %v3032 = vpop.f32.mrb[0].mxu0
        %3033 = vmatprep.mubr.f32.mxu0 0.0
        %3034 = vmatmul.mubr.f32.gmra.mrb[0].mxu0 %v2796
        %v3035 = vpop.f32.mrb[0].mxu0
        %v3036 = vadd.f32 0.0, %v3035
        %v3037 = vpop.f32.mrb[0].mxu0
        %3038 = vdwg.mxu0
        %v3039 = vadd.f32 %v2733, %v2881
        %v3040 = vadd.f32 %v2734, %v2886
        %v3041 = vadd.f32 %v2735, %v2891
        %v3042 = vadd.f32 %v2736, %v2896
        %v3043 = vadd.f32 %v2737, %v2901
        %v3044 = vadd.f32 %v2738, %v2906
        %v3045 = vadd.f32 %v2739, %v2911
        %v3046 = vadd.f32 %v2740, %v2916
        %v3047 = vadd.f32 %v2741, %v2921
        %v3048 = vadd.f32 %v2742, %v2926
        %v3049 = vadd.f32 %v2743, %v2931
        %v3050 = vadd.f32 %v2744, %v2936
        %v3051 = vadd.f32 %v2745, %v2941
        %v3052 = vadd.f32 %v2746, %v2946
        %v3053 = vadd.f32 %v2747, %v2951
        %v3054 = vadd.f32 %v2748, %v2956
        %v3055 = vadd.f32 %v2749, %v2961
        %v3056 = vadd.f32 %v2750, %v2966
        %v3057 = vadd.f32 %v2751, %v2971
        %v3058 = vadd.f32 %v2752, %v2976
        %v3059 = vadd.f32 %v2753, %v2981
        %v3060 = vadd.f32 %v2754, %v2986
        %v3061 = vadd.f32 %v2755, %v2991
        %v3062 = vadd.f32 %v2756, %v2996
        %v3063 = vadd.f32 %v2757, %v3001
        %v3064 = vadd.f32 %v2758, %v3006
        %v3065 = vadd.f32 %v2759, %v3011
        %v3066 = vadd.f32 %v2760, %v3016
        %v3067 = vadd.f32 %v2761, %v3021
        %v3068 = vadd.f32 %v2762, %v3026
        %v3069 = vadd.f32 %v2763, %v3031
        %v3070 = vadd.f32 %v2764, %v3036
        %v3071 = vld [vmem:[%s176] sm:$0x1]
        %v3073 = vlaneseq
        %v3074 = vshrl.u32 %v3073, 7
        %v3075 = vsub.s32 0, %v3074
        %v3076 = vrot.slane %v3071, %v3075
        %v3078 = vadd.f32 %v3039, %v3076
        %v3079 = vadd.f32 %v3040, %v3076
        %v3080 = vadd.f32 %v3041, %v3076
        %v3081 = vadd.f32 %v3042, %v3076
        %v3082 = vadd.f32 %v3043, %v3076
        %v3083 = vadd.f32 %v3044, %v3076
        %v3084 = vadd.f32 %v3045, %v3076
        %v3085 = vadd.f32 %v3046, %v3076
        %v3086 = vadd.f32 %v3047, %v3076
        %v3087 = vadd.f32 %v3048, %v3076
        %v3088 = vadd.f32 %v3049, %v3076
        %v3089 = vadd.f32 %v3050, %v3076
        %v3090 = vadd.f32 %v3051, %v3076
        %v3091 = vadd.f32 %v3052, %v3076
        %v3092 = vadd.f32 %v3053, %v3076
        %v3093 = vadd.f32 %v3054, %v3076
        %v3094 = vadd.f32 %v3055, %v3076
        %v3095 = vadd.f32 %v3056, %v3076
        %v3096 = vadd.f32 %v3057, %v3076
        %v3097 = vadd.f32 %v3058, %v3076
        %v3098 = vadd.f32 %v3059, %v3076
        %v3099 = vadd.f32 %v3060, %v3076
        %v3100 = vadd.f32 %v3061, %v3076
        %v3101 = vadd.f32 %v3062, %v3076
        %v3102 = vadd.f32 %v3063, %v3076
        %v3103 = vadd.f32 %v3064, %v3076
        %v3104 = vadd.f32 %v3065, %v3076
        %v3105 = vadd.f32 %v3066, %v3076
        %v3106 = vadd.f32 %v3067, %v3076
        %v3107 = vadd.f32 %v3068, %v3076
        %v3108 = vadd.f32 %v3069, %v3076
        %v3109 = vadd.f32 %v3070, %v3076
        %v3110 = vmul.f32 %v3078, 0.1
        %v3111 = vmul.f32 %v3079, 0.1
        %v3112 = vmul.f32 %v3080, 0.1
        %v3113 = vmul.f32 %v3081, 0.1
        %v3114 = vmul.f32 %v3082, 0.1
        %v3115 = vmul.f32 %v3083, 0.1
        %v3116 = vmul.f32 %v3084, 0.1
        %v3117 = vmul.f32 %v3085, 0.1
        %v3118 = vmul.f32 %v3086, 0.1
        %v3119 = vmul.f32 %v3087, 0.1
        %v3120 = vmul.f32 %v3088, 0.1
        %v3121 = vmul.f32 %v3089, 0.1
        %v3122 = vmul.f32 %v3090, 0.1
        %v3123 = vmul.f32 %v3091, 0.1
        %v3124 = vmul.f32 %v3092, 0.1
        %v3125 = vmul.f32 %v3093, 0.1
        %v3126 = vmul.f32 %v3094, 0.1
        %v3127 = vmul.f32 %v3095, 0.1
        %v3128 = vmul.f32 %v3096, 0.1
        %v3129 = vmul.f32 %v3097, 0.1
        %v3130 = vmul.f32 %v3098, 0.1
        %v3131 = vmul.f32 %v3099, 0.1
        %v3132 = vmul.f32 %v3100, 0.1
        %v3133 = vmul.f32 %v3101, 0.1
        %v3134 = vmul.f32 %v3102, 0.1
        %v3135 = vmul.f32 %v3103, 0.1
        %v3136 = vmul.f32 %v3104, 0.1
        %v3137 = vmul.f32 %v3105, 0.1
        %v3138 = vmul.f32 %v3106, 0.1
        %v3139 = vmul.f32 %v3107, 0.1
        %v3140 = vmul.f32 %v3108, 0.1
        %v3141 = vmul.f32 %v3109, 0.1
        %v3142 = vmax.f32 %v3078, %v3110
        %v3143 = vmax.f32 %v3079, %v3111
        %v3144 = vmax.f32 %v3080, %v3112
        %v3145 = vmax.f32 %v3081, %v3113
        %v3146 = vmax.f32 %v3082, %v3114
        %v3147 = vmax.f32 %v3083, %v3115
        %v3148 = vmax.f32 %v3084, %v3116
        %v3149 = vmax.f32 %v3085, %v3117
        %v3150 = vmax.f32 %v3086, %v3118
        %v3151 = vmax.f32 %v3087, %v3119
        %v3152 = vmax.f32 %v3088, %v3120
        %v3153 = vmax.f32 %v3089, %v3121
        %v3154 = vmax.f32 %v3090, %v3122
        %v3155 = vmax.f32 %v3091, %v3123
        %v3156 = vmax.f32 %v3092, %v3124
        %v3157 = vmax.f32 %v3093, %v3125
        %v3158 = vmax.f32 %v3094, %v3126
        %v3159 = vmax.f32 %v3095, %v3127
        %v3160 = vmax.f32 %v3096, %v3128
        %v3161 = vmax.f32 %v3097, %v3129
        %v3162 = vmax.f32 %v3098, %v3130
        %v3163 = vmax.f32 %v3099, %v3131
        %v3164 = vmax.f32 %v3100, %v3132
        %v3165 = vmax.f32 %v3101, %v3133
        %v3166 = vmax.f32 %v3102, %v3134
        %v3167 = vmax.f32 %v3103, %v3135
        %v3168 = vmax.f32 %v3104, %v3136
        %v3169 = vmax.f32 %v3105, %v3137
        %v3170 = vmax.f32 %v3106, %v3138
        %v3171 = vmax.f32 %v3107, %v3139
        %v3172 = vmax.f32 %v3108, %v3140
        %v3173 = vmax.f32 %v3109, %v3141
        %3174 = vst [vmem:[%s169] sm:$0xff] %v3142
        %3175 = vst [vmem:[%s169 + $0x8] sm:$0xff] %v3143
        %3176 = vst [vmem:[%s169 + $0x10] sm:$0xff] %v3144
        %3177 = vst [vmem:[%s169 + $0x18] sm:$0xff] %v3145
        %3178 = vst [vmem:[%s169 + $0x20] sm:$0xff] %v3146
        %3179 = vst [vmem:[%s169 + $0x28] sm:$0xff] %v3147
        %3180 = vst [vmem:[%s169 + $0x30] sm:$0xff] %v3148
        %3181 = vst [vmem:[%s169 + $0x38] sm:$0xff] %v3149
        %3182 = vst [vmem:[%s169 + $0x40] sm:$0xff] %v3150
        %3183 = vst [vmem:[%s169 + $0x48] sm:$0xff] %v3151
        %3184 = vst [vmem:[%s169 + $0x50] sm:$0xff] %v3152
        %3185 = vst [vmem:[%s169 + $0x58] sm:$0xff] %v3153
        %3186 = vst [vmem:[%s169 + $0x60] sm:$0xff] %v3154
        %3187 = vst [vmem:[%s169 + $0x68] sm:$0xff] %v3155
        %3188 = vst [vmem:[%s169 + $0x70] sm:$0xff] %v3156
        %3189 = vst [vmem:[%s169 + $0x78] sm:$0xff] %v3157
        %3190 = vst [vmem:[%s169 + $0x80] sm:$0xff] %v3158
        %3191 = vst [vmem:[%s169 + $0x88] sm:$0xff] %v3159
        %3192 = vst [vmem:[%s169 + $0x90] sm:$0xff] %v3160
        %3193 = vst [vmem:[%s169 + $0x98] sm:$0xff] %v3161
        %3194 = vst [vmem:[%s169 + $0xa0] sm:$0xff] %v3162
        %3195 = vst [vmem:[%s169 + $0xa8] sm:$0xff] %v3163
        %3196 = vst [vmem:[%s169 + $0xb0] sm:$0xff] %v3164
        %3197 = vst [vmem:[%s169 + $0xb8] sm:$0xff] %v3165
        %3198 = vst [vmem:[%s169 + $0xc0] sm:$0xff] %v3166
        %3199 = vst [vmem:[%s169 + $0xc8] sm:$0xff] %v3167
        %3200 = vst [vmem:[%s169 + $0xd0] sm:$0xff] %v3168
        %3201 = vst [vmem:[%s169 + $0xd8] sm:$0xff] %v3169
        %3202 = vst [vmem:[%s169 + $0xe0] sm:$0xff] %v3170
        %3203 = vst [vmem:[%s169 + $0xe8] sm:$0xff] %v3171
        %3204 = vst [vmem:[%s169 + $0xf0] sm:$0xff] %v3172
        %3205 = vst [vmem:[%s169 + $0xf8] sm:$0xff] %v3173
        %s3206 = sand.u32 %s100, 1
        %s3207 = scalar_lea.sflag [#allocation5], %s3206
        %s3208 = sand.u32 %s100, 1
        %s3209 = smul.addr %s3208, 256
        %s3210 = scalar_lea.vmem [#allocation4], %s3209
        // Predicated region
        $region70: #{tpu_custom_call.1} parent=27 // pred_check
          %p3211 = pneg %p110
        $region71: #{tpu_custom_call.1} parent=27 // pred_check_branch
          %3213 = sbr.rel (%p3211) target = $region73
        $region72: #{tpu_custom_call.1} parent=27 // pred_region
          %s3214 = smul.u32 16, %s24
          %s3216 = ssub.s32 4096, 4096
          %3217 = vsyncadd %s3207, %s3216
          %s3218 = smul.addr %s3214, 2
          %s3219 = sadd.s32 %s23, %s3218
          %s3220 = smul.addr %s22, 32
          %s3221 = sadd.s32 %s3219, %s3220
          %s3222 = smul.addr %s3221, 128
          %s3223 = scalar_lea.hbm %s3, %s3222
          %s3224 = sshll.u32 %s3210, 4
          %s3225 = int_to_ptr.vmem [resolvable:$true] %s3224
          %3230 = dma.vmem_to_hbm [thread:$0]  %s3225, 4096, %s3223, %s3207, 128, 128, 8
        $region73: #{tpu_custom_call.1} parent=27 // pred_fallthru
          _
      $region28: #{tpu_custom_call.1} parent=5 // pred_fallthru
        _
      %p3231 = scmp.le.s32.totalorder 2, %s12
      // Predicated region
      $region74: #{tpu_custom_call.1} parent=5 // pred_check
        %p3232 = pneg %p3231
      $region75: #{tpu_custom_call.1} parent=5 // pred_check_branch
        %3234 = sbr.rel (%p3232) target = $region77
      $region76: #{tpu_custom_call.1} parent=5 // pred_region
        %s3235 = ssub.s32 %s12, 2
        // Predicated region
        $region78: #{tpu_custom_call.1} parent=76 // pred_check
          %p3236 = pneg %p116
        $region79: #{tpu_custom_call.1} parent=76 // pred_check_branch
          %3238 = sbr.rel (%p3236) target = $region81
        $region80: #{tpu_custom_call.1} parent=76 // pred_region
          %s3239 = sand.u32 %s101, 1
          %s3240 = scalar_lea.sflag [#allocation5], %s3239
          %s3241 = sand.u32 %s101, 1
          %s3242 = smul.addr %s3241, 256
          %s3243 = scalar_lea.vmem [#allocation4], %s3242
          %3244 = dma.done %s3240, 4096
        $region81: #{tpu_custom_call.1} parent=76 // pred_fallthru
          _
      $region77: #{tpu_custom_call.1} parent=5 // pred_fallthru
        _
    $region6: #{tpu_custom_call.1} parent=1 // loop_footer
      %s16 = sadd.s32 1, %s12
    $region7: #{tpu_custom_call.1} parent=1 // loop_footer_branch
      %11 = sbr.rel target = $region3
    $region8: #{tpu_custom_call.1} parent=1 // loop_exit
      _
    %3245 = vsyncpa [#allocation5], 1
    %s3246 = scalar_lea.sflag [#allocation5], 1
    %3247 = vsyncpa %s3246, 1
  %3248 = vsyncmov [#allocation3]
  %s3249 = vpop.sfrf %3248
  %p3250 = scmp.eq.s32.totalorder %s3249, 0
  %p3251 = pneg %p3250
  %3253 = shalt.err (%p3251)
  %s3254 = scalar_lea.sflag [#allocation3], 1
  %3255 = vsyncmov %s3254
  %s3256 = vpop.sfrf %3255
  %p3257 = scmp.eq.s32.totalorder %s3256, 0
  %p3258 = pneg %p3257
  %3260 = shalt.err (%p3258)

</llo_original>
